<compile_context>
chip_gen: v7x
topology: tpu7x:2x2x1
jax: 0.10.0
libtpu: 0.0.40
codegen_flags: <defaults>
</compile_context>

<pallas_src>
import jax
import jax.numpy as jnp
from jax.experimental import pallas as pl
from jax.experimental.pallas import tpu as pltpu

FEAT = 2048           # image feature dim (nn.Linear(2048, 768))
HID = 768             # BERT hidden size
N_IMG = 7             # number of image regions
SEQ = N_IMG + 2       # 9 = CLS + 7 images + SEP
LN_EPS = 1e-12        # BERT LayerNorm eps

# 224 rows per grid step ~fills the 256-wide MXU on v6e/v7x (and is a clean
# multiple of 8 and of 7).  On v5e (128-wide MXU) 112 = 16*7 would also be fine.
M_BLOCK_TARGET = 32 * N_IMG


def _img_rows_kernel(x_ref, w_ref, off_ref, tdelta_ref, sel_ref,
                     gamma_ref, beta_ref, o_ref):
    """Project + embed + LayerNorm one block of flattened (batch*region) rows.

    x_ref      : (M, 2048) f32   image region features (M = TB * 7)
    w_ref      : (2048, 768) bf16 projection weight (x @ W layout), grid-invariant
    off_ref    : (M, 768) f32    bias + pos_emb[1 + r%7] + type_emb[0], grid-invariant
    tdelta_ref : (1, 768) f32    type_emb[1] - type_emb[0]
    sel_ref    : (M, 1) f32      token_type id for each row (0.0 or 1.0)
    gamma_ref  : (1, 768) f32    LayerNorm weight
    beta_ref   : (1, 768) f32    LayerNorm bias
    o_ref      : (M, 768) f32    LayerNorm'ed image-token embeddings
    """
    # MXU: bf16 x bf16 with f32 accumulation.
    acc = jnp.dot(x_ref[...].astype(jnp.bfloat16), w_ref[...],
                  preferred_element_type=jnp.float32)               # (M, 768) f32

    # Fold in bias + position + token-type embeddings (VPU, all f32).
    pre = acc + off_ref[...] + sel_ref[...] * tdelta_ref[...]

    # LayerNorm over the hidden dim.
    mean = jnp.mean(pre, axis=-1, keepdims=True)
    centered = pre - mean
    var = jnp.mean(centered * centered, axis=-1, keepdims=True)
    inv = jax.lax.rsqrt(var + LN_EPS)
    o_ref[...] = (centered * inv * gamma_ref[...] + beta_ref[...]).astype(o_ref.dtype)


def _layernorm(x, gamma, beta):
    mean = x.mean(-1, keepdims=True)
    var = ((x - mean) ** 2).mean(-1, keepdims=True)
    return (x - mean) * jax.lax.rsqrt(var + LN_EPS) * gamma + beta


def image_embeddings_for_bert(batch_input_imgs, token_type_ids, params):
    """params: dict with keys
         img_w (768, 2048), img_b (768,), word_emb (V, 768),
         pos_emb (P, 768), type_emb (2, 768), ln_gamma (768,), ln_beta (768,)
    """
    f32 = jnp.float32
    B = batch_input_imgs.shape[0]

    word = params["word_emb"].astype(f32)
    pos = params["pos_emb"].astype(f32)
    typ = params["type_emb"].astype(f32)
    gamma = params["ln_gamma"].astype(f32)
    beta = params["ln_beta"].astype(f32)
    bias = params["img_b"].astype(f32)
    w_bf16 = params["img_w"].T.astype(jnp.bfloat16)                  # (2048, 768)

    # ---- image rows (positions 1..7): Pallas kernel over flattened batch*region axis.
    total = B * N_IMG
    m_blk = total if total <= M_BLOCK_TARGET else M_BLOCK_TARGET     # full dim for tiny B
    grid = (pl.cdiv(total, m_blk),)

    imgs_flat = batch_input_imgs.reshape(total, FEAT).astype(f32)    # leading-dim merge: free
    base7 = bias[None, :] + pos[1:1 + N_IMG] + typ[0][None, :]       # (7, 768)
    offsets = jnp.tile(base7, (m_blk // N_IMG, 1))                   # (m_blk, 768), period 7
    tdelta = (typ[1] - typ[0]).reshape(1, HID)                       # (1, 768)
    sel = token_type_ids[:, 1:1 + N_IMG].reshape(total, 1).astype(f32)  # (B*7, 1)
    gamma_row = gamma.reshape(1, HID)
    beta_row = beta.reshape(1, HID)

    cost = pl.CostEstimate(
        flops=2 * total * FEAT * HID,
        transcendentals=0,
        bytes_accessed=(total * FEAT * 4 + FEAT * HID * 2
                        + m_blk * HID * 4 + total * HID * 4))

    img_ln = pl.pallas_call(
        _img_rows_kernel,
        out_shape=jax.ShapeDtypeStruct((total, HID), f32),
        grid_spec=pltpu.PrefetchScalarGridSpec(
            num_scalar_prefetch=0,
            grid=grid,
            in_specs=[
                pl.BlockSpec((m_blk, FEAT), lambda i: (i, 0)),   # image features (streamed)
                pl.BlockSpec((FEAT, HID), lambda i: (0, 0)),     # weight (invariant, not re-fetched)
                pl.BlockSpec((m_blk, HID), lambda i: (0, 0)),    # folded row offsets (invariant)
                pl.BlockSpec((1, HID), lambda i: (0, 0)),        # token-type delta
                pl.BlockSpec((m_blk, 1), lambda i: (i, 0)),      # token-type selector
                pl.BlockSpec((1, HID), lambda i: (0, 0)),        # LN gamma
                pl.BlockSpec((1, HID), lambda i: (0, 0)),        # LN beta
            ],
            out_specs=pl.BlockSpec((m_blk, HID), lambda i: (i, 0)),
        ),
        compiler_params=pltpu.CompilerParams(
            # One independent batch-tile per step -> megacore-shardable on v7x.
            dimension_semantics=("parallel",),
            # Above v5e's 16 MiB scoped default, comfortably under v7x's 64 MiB VMEM.
            vmem_limit_bytes=32 * 1024 * 1024,
        ),
        cost_estimate=cost,
    )(imgs_flat, w_bf16, offsets, tdelta, sel, gamma_row, beta_row)

    # ---- CLS / SEP rows (positions 0 and 8): no matmul, 2 rows per batch -> plain JAX.
    cls_pre = word[101][None, :] + pos[0][None, :] + typ[token_type_ids[:, 0]]
    sep_pre = word[102][None, :] + pos[SEQ - 1][None, :] + typ[token_type_ids[:, SEQ - 1]]
    edge = _layernorm(jnp.stack([cls_pre, sep_pre], axis=1), gamma, beta)    # (B, 2, 768)

    # TODO(synk): dropout is identity here (eval mode); training-mode dropout would
    # use pltpu.prng_seed + pltpu.prng_random_bits per tile inside the kernel.
    img3 = img_ln.reshape(B, N_IMG, HID)                                     # free reshape
    return jnp.concatenate([edge[:, :1], img3, edge[:, 1:]], axis=1)         # (B, 9, 768)


def _reference(batch_input_imgs, token_type_ids, params, *, bf16_matmul=False):
    """Pure-JAX reference mirroring the PyTorch forward (optionally with the same
    bf16-rounded matmul operands as the kernel, f32 accumulation)."""
    B = batch_input_imgs.shape[0]
    w_t = params["img_w"].T
    if bf16_matmul:
        img = jnp.dot(batch_input_imgs.astype(jnp.bfloat16).reshape(-1, FEAT),
                      w_t.astype(jnp.bfloat16),
                      preferred_element_type=jnp.float32).reshape(B, N_IMG, HID)
        img = img + params["img_b"]
    else:
        img = batch_input_imgs @ w_t + params["img_b"]                       # (B,7,768)
    cls = jnp.broadcast_to(params["word_emb"][101], (B, 1, HID))
    sep = jnp.broadcast_to(params["word_emb"][102], (B, 1, HID))
    tok = jnp.concatenate([cls, img, sep], axis=1)                           # (B,9,768)
    posb = jnp.broadcast_to(params["pos_emb"][:SEQ], (B, SEQ, HID))
    typg = params["type_emb"][token_type_ids]
    x = tok + posb + typg
    mean = x.mean(-1, keepdims=True)
    var = ((x - mean) ** 2).mean(-1, keepdims=True)
    xn = (x - mean) / jnp.sqrt(var + LN_EPS)
    return xn * params["ln_gamma"] + params["ln_beta"]


if __name__ == "__main__":
    key = jax.random.PRNGKey(0)
    ks = jax.random.split(key, 8)

    B = 2
    VOCAB = 128      # synthetic vocab (must cover ids 101, 102)
    MAX_POS = 16     # synthetic max position (>= 9)

    params = {
        "img_w":    0.02 * jax.random.normal(ks[0], (HID, FEAT), jnp.float32),
        "img_b":    0.02 * jax.random.normal(ks[1], (HID,), jnp.float32),
        "word_emb": 0.02 * jax.random.normal(ks[2], (VOCAB, HID), jnp.float32),
        "pos_emb":  0.02 * jax.random.normal(ks[3], (MAX_POS, HID), jnp.float32),
        "type_emb": 0.02 * jax.random.normal(ks[4], (2, HID), jnp.float32),
        "ln_gamma": jnp.ones((HID,), jnp.float32),
        "ln_beta":  jnp.zeros((HID,), jnp.float32),
    }

    batch_input_imgs = jax.random.normal(ks[5], (B, N_IMG, FEAT), jnp.float32)
    # Random {0,1} ids exercise the in-kernel token-type selection path.
    token_type_ids = jax.random.bernoulli(ks[6], 0.5, (B, SEQ)).astype(jnp.int32)

    fwd = jax.jit(image_embeddings_for_bert)
    out = jax.block_until_ready(fwd(batch_input_imgs, token_type_ids, params))
    assert out.shape == (B, SEQ, HID)

    # Tight check against a reference with the same bf16-rounded matmul operands.
    ref_bf16 = _reference(batch_input_imgs, token_type_ids, params, bf16_matmul=True)
    assert jnp.allclose(out, ref_bf16, atol=1e-3, rtol=1e-3), "mismatch vs bf16-matmul reference"

    # Loose check against the exact f32 module semantics (bf16 weight rounding is the
    # only delta; LayerNorm renormalizes most of it -- tolerance per review guidance).
    ref_f32 = _reference(batch_input_imgs, token_type_ids, params)
    assert jnp.allclose(out, ref_f32, atol=3e-2, rtol=0.0), "mismatch vs f32 reference"

    print("KERNEL_OK")
</pallas_src>

<mosaic_0001>
module attributes {stable_mosaic.version = 11 : i64} {
  func.func @_img_rows_kernel(%arg0: i32, %arg1: memref<14x2048xf32, #tpu.memory_space<vmem>>, %arg2: memref<2048x768xbf16, #tpu.memory_space<vmem>>, %arg3: memref<14x768xf32, #tpu.memory_space<vmem>>, %arg4: memref<1x768xf32, #tpu.memory_space<vmem>>, %arg5: memref<14x1xf32, #tpu.memory_space<vmem>>, %arg6: memref<1x768xf32, #tpu.memory_space<vmem>>, %arg7: memref<1x768xf32, #tpu.memory_space<vmem>>, %arg8: memref<14x768xf32, #tpu.memory_space<vmem>>) attributes {dimension_semantics = [#tpu.dimension_semantics<parallel>], iteration_bounds = array<i64: 1>, scalar_prefetch = 0 : i64, scratch_operands = 0 : i64, tpu.core_type = #tpu.core_type<tc>, window_params = [{transform_indices = @transform_0, window_bounds = array<i64: 14, 2048>}, {pipeline_mode = #tpu.pipeline_mode<synchronous>, transform_indices = @transform_1, window_bounds = array<i64: 2048, 768>}, {pipeline_mode = #tpu.pipeline_mode<synchronous>, transform_indices = @transform_2, window_bounds = array<i64: 14, 768>}, {pipeline_mode = #tpu.pipeline_mode<synchronous>, transform_indices = @transform_3, window_bounds = array<i64: 1, 768>}, {transform_indices = @transform_4, window_bounds = array<i64: 14, 1>}, {pipeline_mode = #tpu.pipeline_mode<synchronous>, transform_indices = @transform_5, window_bounds = array<i64: 1, 768>}, {pipeline_mode = #tpu.pipeline_mode<synchronous>, transform_indices = @transform_6, window_bounds = array<i64: 1, 768>}, {transform_indices = @transform_7, window_bounds = array<i64: 14, 768>}]} {
    %c0 = arith.constant 0 : index
    %c0_0 = arith.constant 0 : index
    %0 = vector.load %arg1[%c0, %c0_0] : memref<14x2048xf32, #tpu.memory_space<vmem>>, vector<14x2048xf32>
    %1 = arith.truncf %0 : vector<14x2048xf32> to vector<14x2048xbf16>
    %c0_1 = arith.constant 0 : index
    %c0_2 = arith.constant 0 : index
    %2 = vector.load %arg2[%c0_1, %c0_2] : memref<2048x768xbf16, #tpu.memory_space<vmem>>, vector<2048x768xbf16>
    %cst = arith.constant dense<0.000000e+00> : vector<14x768xf32>
    %3 = tpu.matmul %1, %2, %cst {dimension_numbers = #tpu.dot_dimension_numbers<[1], [0], [0], [1], [0, 0, 1, 1], [], []>} : vector<14x2048xbf16>, vector<2048x768xbf16>, vector<14x768xf32> -> vector<14x768xf32>
    %c0_3 = arith.constant 0 : index
    %c0_4 = arith.constant 0 : index
    %4 = vector.load %arg3[%c0_3, %c0_4] : memref<14x768xf32, #tpu.memory_space<vmem>>, vector<14x768xf32>
    %5 = arith.addf %3, %4 : vector<14x768xf32>
    %c0_5 = arith.constant 0 : index
    %c0_6 = arith.constant 0 : index
    %6 = vector.load %arg5[%c0_5, %c0_6] : memref<14x1xf32, #tpu.memory_space<vmem>>, vector<14x1xf32>
    %c0_7 = arith.constant 0 : index
    %c0_8 = arith.constant 0 : index
    %7 = vector.load %arg4[%c0_7, %c0_8] : memref<1x768xf32, #tpu.memory_space<vmem>>, vector<1x768xf32>
    %8 = vector.broadcast %6 : vector<14x1xf32> to vector<14x768xf32>
    %9 = vector.broadcast %7 : vector<1x768xf32> to vector<14x768xf32>
    %10 = arith.mulf %8, %9 : vector<14x768xf32>
    %11 = arith.addf %5, %10 : vector<14x768xf32>
    %cst_9 = arith.constant dense<0.000000e+00> : vector<14xf32>
    %12 = vector.multi_reduction <add>, %11, %cst_9 [1] : vector<14x768xf32> to vector<14xf32>
    %13 = vector.shape_cast %12 : vector<14xf32> to vector<14x1xf32>
    %cst_10 = arith.constant 7.680000e+02 : f32
    %14 = vector.broadcast %cst_10 : f32 to vector<14x1xf32>
    %15 = arith.divf %13, %14 : vector<14x1xf32>
    %16 = vector.broadcast %15 : vector<14x1xf32> to vector<14x768xf32>
    %17 = arith.subf %11, %16 : vector<14x768xf32>
    %18 = arith.mulf %17, %17 : vector<14x768xf32>
    %cst_11 = arith.constant dense<0.000000e+00> : vector<14xf32>
    %19 = vector.multi_reduction <add>, %18, %cst_11 [1] : vector<14x768xf32> to vector<14xf32>
    %20 = vector.shape_cast %19 : vector<14xf32> to vector<14x1xf32>
    %cst_12 = arith.constant 7.680000e+02 : f32
    %21 = vector.broadcast %cst_12 : f32 to vector<14x1xf32>
    %22 = arith.divf %20, %21 : vector<14x1xf32>
    %cst_13 = arith.constant 9.99999996E-13 : f32
    %23 = vector.broadcast %cst_13 : f32 to vector<14x1xf32>
    %24 = arith.addf %22, %23 : vector<14x1xf32>
    %25 = math.rsqrt %24 : vector<14x1xf32>
    %26 = vector.broadcast %25 : vector<14x1xf32> to vector<14x768xf32>
    %27 = arith.mulf %17, %26 : vector<14x768xf32>
    %c0_14 = arith.constant 0 : index
    %c0_15 = arith.constant 0 : index
    %28 = vector.load %arg6[%c0_14, %c0_15] : memref<1x768xf32, #tpu.memory_space<vmem>>, vector<1x768xf32>
    %29 = vector.broadcast %28 : vector<1x768xf32> to vector<14x768xf32>
    %30 = arith.mulf %27, %29 : vector<14x768xf32>
    %c0_16 = arith.constant 0 : index
    %c0_17 = arith.constant 0 : index
    %31 = vector.load %arg7[%c0_16, %c0_17] : memref<1x768xf32, #tpu.memory_space<vmem>>, vector<1x768xf32>
    %32 = vector.broadcast %31 : vector<1x768xf32> to vector<14x768xf32>
    %33 = arith.addf %30, %32 : vector<14x768xf32>
    %c0_18 = arith.constant 0 : index
    %c0_19 = arith.constant 0 : index
    %34 = vector.load %arg8[%c0_18, %c0_19] : memref<14x768xf32, #tpu.memory_space<vmem>>, vector<14x768xf32>
    tpu.vector_store %arg8[%c0_18, %c0_19], %33 {strides = array<i32>} : memref<14x768xf32, #tpu.memory_space<vmem>>, vector<14x768xf32>,
    return
  }
  func.func @transform_0(%arg0: i32) -> (i32, i32) {
    %c0_i32 = arith.constant 0 : i32
    %c0_i32_0 = arith.constant 0 : i32
    return %arg0, %c0_i32 : i32, i32
  }
  func.func @transform_1(%arg0: i32) -> (i32, i32) {
    %c0_i32 = arith.constant 0 : i32
    %c0_i32_0 = arith.constant 0 : i32
    %c0_i32_1 = arith.constant 0 : i32
    return %c0_i32, %c0_i32_0 : i32, i32
  }
  func.func @transform_2(%arg0: i32) -> (i32, i32) {
    %c0_i32 = arith.constant 0 : i32
    %c0_i32_0 = arith.constant 0 : i32
    %c0_i32_1 = arith.constant 0 : i32
    return %c0_i32, %c0_i32_0 : i32, i32
  }
  func.func @transform_3(%arg0: i32) -> (i32, i32) {
    %c0_i32 = arith.constant 0 : i32
    %c0_i32_0 = arith.constant 0 : i32
    %c0_i32_1 = arith.constant 0 : i32
    return %c0_i32, %c0_i32_0 : i32, i32
  }
  func.func @transform_4(%arg0: i32) -> (i32, i32) {
    %c0_i32 = arith.constant 0 : i32
    %c0_i32_0 = arith.constant 0 : i32
    return %arg0, %c0_i32 : i32, i32
  }
  func.func @transform_5(%arg0: i32) -> (i32, i32) {
    %c0_i32 = arith.constant 0 : i32
    %c0_i32_0 = arith.constant 0 : i32
    %c0_i32_1 = arith.constant 0 : i32
    return %c0_i32, %c0_i32_0 : i32, i32
  }
  func.func @transform_6(%arg0: i32) -> (i32, i32) {
    %c0_i32 = arith.constant 0 : i32
    %c0_i32_0 = arith.constant 0 : i32
    %c0_i32_1 = arith.constant 0 : i32
    return %c0_i32, %c0_i32_0 : i32, i32
  }
  func.func @transform_7(%arg0: i32) -> (i32, i32) {
    %c0_i32 = arith.constant 0 : i32
    %c0_i32_0 = arith.constant 0 : i32
    return %arg0, %c0_i32 : i32, i32
  }
}

</mosaic_0001>

<llo_original>
// kernel: tile.9
$region0: #{tile.9}
  %s0 = inlined_call_operand.vmem [shape: f32[2,7,768], index: 0, kind: input, shape index: {}]
  %s1 = inlined_call_operand.vmem [shape: f32[14,768], index: 1, kind: output, shape index: {}]
  %v2 = vld [vmem:[%s0] sm:$0x7f]
  %3 = vst [vmem:[%s1] sm:$0x7f] %v2
  %s4 = scalar_lea.vmem %s0, 8
  %v5 = vld [vmem:[%s4] sm:$0x7f]
  %s6 = scalar_lea.vmem %s1, 8
  %7 = vst [vmem:[%s6] sm:$0x7f] %v5
  %s8 = scalar_lea.vmem %s0, 16
  %v9 = vld [vmem:[%s8] sm:$0x7f]
  %s10 = scalar_lea.vmem %s1, 16
  %11 = vst [vmem:[%s10] sm:$0x7f] %v9
  %s12 = scalar_lea.vmem %s0, 24
  %v13 = vld [vmem:[%s12] sm:$0x7f]
  %s14 = scalar_lea.vmem %s1, 24
  %15 = vst [vmem:[%s14] sm:$0x7f] %v13
  %s16 = scalar_lea.vmem %s0, 32
  %v17 = vld [vmem:[%s16] sm:$0x7f]
  %s18 = scalar_lea.vmem %s1, 32
  %19 = vst [vmem:[%s18] sm:$0x7f] %v17
  %s20 = scalar_lea.vmem %s0, 40
  %v21 = vld [vmem:[%s20] sm:$0x7f]
  %s22 = scalar_lea.vmem %s1, 40
  %23 = vst [vmem:[%s22] sm:$0x7f] %v21
  %s24 = scalar_lea.vmem %s0, 48
  %v25 = vld [vmem:[%s24] sm:$0x7f]
  %s26 = scalar_lea.vmem %s1, 7
  %27 = vst [vmem:[%s26] ss:$41 sm:$0x3] %v25
  %s28 = scalar_lea.vmem %s1, 47
  %29 = vst [vmem:[%s28] sm:$0x7c] %v25
  %s30 = scalar_lea.vmem %s0, 56
  %v31 = vld [vmem:[%s30] sm:$0x7f]
  %s32 = scalar_lea.vmem %s1, 15
  %33 = vst [vmem:[%s32] ss:$41 sm:$0x3] %v31
  %s34 = scalar_lea.vmem %s1, 55
  %35 = vst [vmem:[%s34] sm:$0x7c] %v31
  %s36 = scalar_lea.vmem %s0, 64
  %v37 = vld [vmem:[%s36] sm:$0x7f]
  %s38 = scalar_lea.vmem %s1, 23
  %39 = vst [vmem:[%s38] ss:$41 sm:$0x3] %v37
  %s40 = scalar_lea.vmem %s1, 63
  %41 = vst [vmem:[%s40] sm:$0x7c] %v37
  %s42 = scalar_lea.vmem %s0, 72
  %v43 = vld [vmem:[%s42] sm:$0x7f]
  %s44 = scalar_lea.vmem %s1, 31
  %45 = vst [vmem:[%s44] ss:$41 sm:$0x3] %v43
  %s46 = scalar_lea.vmem %s1, 71
  %47 = vst [vmem:[%s46] sm:$0x7c] %v43
  %s48 = scalar_lea.vmem %s0, 80
  %v49 = vld [vmem:[%s48] sm:$0x7f]
  %s50 = scalar_lea.vmem %s1, 39
  %51 = vst [vmem:[%s50] ss:$41 sm:$0x3] %v49
  %s52 = scalar_lea.vmem %s1, 79
  %53 = vst [vmem:[%s52] sm:$0x7c] %v49
  %s54 = scalar_lea.vmem %s0, 88
  %v55 = vld [vmem:[%s54] sm:$0x7f]
  %s56 = scalar_lea.vmem %s1, 47
  %57 = vst [vmem:[%s56] ss:$41 sm:$0x3] %v55
  %s58 = scalar_lea.vmem %s1, 87
  %59 = vst [vmem:[%s58] sm:$0x7c] %v55

// kernel: image_embeddings_for_bert.1
$region0: #{image_embeddings_for_bert.1}
  #allocation0 [shape = 'u32[]', space=smem, size = 0x4, offset = 0x4, fixed_abs, tag = 'smem constant byte address 0x4 - core index']
  #allocation1 [shape = 'u32[144,128]{1,0:T(1,128)}', space=vmem, size = 0x12000, scoped, tag = 'internal scratch']
  %s0 = inlined_call_operand.vmem [shape: f32[14,2048], index: 0, kind: input, shape index: {}]
  %s1 = inlined_call_operand.vmem [shape: bf16[2048,768], index: 1, kind: input, shape index: {}]
  %s2 = inlined_call_operand.vmem [shape: f32[14,768], index: 2, kind: input, shape index: {}]
  %s3 = inlined_call_operand.vmem [shape: f32[1,768], index: 3, kind: input, shape index: {}]
  %s4 = inlined_call_operand.vmem [shape: f32[14,1], index: 4, kind: input, shape index: {}]
  %s5 = inlined_call_operand.vmem [shape: f32[1,768], index: 5, kind: input, shape index: {}]
  %s6 = inlined_call_operand.vmem [shape: f32[1,768], index: 6, kind: input, shape index: {}]
  %s7 = inlined_call_operand.vmem [shape: f32[14,768], index: 7, kind: output, shape index: {}]
  %s8 = sld [smem:[#allocation0]]
  $region38: #{image_embeddings_for_bert.1} parent=0
    _
  %s10 = ssub.s32 1, %s8
  %s11 = scalar_select 0, %s10, %s8
  // Predicated region
  $region2: #{image_embeddings_for_bert.1} parent=0 // pred_check
    _
  $region3: #{image_embeddings_for_bert.1} parent=0 // pred_check_branch
    %13 = sbr.rel (0) target = $region5
  $region4: #{image_embeddings_for_bert.1} parent=0 // pred_region
    _
  $region5: #{image_embeddings_for_bert.1} parent=0 // pred_fallthru
    _
  // Predicated region
  $region6: #{image_embeddings_for_bert.1} parent=0 // pred_check
    _
  $region7: #{image_embeddings_for_bert.1} parent=0 // pred_check_branch
    %15 = sbr.rel (0) target = $region9
  $region8: #{image_embeddings_for_bert.1} parent=0 // pred_region
    _
  $region9: #{image_embeddings_for_bert.1} parent=0 // pred_fallthru
    _
  // Predicated region
  $region10: #{image_embeddings_for_bert.1} parent=0 // pred_check
    _
  $region11: #{image_embeddings_for_bert.1} parent=0 // pred_check_branch
    %17 = sbr.rel (0) target = $region13
  $region12: #{image_embeddings_for_bert.1} parent=0 // pred_region
    _
  $region13: #{image_embeddings_for_bert.1} parent=0 // pred_fallthru
    _
  // Predicated region
  $region14: #{image_embeddings_for_bert.1} parent=0 // pred_check
    _
  $region15: #{image_embeddings_for_bert.1} parent=0 // pred_check_branch
    %19 = sbr.rel (0) target = $region17
  $region16: #{image_embeddings_for_bert.1} parent=0 // pred_region
    _
  $region17: #{image_embeddings_for_bert.1} parent=0 // pred_fallthru
    _
  // Predicated region
  $region18: #{image_embeddings_for_bert.1} parent=0 // pred_check
    _
  $region19: #{image_embeddings_for_bert.1} parent=0 // pred_check_branch
    %21 = sbr.rel (0) target = $region21
  $region20: #{image_embeddings_for_bert.1} parent=0 // pred_region
    _
  $region21: #{image_embeddings_for_bert.1} parent=0 // pred_fallthru
    _
  // Predicated region
  $region22: #{image_embeddings_for_bert.1} parent=0 // pred_check
    _
  $region23: #{image_embeddings_for_bert.1} parent=0 // pred_check_branch
    %23 = sbr.rel (0) target = $region25
  $region24: #{image_embeddings_for_bert.1} parent=0 // pred_region
    _
  $region25: #{image_embeddings_for_bert.1} parent=0 // pred_fallthru
    _
  // Predicated region
  $region26: #{image_embeddings_for_bert.1} parent=0 // pred_check
    _
  $region27: #{image_embeddings_for_bert.1} parent=0 // pred_check_branch
    %25 = sbr.rel (0) target = $region29
  $region28: #{image_embeddings_for_bert.1} parent=0 // pred_region
    _
  $region29: #{image_embeddings_for_bert.1} parent=0 // pred_fallthru
    _
  %v26 = vld [vmem:[%s0] sm:$0xff]
  %v27 = vld [vmem:[%s0 + $0x8] sm:$0xff]
  %v28 = vld [vmem:[%s0 + $0x10] sm:$0xff]
  %v29 = vld [vmem:[%s0 + $0x18] sm:$0xff]
  %v30 = vld [vmem:[%s0 + $0x20] sm:$0xff]
  %v31 = vld [vmem:[%s0 + $0x28] sm:$0xff]
  %v32 = vld [vmem:[%s0 + $0x30] sm:$0xff]
  %v33 = vld [vmem:[%s0 + $0x38] sm:$0xff]
  %v34 = vld [vmem:[%s0 + $0x40] sm:$0xff]
  %v35 = vld [vmem:[%s0 + $0x48] sm:$0xff]
  %v36 = vld [vmem:[%s0 + $0x50] sm:$0xff]
  %v37 = vld [vmem:[%s0 + $0x58] sm:$0xff]
  %v38 = vld [vmem:[%s0 + $0x60] sm:$0xff]
  %v39 = vld [vmem:[%s0 + $0x68] sm:$0xff]
  %v40 = vld [vmem:[%s0 + $0x70] sm:$0xff]
  %v41 = vld [vmem:[%s0 + $0x78] sm:$0xff]
  %v42 = vld [vmem:[%s0 + $0x80] sm:$0x3f]
  %v43 = vld [vmem:[%s0 + $0x88] sm:$0x3f]
  %v44 = vld [vmem:[%s0 + $0x90] sm:$0x3f]
  %v45 = vld [vmem:[%s0 + $0x98] sm:$0x3f]
  %v46 = vld [vmem:[%s0 + $0xa0] sm:$0x3f]
  %v47 = vld [vmem:[%s0 + $0xa8] sm:$0x3f]
  %v48 = vld [vmem:[%s0 + $0xb0] sm:$0x3f]
  %v49 = vld [vmem:[%s0 + $0xb8] sm:$0x3f]
  %v50 = vld [vmem:[%s0 + $0xc0] sm:$0x3f]
  %v51 = vld [vmem:[%s0 + $0xc8] sm:$0x3f]
  %v52 = vld [vmem:[%s0 + $0xd0] sm:$0x3f]
  %v53 = vld [vmem:[%s0 + $0xd8] sm:$0x3f]
  %v54 = vld [vmem:[%s0 + $0xe0] sm:$0x3f]
  %v55 = vld [vmem:[%s0 + $0xe8] sm:$0x3f]
  %v56 = vld [vmem:[%s0 + $0xf0] sm:$0x3f]
  %v57 = vld [vmem:[%s0 + $0xf8] sm:$0x3f]
  %v58 = vpack.c.bf16 %v42, %v26
  %v59 = vpack.c.bf16 %v43, %v27
  %v60 = vpack.c.bf16 %v44, %v28
  %v61 = vpack.c.bf16 %v45, %v29
  %v62 = vpack.c.bf16 %v46, %v30
  %v63 = vpack.c.bf16 %v47, %v31
  %v64 = vpack.c.bf16 %v48, %v32
  %v65 = vpack.c.bf16 %v49, %v33
  %v66 = vpack.c.bf16 %v50, %v34
  %v67 = vpack.c.bf16 %v51, %v35
  %v68 = vpack.c.bf16 %v52, %v36
  %v69 = vpack.c.bf16 %v53, %v37
  %v70 = vpack.c.bf16 %v54, %v38
  %v71 = vpack.c.bf16 %v55, %v39
  %v72 = vpack.c.bf16 %v56, %v40
  %v73 = vpack.c.bf16 %v57, %v41
  %v74 = vld [vmem:[%s1] sm:$0xff]
  %v75 = vld [vmem:[%s1 + $0x8] sm:$0xff]
  %v76 = vld [vmem:[%s1 + $0x10] sm:$0xff]
  %v77 = vld [vmem:[%s1 + $0x18] sm:$0xff]
  %v78 = vld [vmem:[%s1 + $0x20] sm:$0xff]
  %v79 = vld [vmem:[%s1 + $0x28] sm:$0xff]
  %v80 = vld [vmem:[%s1 + $0x30] sm:$0xff]
  %v81 = vld [vmem:[%s1 + $0x38] sm:$0xff]
  %v82 = vld [vmem:[%s1 + $0x40] sm:$0xff]
  %v83 = vld [vmem:[%s1 + $0x48] sm:$0xff]
  %v84 = vld [vmem:[%s1 + $0x50] sm:$0xff]
  %v85 = vld [vmem:[%s1 + $0x58] sm:$0xff]
  %v86 = vld [vmem:[%s1 + $0x60] sm:$0xff]
  %v87 = vld [vmem:[%s1 + $0x68] sm:$0xff]
  %v88 = vld [vmem:[%s1 + $0x70] sm:$0xff]
  %v89 = vld [vmem:[%s1 + $0x78] sm:$0xff]
  %v90 = vld [vmem:[%s1 + $0x80] sm:$0xff]
  %v91 = vld [vmem:[%s1 + $0x88] sm:$0xff]
  %v92 = vld [vmem:[%s1 + $0x90] sm:$0xff]
  %v93 = vld [vmem:[%s1 + $0x98] sm:$0xff]
  %v94 = vld [vmem:[%s1 + $0xa0] sm:$0xff]
  %v95 = vld [vmem:[%s1 + $0xa8] sm:$0xff]
  %v96 = vld [vmem:[%s1 + $0xb0] sm:$0xff]
  %v97 = vld [vmem:[%s1 + $0xb8] sm:$0xff]
  %v98 = vld [vmem:[%s1 + $0xc0] sm:$0xff]
  %v99 = vld [vmem:[%s1 + $0xc8] sm:$0xff]
  %v100 = vld [vmem:[%s1 + $0xd0] sm:$0xff]
  %v101 = vld [vmem:[%s1 + $0xd8] sm:$0xff]
  %v102 = vld [vmem:[%s1 + $0xe0] sm:$0xff]
  %v103 = vld [vmem:[%s1 + $0xe8] sm:$0xff]
  %v104 = vld [vmem:[%s1 + $0xf0] sm:$0xff]
  %v105 = vld [vmem:[%s1 + $0xf8] sm:$0xff]
  %v106 = vld [vmem:[%s1 + $0x100] sm:$0xff]
  %v107 = vld [vmem:[%s1 + $0x108] sm:$0xff]
  %v108 = vld [vmem:[%s1 + $0x110] sm:$0xff]
  %v109 = vld [vmem:[%s1 + $0x118] sm:$0xff]
  %v110 = vld [vmem:[%s1 + $0x120] sm:$0xff]
  %v111 = vld [vmem:[%s1 + $0x128] sm:$0xff]
  %v112 = vld [vmem:[%s1 + $0x130] sm:$0xff]
  %v113 = vld [vmem:[%s1 + $0x138] sm:$0xff]
  %v114 = vld [vmem:[%s1 + $0x140] sm:$0xff]
  %v115 = vld [vmem:[%s1 + $0x148] sm:$0xff]
  %v116 = vld [vmem:[%s1 + $0x150] sm:$0xff]
  %v117 = vld [vmem:[%s1 + $0x158] sm:$0xff]
  %v118 = vld [vmem:[%s1 + $0x160] sm:$0xff]
  %v119 = vld [vmem:[%s1 + $0x168] sm:$0xff]
  %v120 = vld [vmem:[%s1 + $0x170] sm:$0xff]
  %v121 = vld [vmem:[%s1 + $0x178] sm:$0xff]
  %v122 = vld [vmem:[%s1 + $0x180] sm:$0xff]
  %v123 = vld [vmem:[%s1 + $0x188] sm:$0xff]
  %v124 = vld [vmem:[%s1 + $0x190] sm:$0xff]
  %v125 = vld [vmem:[%s1 + $0x198] sm:$0xff]
  %v126 = vld [vmem:[%s1 + $0x1a0] sm:$0xff]
  %v127 = vld [vmem:[%s1 + $0x1a8] sm:$0xff]
  %v128 = vld [vmem:[%s1 + $0x1b0] sm:$0xff]
  %v129 = vld [vmem:[%s1 + $0x1b8] sm:$0xff]
  %v130 = vld [vmem:[%s1 + $0x1c0] sm:$0xff]
  %v131 = vld [vmem:[%s1 + $0x1c8] sm:$0xff]
  %v132 = vld [vmem:[%s1 + $0x1d0] sm:$0xff]
  %v133 = vld [vmem:[%s1 + $0x1d8] sm:$0xff]
  %v134 = vld [vmem:[%s1 + $0x1e0] sm:$0xff]
  %v135 = vld [vmem:[%s1 + $0x1e8] sm:$0xff]
  %v136 = vld [vmem:[%s1 + $0x1f0] sm:$0xff]
  %v137 = vld [vmem:[%s1 + $0x1f8] sm:$0xff]
  %v138 = vld [vmem:[%s1 + $0x200] sm:$0xff]
  %v139 = vld [vmem:[%s1 + $0x208] sm:$0xff]
  %v140 = vld [vmem:[%s1 + $0x210] sm:$0xff]
  %v141 = vld [vmem:[%s1 + $0x218] sm:$0xff]
  %v142 = vld [vmem:[%s1 + $0x220] sm:$0xff]
  %v143 = vld [vmem:[%s1 + $0x228] sm:$0xff]
  %v144 = vld [vmem:[%s1 + $0x230] sm:$0xff]
  %v145 = vld [vmem:[%s1 + $0x238] sm:$0xff]
  %v146 = vld [vmem:[%s1 + $0x240] sm:$0xff]
  %v147 = vld [vmem:[%s1 + $0x248] sm:$0xff]
  %v148 = vld [vmem:[%s1 + $0x250] sm:$0xff]
  %v149 = vld [vmem:[%s1 + $0x258] sm:$0xff]
  %v150 = vld [vmem:[%s1 + $0x260] sm:$0xff]
  %v151 = vld [vmem:[%s1 + $0x268] sm:$0xff]
  %v152 = vld [vmem:[%s1 + $0x270] sm:$0xff]
  %v153 = vld [vmem:[%s1 + $0x278] sm:$0xff]
  %v154 = vld [vmem:[%s1 + $0x280] sm:$0xff]
  %v155 = vld [vmem:[%s1 + $0x288] sm:$0xff]
  %v156 = vld [vmem:[%s1 + $0x290] sm:$0xff]
  %v157 = vld [vmem:[%s1 + $0x298] sm:$0xff]
  %v158 = vld [vmem:[%s1 + $0x2a0] sm:$0xff]
  %v159 = vld [vmem:[%s1 + $0x2a8] sm:$0xff]
  %v160 = vld [vmem:[%s1 + $0x2b0] sm:$0xff]
  %v161 = vld [vmem:[%s1 + $0x2b8] sm:$0xff]
  %v162 = vld [vmem:[%s1 + $0x2c0] sm:$0xff]
  %v163 = vld [vmem:[%s1 + $0x2c8] sm:$0xff]
  %v164 = vld [vmem:[%s1 + $0x2d0] sm:$0xff]
  %v165 = vld [vmem:[%s1 + $0x2d8] sm:$0xff]
  %v166 = vld [vmem:[%s1 + $0x2e0] sm:$0xff]
  %v167 = vld [vmem:[%s1 + $0x2e8] sm:$0xff]
  %v168 = vld [vmem:[%s1 + $0x2f0] sm:$0xff]
  %v169 = vld [vmem:[%s1 + $0x2f8] sm:$0xff]
  %v170 = vld [vmem:[%s1 + $0x300] sm:$0xff]
  %v171 = vld [vmem:[%s1 + $0x308] sm:$0xff]
  %v172 = vld [vmem:[%s1 + $0x310] sm:$0xff]
  %v173 = vld [vmem:[%s1 + $0x318] sm:$0xff]
  %v174 = vld [vmem:[%s1 + $0x320] sm:$0xff]
  %v175 = vld [vmem:[%s1 + $0x328] sm:$0xff]
  %v176 = vld [vmem:[%s1 + $0x330] sm:$0xff]
  %v177 = vld [vmem:[%s1 + $0x338] sm:$0xff]
  %v178 = vld [vmem:[%s1 + $0x340] sm:$0xff]
  %v179 = vld [vmem:[%s1 + $0x348] sm:$0xff]
  %v180 = vld [vmem:[%s1 + $0x350] sm:$0xff]
  %v181 = vld [vmem:[%s1 + $0x358] sm:$0xff]
  %v182 = vld [vmem:[%s1 + $0x360] sm:$0xff]
  %v183 = vld [vmem:[%s1 + $0x368] sm:$0xff]
  %v184 = vld [vmem:[%s1 + $0x370] sm:$0xff]
  %v185 = vld [vmem:[%s1 + $0x378] sm:$0xff]
  %v186 = vld [vmem:[%s1 + $0x380] sm:$0xff]
  %v187 = vld [vmem:[%s1 + $0x388] sm:$0xff]
  %v188 = vld [vmem:[%s1 + $0x390] sm:$0xff]
  %v189 = vld [vmem:[%s1 + $0x398] sm:$0xff]
  %v190 = vld [vmem:[%s1 + $0x3a0] sm:$0xff]
  %v191 = vld [vmem:[%s1 + $0x3a8] sm:$0xff]
  %v192 = vld [vmem:[%s1 + $0x3b0] sm:$0xff]
  %v193 = vld [vmem:[%s1 + $0x3b8] sm:$0xff]
  %v194 = vld [vmem:[%s1 + $0x3c0] sm:$0xff]
  %v195 = vld [vmem:[%s1 + $0x3c8] sm:$0xff]
  %v196 = vld [vmem:[%s1 + $0x3d0] sm:$0xff]
  %v197 = vld [vmem:[%s1 + $0x3d8] sm:$0xff]
  %v198 = vld [vmem:[%s1 + $0x3e0] sm:$0xff]
  %v199 = vld [vmem:[%s1 + $0x3e8] sm:$0xff]
  %v200 = vld [vmem:[%s1 + $0x3f0] sm:$0xff]
  %v201 = vld [vmem:[%s1 + $0x3f8] sm:$0xff]
  %v202 = vld [vmem:[%s1 + $0x400] sm:$0xff]
  %v203 = vld [vmem:[%s1 + $0x408] sm:$0xff]
  %v204 = vld [vmem:[%s1 + $0x410] sm:$0xff]
  %v205 = vld [vmem:[%s1 + $0x418] sm:$0xff]
  %v206 = vld [vmem:[%s1 + $0x420] sm:$0xff]
  %v207 = vld [vmem:[%s1 + $0x428] sm:$0xff]
  %v208 = vld [vmem:[%s1 + $0x430] sm:$0xff]
  %v209 = vld [vmem:[%s1 + $0x438] sm:$0xff]
  %v210 = vld [vmem:[%s1 + $0x440] sm:$0xff]
  %v211 = vld [vmem:[%s1 + $0x448] sm:$0xff]
  %v212 = vld [vmem:[%s1 + $0x450] sm:$0xff]
  %v213 = vld [vmem:[%s1 + $0x458] sm:$0xff]
  %v214 = vld [vmem:[%s1 + $0x460] sm:$0xff]
  %v215 = vld [vmem:[%s1 + $0x468] sm:$0xff]
  %v216 = vld [vmem:[%s1 + $0x470] sm:$0xff]
  %v217 = vld [vmem:[%s1 + $0x478] sm:$0xff]
  %v218 = vld [vmem:[%s1 + $0x480] sm:$0xff]
  %v219 = vld [vmem:[%s1 + $0x488] sm:$0xff]
  %v220 = vld [vmem:[%s1 + $0x490] sm:$0xff]
  %v221 = vld [vmem:[%s1 + $0x498] sm:$0xff]
  %v222 = vld [vmem:[%s1 + $0x4a0] sm:$0xff]
  %v223 = vld [vmem:[%s1 + $0x4a8] sm:$0xff]
  %v224 = vld [vmem:[%s1 + $0x4b0] sm:$0xff]
  %v225 = vld [vmem:[%s1 + $0x4b8] sm:$0xff]
  %v226 = vld [vmem:[%s1 + $0x4c0] sm:$0xff]
  %v227 = vld [vmem:[%s1 + $0x4c8] sm:$0xff]
  %v228 = vld [vmem:[%s1 + $0x4d0] sm:$0xff]
  %v229 = vld [vmem:[%s1 + $0x4d8] sm:$0xff]
  %v230 = vld [vmem:[%s1 + $0x4e0] sm:$0xff]
  %v231 = vld [vmem:[%s1 + $0x4e8] sm:$0xff]
  %v232 = vld [vmem:[%s1 + $0x4f0] sm:$0xff]
  %v233 = vld [vmem:[%s1 + $0x4f8] sm:$0xff]
  %v234 = vld [vmem:[%s1 + $0x500] sm:$0xff]
  %v235 = vld [vmem:[%s1 + $0x508] sm:$0xff]
  %v236 = vld [vmem:[%s1 + $0x510] sm:$0xff]
  %v237 = vld [vmem:[%s1 + $0x518] sm:$0xff]
  %v238 = vld [vmem:[%s1 + $0x520] sm:$0xff]
  %v239 = vld [vmem:[%s1 + $0x528] sm:$0xff]
  %v240 = vld [vmem:[%s1 + $0x530] sm:$0xff]
  %v241 = vld [vmem:[%s1 + $0x538] sm:$0xff]
  %v242 = vld [vmem:[%s1 + $0x540] sm:$0xff]
  %v243 = vld [vmem:[%s1 + $0x548] sm:$0xff]
  %v244 = vld [vmem:[%s1 + $0x550] sm:$0xff]
  %v245 = vld [vmem:[%s1 + $0x558] sm:$0xff]
  %v246 = vld [vmem:[%s1 + $0x560] sm:$0xff]
  %v247 = vld [vmem:[%s1 + $0x568] sm:$0xff]
  %v248 = vld [vmem:[%s1 + $0x570] sm:$0xff]
  %v249 = vld [vmem:[%s1 + $0x578] sm:$0xff]
  %v250 = vld [vmem:[%s1 + $0x580] sm:$0xff]
  %v251 = vld [vmem:[%s1 + $0x588] sm:$0xff]
  %v252 = vld [vmem:[%s1 + $0x590] sm:$0xff]
  %v253 = vld [vmem:[%s1 + $0x598] sm:$0xff]
  %v254 = vld [vmem:[%s1 + $0x5a0] sm:$0xff]
  %v255 = vld [vmem:[%s1 + $0x5a8] sm:$0xff]
  %v256 = vld [vmem:[%s1 + $0x5b0] sm:$0xff]
  %v257 = vld [vmem:[%s1 + $0x5b8] sm:$0xff]
  %v258 = vld [vmem:[%s1 + $0x5c0] sm:$0xff]
  %v259 = vld [vmem:[%s1 + $0x5c8] sm:$0xff]
  %v260 = vld [vmem:[%s1 + $0x5d0] sm:$0xff]
  %v261 = vld [vmem:[%s1 + $0x5d8] sm:$0xff]
  %v262 = vld [vmem:[%s1 + $0x5e0] sm:$0xff]
  %v263 = vld [vmem:[%s1 + $0x5e8] sm:$0xff]
  %v264 = vld [vmem:[%s1 + $0x5f0] sm:$0xff]
  %v265 = vld [vmem:[%s1 + $0x5f8] sm:$0xff]
  %v266 = vld [vmem:[%s1 + $0x600] sm:$0xff]
  %v267 = vld [vmem:[%s1 + $0x608] sm:$0xff]
  %v268 = vld [vmem:[%s1 + $0x610] sm:$0xff]
  %v269 = vld [vmem:[%s1 + $0x618] sm:$0xff]
  %v270 = vld [vmem:[%s1 + $0x620] sm:$0xff]
  %v271 = vld [vmem:[%s1 + $0x628] sm:$0xff]
  %v272 = vld [vmem:[%s1 + $0x630] sm:$0xff]
  %v273 = vld [vmem:[%s1 + $0x638] sm:$0xff]
  %v274 = vld [vmem:[%s1 + $0x640] sm:$0xff]
  %v275 = vld [vmem:[%s1 + $0x648] sm:$0xff]
  %v276 = vld [vmem:[%s1 + $0x650] sm:$0xff]
  %v277 = vld [vmem:[%s1 + $0x658] sm:$0xff]
  %v278 = vld [vmem:[%s1 + $0x660] sm:$0xff]
  %v279 = vld [vmem:[%s1 + $0x668] sm:$0xff]
  %v280 = vld [vmem:[%s1 + $0x670] sm:$0xff]
  %v281 = vld [vmem:[%s1 + $0x678] sm:$0xff]
  %v282 = vld [vmem:[%s1 + $0x680] sm:$0xff]
  %v283 = vld [vmem:[%s1 + $0x688] sm:$0xff]
  %v284 = vld [vmem:[%s1 + $0x690] sm:$0xff]
  %v285 = vld [vmem:[%s1 + $0x698] sm:$0xff]
  %v286 = vld [vmem:[%s1 + $0x6a0] sm:$0xff]
  %v287 = vld [vmem:[%s1 + $0x6a8] sm:$0xff]
  %v288 = vld [vmem:[%s1 + $0x6b0] sm:$0xff]
  %v289 = vld [vmem:[%s1 + $0x6b8] sm:$0xff]
  %v290 = vld [vmem:[%s1 + $0x6c0] sm:$0xff]
  %v291 = vld [vmem:[%s1 + $0x6c8] sm:$0xff]
  %v292 = vld [vmem:[%s1 + $0x6d0] sm:$0xff]
  %v293 = vld [vmem:[%s1 + $0x6d8] sm:$0xff]
  %v294 = vld [vmem:[%s1 + $0x6e0] sm:$0xff]
  %v295 = vld [vmem:[%s1 + $0x6e8] sm:$0xff]
  %v296 = vld [vmem:[%s1 + $0x6f0] sm:$0xff]
  %v297 = vld [vmem:[%s1 + $0x6f8] sm:$0xff]
  %v298 = vld [vmem:[%s1 + $0x700] sm:$0xff]
  %v299 = vld [vmem:[%s1 + $0x708] sm:$0xff]
  %v300 = vld [vmem:[%s1 + $0x710] sm:$0xff]
  %v301 = vld [vmem:[%s1 + $0x718] sm:$0xff]
  %v302 = vld [vmem:[%s1 + $0x720] sm:$0xff]
  %v303 = vld [vmem:[%s1 + $0x728] sm:$0xff]
  %v304 = vld [vmem:[%s1 + $0x730] sm:$0xff]
  %v305 = vld [vmem:[%s1 + $0x738] sm:$0xff]
  %v306 = vld [vmem:[%s1 + $0x740] sm:$0xff]
  %v307 = vld [vmem:[%s1 + $0x748] sm:$0xff]
  %v308 = vld [vmem:[%s1 + $0x750] sm:$0xff]
  %v309 = vld [vmem:[%s1 + $0x758] sm:$0xff]
  %v310 = vld [vmem:[%s1 + $0x760] sm:$0xff]
  %v311 = vld [vmem:[%s1 + $0x768] sm:$0xff]
  %v312 = vld [vmem:[%s1 + $0x770] sm:$0xff]
  %v313 = vld [vmem:[%s1 + $0x778] sm:$0xff]
  %v314 = vld [vmem:[%s1 + $0x780] sm:$0xff]
  %v315 = vld [vmem:[%s1 + $0x788] sm:$0xff]
  %v316 = vld [vmem:[%s1 + $0x790] sm:$0xff]
  %v317 = vld [vmem:[%s1 + $0x798] sm:$0xff]
  %v318 = vld [vmem:[%s1 + $0x7a0] sm:$0xff]
  %v319 = vld [vmem:[%s1 + $0x7a8] sm:$0xff]
  %v320 = vld [vmem:[%s1 + $0x7b0] sm:$0xff]
  %v321 = vld [vmem:[%s1 + $0x7b8] sm:$0xff]
  %v322 = vld [vmem:[%s1 + $0x7c0] sm:$0xff]
  %v323 = vld [vmem:[%s1 + $0x7c8] sm:$0xff]
  %v324 = vld [vmem:[%s1 + $0x7d0] sm:$0xff]
  %v325 = vld [vmem:[%s1 + $0x7d8] sm:$0xff]
  %v326 = vld [vmem:[%s1 + $0x7e0] sm:$0xff]
  %v327 = vld [vmem:[%s1 + $0x7e8] sm:$0xff]
  %v328 = vld [vmem:[%s1 + $0x7f0] sm:$0xff]
  %v329 = vld [vmem:[%s1 + $0x7f8] sm:$0xff]
  %v330 = vld [vmem:[%s1 + $0x800] sm:$0xff]
  %v331 = vld [vmem:[%s1 + $0x808] sm:$0xff]
  %v332 = vld [vmem:[%s1 + $0x810] sm:$0xff]
  %v333 = vld [vmem:[%s1 + $0x818] sm:$0xff]
  %v334 = vld [vmem:[%s1 + $0x820] sm:$0xff]
  %v335 = vld [vmem:[%s1 + $0x828] sm:$0xff]
  %v336 = vld [vmem:[%s1 + $0x830] sm:$0xff]
  %v337 = vld [vmem:[%s1 + $0x838] sm:$0xff]
  %v338 = vld [vmem:[%s1 + $0x840] sm:$0xff]
  %v339 = vld [vmem:[%s1 + $0x848] sm:$0xff]
  %v340 = vld [vmem:[%s1 + $0x850] sm:$0xff]
  %v341 = vld [vmem:[%s1 + $0x858] sm:$0xff]
  %v342 = vld [vmem:[%s1 + $0x860] sm:$0xff]
  %v343 = vld [vmem:[%s1 + $0x868] sm:$0xff]
  %v344 = vld [vmem:[%s1 + $0x870] sm:$0xff]
  %v345 = vld [vmem:[%s1 + $0x878] sm:$0xff]
  %v346 = vld [vmem:[%s1 + $0x880] sm:$0xff]
  %v347 = vld [vmem:[%s1 + $0x888] sm:$0xff]
  %v348 = vld [vmem:[%s1 + $0x890] sm:$0xff]
  %v349 = vld [vmem:[%s1 + $0x898] sm:$0xff]
  %v350 = vld [vmem:[%s1 + $0x8a0] sm:$0xff]
  %v351 = vld [vmem:[%s1 + $0x8a8] sm:$0xff]
  %v352 = vld [vmem:[%s1 + $0x8b0] sm:$0xff]
  %v353 = vld [vmem:[%s1 + $0x8b8] sm:$0xff]
  %v354 = vld [vmem:[%s1 + $0x8c0] sm:$0xff]
  %v355 = vld [vmem:[%s1 + $0x8c8] sm:$0xff]
  %v356 = vld [vmem:[%s1 + $0x8d0] sm:$0xff]
  %v357 = vld [vmem:[%s1 + $0x8d8] sm:$0xff]
  %v358 = vld [vmem:[%s1 + $0x8e0] sm:$0xff]
  %v359 = vld [vmem:[%s1 + $0x8e8] sm:$0xff]
  %v360 = vld [vmem:[%s1 + $0x8f0] sm:$0xff]
  %v361 = vld [vmem:[%s1 + $0x8f8] sm:$0xff]
  %v362 = vld [vmem:[%s1 + $0x900] sm:$0xff]
  %v363 = vld [vmem:[%s1 + $0x908] sm:$0xff]
  %v364 = vld [vmem:[%s1 + $0x910] sm:$0xff]
  %v365 = vld [vmem:[%s1 + $0x918] sm:$0xff]
  %v366 = vld [vmem:[%s1 + $0x920] sm:$0xff]
  %v367 = vld [vmem:[%s1 + $0x928] sm:$0xff]
  %v368 = vld [vmem:[%s1 + $0x930] sm:$0xff]
  %v369 = vld [vmem:[%s1 + $0x938] sm:$0xff]
  %v370 = vld [vmem:[%s1 + $0x940] sm:$0xff]
  %v371 = vld [vmem:[%s1 + $0x948] sm:$0xff]
  %v372 = vld [vmem:[%s1 + $0x950] sm:$0xff]
  %v373 = vld [vmem:[%s1 + $0x958] sm:$0xff]
  %v374 = vld [vmem:[%s1 + $0x960] sm:$0xff]
  %v375 = vld [vmem:[%s1 + $0x968] sm:$0xff]
  %v376 = vld [vmem:[%s1 + $0x970] sm:$0xff]
  %v377 = vld [vmem:[%s1 + $0x978] sm:$0xff]
  %v378 = vld [vmem:[%s1 + $0x980] sm:$0xff]
  %v379 = vld [vmem:[%s1 + $0x988] sm:$0xff]
  %v380 = vld [vmem:[%s1 + $0x990] sm:$0xff]
  %v381 = vld [vmem:[%s1 + $0x998] sm:$0xff]
  %v382 = vld [vmem:[%s1 + $0x9a0] sm:$0xff]
  %v383 = vld [vmem:[%s1 + $0x9a8] sm:$0xff]
  %v384 = vld [vmem:[%s1 + $0x9b0] sm:$0xff]
  %v385 = vld [vmem:[%s1 + $0x9b8] sm:$0xff]
  %v386 = vld [vmem:[%s1 + $0x9c0] sm:$0xff]
  %v387 = vld [vmem:[%s1 + $0x9c8] sm:$0xff]
  %v388 = vld [vmem:[%s1 + $0x9d0] sm:$0xff]
  %v389 = vld [vmem:[%s1 + $0x9d8] sm:$0xff]
  %v390 = vld [vmem:[%s1 + $0x9e0] sm:$0xff]
  %v391 = vld [vmem:[%s1 + $0x9e8] sm:$0xff]
  %v392 = vld [vmem:[%s1 + $0x9f0] sm:$0xff]
  %v393 = vld [vmem:[%s1 + $0x9f8] sm:$0xff]
  %v394 = vld [vmem:[%s1 + $0xa00] sm:$0xff]
  %v395 = vld [vmem:[%s1 + $0xa08] sm:$0xff]
  %v396 = vld [vmem:[%s1 + $0xa10] sm:$0xff]
  %v397 = vld [vmem:[%s1 + $0xa18] sm:$0xff]
  %v398 = vld [vmem:[%s1 + $0xa20] sm:$0xff]
  %v399 = vld [vmem:[%s1 + $0xa28] sm:$0xff]
  %v400 = vld [vmem:[%s1 + $0xa30] sm:$0xff]
  %v401 = vld [vmem:[%s1 + $0xa38] sm:$0xff]
  %v402 = vld [vmem:[%s1 + $0xa40] sm:$0xff]
  %v403 = vld [vmem:[%s1 + $0xa48] sm:$0xff]
  %v404 = vld [vmem:[%s1 + $0xa50] sm:$0xff]
  %v405 = vld [vmem:[%s1 + $0xa58] sm:$0xff]
  %v406 = vld [vmem:[%s1 + $0xa60] sm:$0xff]
  %v407 = vld [vmem:[%s1 + $0xa68] sm:$0xff]
  %v408 = vld [vmem:[%s1 + $0xa70] sm:$0xff]
  %v409 = vld [vmem:[%s1 + $0xa78] sm:$0xff]
  %v410 = vld [vmem:[%s1 + $0xa80] sm:$0xff]
  %v411 = vld [vmem:[%s1 + $0xa88] sm:$0xff]
  %v412 = vld [vmem:[%s1 + $0xa90] sm:$0xff]
  %v413 = vld [vmem:[%s1 + $0xa98] sm:$0xff]
  %v414 = vld [vmem:[%s1 + $0xaa0] sm:$0xff]
  %v415 = vld [vmem:[%s1 + $0xaa8] sm:$0xff]
  %v416 = vld [vmem:[%s1 + $0xab0] sm:$0xff]
  %v417 = vld [vmem:[%s1 + $0xab8] sm:$0xff]
  %v418 = vld [vmem:[%s1 + $0xac0] sm:$0xff]
  %v419 = vld [vmem:[%s1 + $0xac8] sm:$0xff]
  %v420 = vld [vmem:[%s1 + $0xad0] sm:$0xff]
  %v421 = vld [vmem:[%s1 + $0xad8] sm:$0xff]
  %v422 = vld [vmem:[%s1 + $0xae0] sm:$0xff]
  %v423 = vld [vmem:[%s1 + $0xae8] sm:$0xff]
  %v424 = vld [vmem:[%s1 + $0xaf0] sm:$0xff]
  %v425 = vld [vmem:[%s1 + $0xaf8] sm:$0xff]
  %v426 = vld [vmem:[%s1 + $0xb00] sm:$0xff]
  %v427 = vld [vmem:[%s1 + $0xb08] sm:$0xff]
  %v428 = vld [vmem:[%s1 + $0xb10] sm:$0xff]
  %v429 = vld [vmem:[%s1 + $0xb18] sm:$0xff]
  %v430 = vld [vmem:[%s1 + $0xb20] sm:$0xff]
  %v431 = vld [vmem:[%s1 + $0xb28] sm:$0xff]
  %v432 = vld [vmem:[%s1 + $0xb30] sm:$0xff]
  %v433 = vld [vmem:[%s1 + $0xb38] sm:$0xff]
  %v434 = vld [vmem:[%s1 + $0xb40] sm:$0xff]
  %v435 = vld [vmem:[%s1 + $0xb48] sm:$0xff]
  %v436 = vld [vmem:[%s1 + $0xb50] sm:$0xff]
  %v437 = vld [vmem:[%s1 + $0xb58] sm:$0xff]
  %v438 = vld [vmem:[%s1 + $0xb60] sm:$0xff]
  %v439 = vld [vmem:[%s1 + $0xb68] sm:$0xff]
  %v440 = vld [vmem:[%s1 + $0xb70] sm:$0xff]
  %v441 = vld [vmem:[%s1 + $0xb78] sm:$0xff]
  %v442 = vld [vmem:[%s1 + $0xb80] sm:$0xff]
  %v443 = vld [vmem:[%s1 + $0xb88] sm:$0xff]
  %v444 = vld [vmem:[%s1 + $0xb90] sm:$0xff]
  %v445 = vld [vmem:[%s1 + $0xb98] sm:$0xff]
  %v446 = vld [vmem:[%s1 + $0xba0] sm:$0xff]
  %v447 = vld [vmem:[%s1 + $0xba8] sm:$0xff]
  %v448 = vld [vmem:[%s1 + $0xbb0] sm:$0xff]
  %v449 = vld [vmem:[%s1 + $0xbb8] sm:$0xff]
  %v450 = vld [vmem:[%s1 + $0xbc0] sm:$0xff]
  %v451 = vld [vmem:[%s1 + $0xbc8] sm:$0xff]
  %v452 = vld [vmem:[%s1 + $0xbd0] sm:$0xff]
  %v453 = vld [vmem:[%s1 + $0xbd8] sm:$0xff]
  %v454 = vld [vmem:[%s1 + $0xbe0] sm:$0xff]
  %v455 = vld [vmem:[%s1 + $0xbe8] sm:$0xff]
  %v456 = vld [vmem:[%s1 + $0xbf0] sm:$0xff]
  %v457 = vld [vmem:[%s1 + $0xbf8] sm:$0xff]
  %v458 = vld [vmem:[%s1 + $0xc00] sm:$0xff]
  %v459 = vld [vmem:[%s1 + $0xc08] sm:$0xff]
  %v460 = vld [vmem:[%s1 + $0xc10] sm:$0xff]
  %v461 = vld [vmem:[%s1 + $0xc18] sm:$0xff]
  %v462 = vld [vmem:[%s1 + $0xc20] sm:$0xff]
  %v463 = vld [vmem:[%s1 + $0xc28] sm:$0xff]
  %v464 = vld [vmem:[%s1 + $0xc30] sm:$0xff]
  %v465 = vld [vmem:[%s1 + $0xc38] sm:$0xff]
  %v466 = vld [vmem:[%s1 + $0xc40] sm:$0xff]
  %v467 = vld [vmem:[%s1 + $0xc48] sm:$0xff]
  %v468 = vld [vmem:[%s1 + $0xc50] sm:$0xff]
  %v469 = vld [vmem:[%s1 + $0xc58] sm:$0xff]
  %v470 = vld [vmem:[%s1 + $0xc60] sm:$0xff]
  %v471 = vld [vmem:[%s1 + $0xc68] sm:$0xff]
  %v472 = vld [vmem:[%s1 + $0xc70] sm:$0xff]
  %v473 = vld [vmem:[%s1 + $0xc78] sm:$0xff]
  %v474 = vld [vmem:[%s1 + $0xc80] sm:$0xff]
  %v475 = vld [vmem:[%s1 + $0xc88] sm:$0xff]
  %v476 = vld [vmem:[%s1 + $0xc90] sm:$0xff]
  %v477 = vld [vmem:[%s1 + $0xc98] sm:$0xff]
  %v478 = vld [vmem:[%s1 + $0xca0] sm:$0xff]
  %v479 = vld [vmem:[%s1 + $0xca8] sm:$0xff]
  %v480 = vld [vmem:[%s1 + $0xcb0] sm:$0xff]
  %v481 = vld [vmem:[%s1 + $0xcb8] sm:$0xff]
  %v482 = vld [vmem:[%s1 + $0xcc0] sm:$0xff]
  %v483 = vld [vmem:[%s1 + $0xcc8] sm:$0xff]
  %v484 = vld [vmem:[%s1 + $0xcd0] sm:$0xff]
  %v485 = vld [vmem:[%s1 + $0xcd8] sm:$0xff]
  %v486 = vld [vmem:[%s1 + $0xce0] sm:$0xff]
  %v487 = vld [vmem:[%s1 + $0xce8] sm:$0xff]
  %v488 = vld [vmem:[%s1 + $0xcf0] sm:$0xff]
  %v489 = vld [vmem:[%s1 + $0xcf8] sm:$0xff]
  %v490 = vld [vmem:[%s1 + $0xd00] sm:$0xff]
  %v491 = vld [vmem:[%s1 + $0xd08] sm:$0xff]
  %v492 = vld [vmem:[%s1 + $0xd10] sm:$0xff]
  %v493 = vld [vmem:[%s1 + $0xd18] sm:$0xff]
  %v494 = vld [vmem:[%s1 + $0xd20] sm:$0xff]
  %v495 = vld [vmem:[%s1 + $0xd28] sm:$0xff]
  %v496 = vld [vmem:[%s1 + $0xd30] sm:$0xff]
  %v497 = vld [vmem:[%s1 + $0xd38] sm:$0xff]
  %v498 = vld [vmem:[%s1 + $0xd40] sm:$0xff]
  %v499 = vld [vmem:[%s1 + $0xd48] sm:$0xff]
  %v500 = vld [vmem:[%s1 + $0xd50] sm:$0xff]
  %v501 = vld [vmem:[%s1 + $0xd58] sm:$0xff]
  %v502 = vld [vmem:[%s1 + $0xd60] sm:$0xff]
  %v503 = vld [vmem:[%s1 + $0xd68] sm:$0xff]
  %v504 = vld [vmem:[%s1 + $0xd70] sm:$0xff]
  %v505 = vld [vmem:[%s1 + $0xd78] sm:$0xff]
  %v506 = vld [vmem:[%s1 + $0xd80] sm:$0xff]
  %v507 = vld [vmem:[%s1 + $0xd88] sm:$0xff]
  %v508 = vld [vmem:[%s1 + $0xd90] sm:$0xff]
  %v509 = vld [vmem:[%s1 + $0xd98] sm:$0xff]
  %v510 = vld [vmem:[%s1 + $0xda0] sm:$0xff]
  %v511 = vld [vmem:[%s1 + $0xda8] sm:$0xff]
  %v512 = vld [vmem:[%s1 + $0xdb0] sm:$0xff]
  %v513 = vld [vmem:[%s1 + $0xdb8] sm:$0xff]
  %v514 = vld [vmem:[%s1 + $0xdc0] sm:$0xff]
  %v515 = vld [vmem:[%s1 + $0xdc8] sm:$0xff]
  %v516 = vld [vmem:[%s1 + $0xdd0] sm:$0xff]
  %v517 = vld [vmem:[%s1 + $0xdd8] sm:$0xff]
  %v518 = vld [vmem:[%s1 + $0xde0] sm:$0xff]
  %v519 = vld [vmem:[%s1 + $0xde8] sm:$0xff]
  %v520 = vld [vmem:[%s1 + $0xdf0] sm:$0xff]
  %v521 = vld [vmem:[%s1 + $0xdf8] sm:$0xff]
  %v522 = vld [vmem:[%s1 + $0xe00] sm:$0xff]
  %v523 = vld [vmem:[%s1 + $0xe08] sm:$0xff]
  %v524 = vld [vmem:[%s1 + $0xe10] sm:$0xff]
  %v525 = vld [vmem:[%s1 + $0xe18] sm:$0xff]
  %v526 = vld [vmem:[%s1 + $0xe20] sm:$0xff]
  %v527 = vld [vmem:[%s1 + $0xe28] sm:$0xff]
  %v528 = vld [vmem:[%s1 + $0xe30] sm:$0xff]
  %v529 = vld [vmem:[%s1 + $0xe38] sm:$0xff]
  %v530 = vld [vmem:[%s1 + $0xe40] sm:$0xff]
  %v531 = vld [vmem:[%s1 + $0xe48] sm:$0xff]
  %v532 = vld [vmem:[%s1 + $0xe50] sm:$0xff]
  %v533 = vld [vmem:[%s1 + $0xe58] sm:$0xff]
  %v534 = vld [vmem:[%s1 + $0xe60] sm:$0xff]
  %v535 = vld [vmem:[%s1 + $0xe68] sm:$0xff]
  %v536 = vld [vmem:[%s1 + $0xe70] sm:$0xff]
  %v537 = vld [vmem:[%s1 + $0xe78] sm:$0xff]
  %v538 = vld [vmem:[%s1 + $0xe80] sm:$0xff]
  %v539 = vld [vmem:[%s1 + $0xe88] sm:$0xff]
  %v540 = vld [vmem:[%s1 + $0xe90] sm:$0xff]
  %v541 = vld [vmem:[%s1 + $0xe98] sm:$0xff]
  %v542 = vld [vmem:[%s1 + $0xea0] sm:$0xff]
  %v543 = vld [vmem:[%s1 + $0xea8] sm:$0xff]
  %v544 = vld [vmem:[%s1 + $0xeb0] sm:$0xff]
  %v545 = vld [vmem:[%s1 + $0xeb8] sm:$0xff]
  %v546 = vld [vmem:[%s1 + $0xec0] sm:$0xff]
  %v547 = vld [vmem:[%s1 + $0xec8] sm:$0xff]
  %v548 = vld [vmem:[%s1 + $0xed0] sm:$0xff]
  %v549 = vld [vmem:[%s1 + $0xed8] sm:$0xff]
  %v550 = vld [vmem:[%s1 + $0xee0] sm:$0xff]
  %v551 = vld [vmem:[%s1 + $0xee8] sm:$0xff]
  %v552 = vld [vmem:[%s1 + $0xef0] sm:$0xff]
  %v553 = vld [vmem:[%s1 + $0xef8] sm:$0xff]
  %v554 = vld [vmem:[%s1 + $0xf00] sm:$0xff]
  %v555 = vld [vmem:[%s1 + $0xf08] sm:$0xff]
  %v556 = vld [vmem:[%s1 + $0xf10] sm:$0xff]
  %v557 = vld [vmem:[%s1 + $0xf18] sm:$0xff]
  %v558 = vld [vmem:[%s1 + $0xf20] sm:$0xff]
  %v559 = vld [vmem:[%s1 + $0xf28] sm:$0xff]
  %v560 = vld [vmem:[%s1 + $0xf30] sm:$0xff]
  %v561 = vld [vmem:[%s1 + $0xf38] sm:$0xff]
  %v562 = vld [vmem:[%s1 + $0xf40] sm:$0xff]
  %v563 = vld [vmem:[%s1 + $0xf48] sm:$0xff]
  %v564 = vld [vmem:[%s1 + $0xf50] sm:$0xff]
  %v565 = vld [vmem:[%s1 + $0xf58] sm:$0xff]
  %v566 = vld [vmem:[%s1 + $0xf60] sm:$0xff]
  %v567 = vld [vmem:[%s1 + $0xf68] sm:$0xff]
  %v568 = vld [vmem:[%s1 + $0xf70] sm:$0xff]
  %v569 = vld [vmem:[%s1 + $0xf78] sm:$0xff]
  %v570 = vld [vmem:[%s1 + $0xf80] sm:$0xff]
  %v571 = vld [vmem:[%s1 + $0xf88] sm:$0xff]
  %v572 = vld [vmem:[%s1 + $0xf90] sm:$0xff]
  %v573 = vld [vmem:[%s1 + $0xf98] sm:$0xff]
  %v574 = vld [vmem:[%s1 + $0xfa0] sm:$0xff]
  %v575 = vld [vmem:[%s1 + $0xfa8] sm:$0xff]
  %v576 = vld [vmem:[%s1 + $0xfb0] sm:$0xff]
  %v577 = vld [vmem:[%s1 + $0xfb8] sm:$0xff]
  %v578 = vld [vmem:[%s1 + $0xfc0] sm:$0xff]
  %v579 = vld [vmem:[%s1 + $0xfc8] sm:$0xff]
  %v580 = vld [vmem:[%s1 + $0xfd0] sm:$0xff]
  %v581 = vld [vmem:[%s1 + $0xfd8] sm:$0xff]
  %v582 = vld [vmem:[%s1 + $0xfe0] sm:$0xff]
  %v583 = vld [vmem:[%s1 + $0xfe8] sm:$0xff]
  %v584 = vld [vmem:[%s1 + $0xff0] sm:$0xff]
  %v585 = vld [vmem:[%s1 + $0xff8] sm:$0xff]
  %v586 = vld [vmem:[%s1 + $0x1000] sm:$0xff]
  %v587 = vld [vmem:[%s1 + $0x1008] sm:$0xff]
  %v588 = vld [vmem:[%s1 + $0x1010] sm:$0xff]
  %v589 = vld [vmem:[%s1 + $0x1018] sm:$0xff]
  %v590 = vld [vmem:[%s1 + $0x1020] sm:$0xff]
  %v591 = vld [vmem:[%s1 + $0x1028] sm:$0xff]
  %v592 = vld [vmem:[%s1 + $0x1030] sm:$0xff]
  %v593 = vld [vmem:[%s1 + $0x1038] sm:$0xff]
  %v594 = vld [vmem:[%s1 + $0x1040] sm:$0xff]
  %v595 = vld [vmem:[%s1 + $0x1048] sm:$0xff]
  %v596 = vld [vmem:[%s1 + $0x1050] sm:$0xff]
  %v597 = vld [vmem:[%s1 + $0x1058] sm:$0xff]
  %v598 = vld [vmem:[%s1 + $0x1060] sm:$0xff]
  %v599 = vld [vmem:[%s1 + $0x1068] sm:$0xff]
  %v600 = vld [vmem:[%s1 + $0x1070] sm:$0xff]
  %v601 = vld [vmem:[%s1 + $0x1078] sm:$0xff]
  %v602 = vld [vmem:[%s1 + $0x1080] sm:$0xff]
  %v603 = vld [vmem:[%s1 + $0x1088] sm:$0xff]
  %v604 = vld [vmem:[%s1 + $0x1090] sm:$0xff]
  %v605 = vld [vmem:[%s1 + $0x1098] sm:$0xff]
  %v606 = vld [vmem:[%s1 + $0x10a0] sm:$0xff]
  %v607 = vld [vmem:[%s1 + $0x10a8] sm:$0xff]
  %v608 = vld [vmem:[%s1 + $0x10b0] sm:$0xff]
  %v609 = vld [vmem:[%s1 + $0x10b8] sm:$0xff]
  %v610 = vld [vmem:[%s1 + $0x10c0] sm:$0xff]
  %v611 = vld [vmem:[%s1 + $0x10c8] sm:$0xff]
  %v612 = vld [vmem:[%s1 + $0x10d0] sm:$0xff]
  %v613 = vld [vmem:[%s1 + $0x10d8] sm:$0xff]
  %v614 = vld [vmem:[%s1 + $0x10e0] sm:$0xff]
  %v615 = vld [vmem:[%s1 + $0x10e8] sm:$0xff]
  %v616 = vld [vmem:[%s1 + $0x10f0] sm:$0xff]
  %v617 = vld [vmem:[%s1 + $0x10f8] sm:$0xff]
  %v618 = vld [vmem:[%s1 + $0x1100] sm:$0xff]
  %v619 = vld [vmem:[%s1 + $0x1108] sm:$0xff]
  %v620 = vld [vmem:[%s1 + $0x1110] sm:$0xff]
  %v621 = vld [vmem:[%s1 + $0x1118] sm:$0xff]
  %v622 = vld [vmem:[%s1 + $0x1120] sm:$0xff]
  %v623 = vld [vmem:[%s1 + $0x1128] sm:$0xff]
  %v624 = vld [vmem:[%s1 + $0x1130] sm:$0xff]
  %v625 = vld [vmem:[%s1 + $0x1138] sm:$0xff]
  %v626 = vld [vmem:[%s1 + $0x1140] sm:$0xff]
  %v627 = vld [vmem:[%s1 + $0x1148] sm:$0xff]
  %v628 = vld [vmem:[%s1 + $0x1150] sm:$0xff]
  %v629 = vld [vmem:[%s1 + $0x1158] sm:$0xff]
  %v630 = vld [vmem:[%s1 + $0x1160] sm:$0xff]
  %v631 = vld [vmem:[%s1 + $0x1168] sm:$0xff]
  %v632 = vld [vmem:[%s1 + $0x1170] sm:$0xff]
  %v633 = vld [vmem:[%s1 + $0x1178] sm:$0xff]
  %v634 = vld [vmem:[%s1 + $0x1180] sm:$0xff]
  %v635 = vld [vmem:[%s1 + $0x1188] sm:$0xff]
  %v636 = vld [vmem:[%s1 + $0x1190] sm:$0xff]
  %v637 = vld [vmem:[%s1 + $0x1198] sm:$0xff]
  %v638 = vld [vmem:[%s1 + $0x11a0] sm:$0xff]
  %v639 = vld [vmem:[%s1 + $0x11a8] sm:$0xff]
  %v640 = vld [vmem:[%s1 + $0x11b0] sm:$0xff]
  %v641 = vld [vmem:[%s1 + $0x11b8] sm:$0xff]
  %v642 = vld [vmem:[%s1 + $0x11c0] sm:$0xff]
  %v643 = vld [vmem:[%s1 + $0x11c8] sm:$0xff]
  %v644 = vld [vmem:[%s1 + $0x11d0] sm:$0xff]
  %v645 = vld [vmem:[%s1 + $0x11d8] sm:$0xff]
  %v646 = vld [vmem:[%s1 + $0x11e0] sm:$0xff]
  %v647 = vld [vmem:[%s1 + $0x11e8] sm:$0xff]
  %v648 = vld [vmem:[%s1 + $0x11f0] sm:$0xff]
  %v649 = vld [vmem:[%s1 + $0x11f8] sm:$0xff]
  %v650 = vld [vmem:[%s1 + $0x1200] sm:$0xff]
  %v651 = vld [vmem:[%s1 + $0x1208] sm:$0xff]
  %v652 = vld [vmem:[%s1 + $0x1210] sm:$0xff]
  %v653 = vld [vmem:[%s1 + $0x1218] sm:$0xff]
  %v654 = vld [vmem:[%s1 + $0x1220] sm:$0xff]
  %v655 = vld [vmem:[%s1 + $0x1228] sm:$0xff]
  %v656 = vld [vmem:[%s1 + $0x1230] sm:$0xff]
  %v657 = vld [vmem:[%s1 + $0x1238] sm:$0xff]
  %v658 = vld [vmem:[%s1 + $0x1240] sm:$0xff]
  %v659 = vld [vmem:[%s1 + $0x1248] sm:$0xff]
  %v660 = vld [vmem:[%s1 + $0x1250] sm:$0xff]
  %v661 = vld [vmem:[%s1 + $0x1258] sm:$0xff]
  %v662 = vld [vmem:[%s1 + $0x1260] sm:$0xff]
  %v663 = vld [vmem:[%s1 + $0x1268] sm:$0xff]
  %v664 = vld [vmem:[%s1 + $0x1270] sm:$0xff]
  %v665 = vld [vmem:[%s1 + $0x1278] sm:$0xff]
  %v666 = vld [vmem:[%s1 + $0x1280] sm:$0xff]
  %v667 = vld [vmem:[%s1 + $0x1288] sm:$0xff]
  %v668 = vld [vmem:[%s1 + $0x1290] sm:$0xff]
  %v669 = vld [vmem:[%s1 + $0x1298] sm:$0xff]
  %v670 = vld [vmem:[%s1 + $0x12a0] sm:$0xff]
  %v671 = vld [vmem:[%s1 + $0x12a8] sm:$0xff]
  %v672 = vld [vmem:[%s1 + $0x12b0] sm:$0xff]
  %v673 = vld [vmem:[%s1 + $0x12b8] sm:$0xff]
  %v674 = vld [vmem:[%s1 + $0x12c0] sm:$0xff]
  %v675 = vld [vmem:[%s1 + $0x12c8] sm:$0xff]
  %v676 = vld [vmem:[%s1 + $0x12d0] sm:$0xff]
  %v677 = vld [vmem:[%s1 + $0x12d8] sm:$0xff]
  %v678 = vld [vmem:[%s1 + $0x12e0] sm:$0xff]
  %v679 = vld [vmem:[%s1 + $0x12e8] sm:$0xff]
  %v680 = vld [vmem:[%s1 + $0x12f0] sm:$0xff]
  %v681 = vld [vmem:[%s1 + $0x12f8] sm:$0xff]
  %v682 = vld [vmem:[%s1 + $0x1300] sm:$0xff]
  %v683 = vld [vmem:[%s1 + $0x1308] sm:$0xff]
  %v684 = vld [vmem:[%s1 + $0x1310] sm:$0xff]
  %v685 = vld [vmem:[%s1 + $0x1318] sm:$0xff]
  %v686 = vld [vmem:[%s1 + $0x1320] sm:$0xff]
  %v687 = vld [vmem:[%s1 + $0x1328] sm:$0xff]
  %v688 = vld [vmem:[%s1 + $0x1330] sm:$0xff]
  %v689 = vld [vmem:[%s1 + $0x1338] sm:$0xff]
  %v690 = vld [vmem:[%s1 + $0x1340] sm:$0xff]
  %v691 = vld [vmem:[%s1 + $0x1348] sm:$0xff]
  %v692 = vld [vmem:[%s1 + $0x1350] sm:$0xff]
  %v693 = vld [vmem:[%s1 + $0x1358] sm:$0xff]
  %v694 = vld [vmem:[%s1 + $0x1360] sm:$0xff]
  %v695 = vld [vmem:[%s1 + $0x1368] sm:$0xff]
  %v696 = vld [vmem:[%s1 + $0x1370] sm:$0xff]
  %v697 = vld [vmem:[%s1 + $0x1378] sm:$0xff]
  %v698 = vld [vmem:[%s1 + $0x1380] sm:$0xff]
  %v699 = vld [vmem:[%s1 + $0x1388] sm:$0xff]
  %v700 = vld [vmem:[%s1 + $0x1390] sm:$0xff]
  %v701 = vld [vmem:[%s1 + $0x1398] sm:$0xff]
  %v702 = vld [vmem:[%s1 + $0x13a0] sm:$0xff]
  %v703 = vld [vmem:[%s1 + $0x13a8] sm:$0xff]
  %v704 = vld [vmem:[%s1 + $0x13b0] sm:$0xff]
  %v705 = vld [vmem:[%s1 + $0x13b8] sm:$0xff]
  %v706 = vld [vmem:[%s1 + $0x13c0] sm:$0xff]
  %v707 = vld [vmem:[%s1 + $0x13c8] sm:$0xff]
  %v708 = vld [vmem:[%s1 + $0x13d0] sm:$0xff]
  %v709 = vld [vmem:[%s1 + $0x13d8] sm:$0xff]
  %v710 = vld [vmem:[%s1 + $0x13e0] sm:$0xff]
  %v711 = vld [vmem:[%s1 + $0x13e8] sm:$0xff]
  %v712 = vld [vmem:[%s1 + $0x13f0] sm:$0xff]
  %v713 = vld [vmem:[%s1 + $0x13f8] sm:$0xff]
  %v714 = vld [vmem:[%s1 + $0x1400] sm:$0xff]
  %v715 = vld [vmem:[%s1 + $0x1408] sm:$0xff]
  %v716 = vld [vmem:[%s1 + $0x1410] sm:$0xff]
  %v717 = vld [vmem:[%s1 + $0x1418] sm:$0xff]
  %v718 = vld [vmem:[%s1 + $0x1420] sm:$0xff]
  %v719 = vld [vmem:[%s1 + $0x1428] sm:$0xff]
  %v720 = vld [vmem:[%s1 + $0x1430] sm:$0xff]
  %v721 = vld [vmem:[%s1 + $0x1438] sm:$0xff]
  %v722 = vld [vmem:[%s1 + $0x1440] sm:$0xff]
  %v723 = vld [vmem:[%s1 + $0x1448] sm:$0xff]
  %v724 = vld [vmem:[%s1 + $0x1450] sm:$0xff]
  %v725 = vld [vmem:[%s1 + $0x1458] sm:$0xff]
  %v726 = vld [vmem:[%s1 + $0x1460] sm:$0xff]
  %v727 = vld [vmem:[%s1 + $0x1468] sm:$0xff]
  %v728 = vld [vmem:[%s1 + $0x1470] sm:$0xff]
  %v729 = vld [vmem:[%s1 + $0x1478] sm:$0xff]
  %v730 = vld [vmem:[%s1 + $0x1480] sm:$0xff]
  %v731 = vld [vmem:[%s1 + $0x1488] sm:$0xff]
  %v732 = vld [vmem:[%s1 + $0x1490] sm:$0xff]
  %v733 = vld [vmem:[%s1 + $0x1498] sm:$0xff]
  %v734 = vld [vmem:[%s1 + $0x14a0] sm:$0xff]
  %v735 = vld [vmem:[%s1 + $0x14a8] sm:$0xff]
  %v736 = vld [vmem:[%s1 + $0x14b0] sm:$0xff]
  %v737 = vld [vmem:[%s1 + $0x14b8] sm:$0xff]
  %v738 = vld [vmem:[%s1 + $0x14c0] sm:$0xff]
  %v739 = vld [vmem:[%s1 + $0x14c8] sm:$0xff]
  %v740 = vld [vmem:[%s1 + $0x14d0] sm:$0xff]
  %v741 = vld [vmem:[%s1 + $0x14d8] sm:$0xff]
  %v742 = vld [vmem:[%s1 + $0x14e0] sm:$0xff]
  %v743 = vld [vmem:[%s1 + $0x14e8] sm:$0xff]
  %v744 = vld [vmem:[%s1 + $0x14f0] sm:$0xff]
  %v745 = vld [vmem:[%s1 + $0x14f8] sm:$0xff]
  %v746 = vld [vmem:[%s1 + $0x1500] sm:$0xff]
  %v747 = vld [vmem:[%s1 + $0x1508] sm:$0xff]
  %v748 = vld [vmem:[%s1 + $0x1510] sm:$0xff]
  %v749 = vld [vmem:[%s1 + $0x1518] sm:$0xff]
  %v750 = vld [vmem:[%s1 + $0x1520] sm:$0xff]
  %v751 = vld [vmem:[%s1 + $0x1528] sm:$0xff]
  %v752 = vld [vmem:[%s1 + $0x1530] sm:$0xff]
  %v753 = vld [vmem:[%s1 + $0x1538] sm:$0xff]
  %v754 = vld [vmem:[%s1 + $0x1540] sm:$0xff]
  %v755 = vld [vmem:[%s1 + $0x1548] sm:$0xff]
  %v756 = vld [vmem:[%s1 + $0x1550] sm:$0xff]
  %v757 = vld [vmem:[%s1 + $0x1558] sm:$0xff]
  %v758 = vld [vmem:[%s1 + $0x1560] sm:$0xff]
  %v759 = vld [vmem:[%s1 + $0x1568] sm:$0xff]
  %v760 = vld [vmem:[%s1 + $0x1570] sm:$0xff]
  %v761 = vld [vmem:[%s1 + $0x1578] sm:$0xff]
  %v762 = vld [vmem:[%s1 + $0x1580] sm:$0xff]
  %v763 = vld [vmem:[%s1 + $0x1588] sm:$0xff]
  %v764 = vld [vmem:[%s1 + $0x1590] sm:$0xff]
  %v765 = vld [vmem:[%s1 + $0x1598] sm:$0xff]
  %v766 = vld [vmem:[%s1 + $0x15a0] sm:$0xff]
  %v767 = vld [vmem:[%s1 + $0x15a8] sm:$0xff]
  %v768 = vld [vmem:[%s1 + $0x15b0] sm:$0xff]
  %v769 = vld [vmem:[%s1 + $0x15b8] sm:$0xff]
  %v770 = vld [vmem:[%s1 + $0x15c0] sm:$0xff]
  %v771 = vld [vmem:[%s1 + $0x15c8] sm:$0xff]
  %v772 = vld [vmem:[%s1 + $0x15d0] sm:$0xff]
  %v773 = vld [vmem:[%s1 + $0x15d8] sm:$0xff]
  %v774 = vld [vmem:[%s1 + $0x15e0] sm:$0xff]
  %v775 = vld [vmem:[%s1 + $0x15e8] sm:$0xff]
  %v776 = vld [vmem:[%s1 + $0x15f0] sm:$0xff]
  %v777 = vld [vmem:[%s1 + $0x15f8] sm:$0xff]
  %v778 = vld [vmem:[%s1 + $0x1600] sm:$0xff]
  %v779 = vld [vmem:[%s1 + $0x1608] sm:$0xff]
  %v780 = vld [vmem:[%s1 + $0x1610] sm:$0xff]
  %v781 = vld [vmem:[%s1 + $0x1618] sm:$0xff]
  %v782 = vld [vmem:[%s1 + $0x1620] sm:$0xff]
  %v783 = vld [vmem:[%s1 + $0x1628] sm:$0xff]
  %v784 = vld [vmem:[%s1 + $0x1630] sm:$0xff]
  %v785 = vld [vmem:[%s1 + $0x1638] sm:$0xff]
  %v786 = vld [vmem:[%s1 + $0x1640] sm:$0xff]
  %v787 = vld [vmem:[%s1 + $0x1648] sm:$0xff]
  %v788 = vld [vmem:[%s1 + $0x1650] sm:$0xff]
  %v789 = vld [vmem:[%s1 + $0x1658] sm:$0xff]
  %v790 = vld [vmem:[%s1 + $0x1660] sm:$0xff]
  %v791 = vld [vmem:[%s1 + $0x1668] sm:$0xff]
  %v792 = vld [vmem:[%s1 + $0x1670] sm:$0xff]
  %v793 = vld [vmem:[%s1 + $0x1678] sm:$0xff]
  %v794 = vld [vmem:[%s1 + $0x1680] sm:$0xff]
  %v795 = vld [vmem:[%s1 + $0x1688] sm:$0xff]
  %v796 = vld [vmem:[%s1 + $0x1690] sm:$0xff]
  %v797 = vld [vmem:[%s1 + $0x1698] sm:$0xff]
  %v798 = vld [vmem:[%s1 + $0x16a0] sm:$0xff]
  %v799 = vld [vmem:[%s1 + $0x16a8] sm:$0xff]
  %v800 = vld [vmem:[%s1 + $0x16b0] sm:$0xff]
  %v801 = vld [vmem:[%s1 + $0x16b8] sm:$0xff]
  %v802 = vld [vmem:[%s1 + $0x16c0] sm:$0xff]
  %v803 = vld [vmem:[%s1 + $0x16c8] sm:$0xff]
  %v804 = vld [vmem:[%s1 + $0x16d0] sm:$0xff]
  %v805 = vld [vmem:[%s1 + $0x16d8] sm:$0xff]
  %v806 = vld [vmem:[%s1 + $0x16e0] sm:$0xff]
  %v807 = vld [vmem:[%s1 + $0x16e8] sm:$0xff]
  %v808 = vld [vmem:[%s1 + $0x16f0] sm:$0xff]
  %v809 = vld [vmem:[%s1 + $0x16f8] sm:$0xff]
  %v810 = vld [vmem:[%s1 + $0x1700] sm:$0xff]
  %v811 = vld [vmem:[%s1 + $0x1708] sm:$0xff]
  %v812 = vld [vmem:[%s1 + $0x1710] sm:$0xff]
  %v813 = vld [vmem:[%s1 + $0x1718] sm:$0xff]
  %v814 = vld [vmem:[%s1 + $0x1720] sm:$0xff]
  %v815 = vld [vmem:[%s1 + $0x1728] sm:$0xff]
  %v816 = vld [vmem:[%s1 + $0x1730] sm:$0xff]
  %v817 = vld [vmem:[%s1 + $0x1738] sm:$0xff]
  %v818 = vld [vmem:[%s1 + $0x1740] sm:$0xff]
  %v819 = vld [vmem:[%s1 + $0x1748] sm:$0xff]
  %v820 = vld [vmem:[%s1 + $0x1750] sm:$0xff]
  %v821 = vld [vmem:[%s1 + $0x1758] sm:$0xff]
  %v822 = vld [vmem:[%s1 + $0x1760] sm:$0xff]
  %v823 = vld [vmem:[%s1 + $0x1768] sm:$0xff]
  %v824 = vld [vmem:[%s1 + $0x1770] sm:$0xff]
  %v825 = vld [vmem:[%s1 + $0x1778] sm:$0xff]
  %v826 = vld [vmem:[%s1 + $0x1780] sm:$0xff]
  %v827 = vld [vmem:[%s1 + $0x1788] sm:$0xff]
  %v828 = vld [vmem:[%s1 + $0x1790] sm:$0xff]
  %v829 = vld [vmem:[%s1 + $0x1798] sm:$0xff]
  %v830 = vld [vmem:[%s1 + $0x17a0] sm:$0xff]
  %v831 = vld [vmem:[%s1 + $0x17a8] sm:$0xff]
  %v832 = vld [vmem:[%s1 + $0x17b0] sm:$0xff]
  %v833 = vld [vmem:[%s1 + $0x17b8] sm:$0xff]
  %v834 = vld [vmem:[%s1 + $0x17c0] sm:$0xff]
  %v835 = vld [vmem:[%s1 + $0x17c8] sm:$0xff]
  %v836 = vld [vmem:[%s1 + $0x17d0] sm:$0xff]
  %v837 = vld [vmem:[%s1 + $0x17d8] sm:$0xff]
  %v838 = vld [vmem:[%s1 + $0x17e0] sm:$0xff]
  %v839 = vld [vmem:[%s1 + $0x17e8] sm:$0xff]
  %v840 = vld [vmem:[%s1 + $0x17f0] sm:$0xff]
  %v841 = vld [vmem:[%s1 + $0x17f8] sm:$0xff]
  %v842 = vld [vmem:[%s2] sm:$0xff]
  %v843 = vld [vmem:[%s2 + $0x8] sm:$0xff]
  %v844 = vld [vmem:[%s2 + $0x10] sm:$0xff]
  %v845 = vld [vmem:[%s2 + $0x18] sm:$0xff]
  %v846 = vld [vmem:[%s2 + $0x20] sm:$0xff]
  %v847 = vld [vmem:[%s2 + $0x28] sm:$0xff]
  %v848 = vld [vmem:[%s2 + $0x30] sm:$0x3f]
  %v849 = vld [vmem:[%s2 + $0x38] sm:$0x3f]
  %v850 = vld [vmem:[%s2 + $0x40] sm:$0x3f]
  %v851 = vld [vmem:[%s2 + $0x48] sm:$0x3f]
  %v852 = vld [vmem:[%s2 + $0x50] sm:$0x3f]
  %v853 = vld [vmem:[%s2 + $0x58] sm:$0x3f]
  %v1622 = vunpack.c.l.b16 %v74
  %v1623 = vunpack.c.h.b16 %v74
  %v1624 = vunpack.c.l.b16 %v75
  %v1625 = vunpack.c.h.b16 %v75
  %v1626 = vunpack.c.l.b16 %v76
  %v1627 = vunpack.c.h.b16 %v76
  %v1628 = vunpack.c.l.b16 %v77
  %v1629 = vunpack.c.h.b16 %v77
  %v1630 = vunpack.c.l.b16 %v78
  %v1631 = vunpack.c.h.b16 %v78
  %v1632 = vunpack.c.l.b16 %v79
  %v1633 = vunpack.c.h.b16 %v79
  %v1634 = vunpack.c.l.b16 %v80
  %v1635 = vunpack.c.h.b16 %v80
  %v1636 = vunpack.c.l.b16 %v81
  %v1637 = vunpack.c.h.b16 %v81
  %v1638 = vunpack.c.l.b16 %v82
  %v1639 = vunpack.c.h.b16 %v82
  %v1640 = vunpack.c.l.b16 %v83
  %v1641 = vunpack.c.h.b16 %v83
  %v1642 = vunpack.c.l.b16 %v84
  %v1643 = vunpack.c.h.b16 %v84
  %v1644 = vunpack.c.l.b16 %v85
  %v1645 = vunpack.c.h.b16 %v85
  %v1646 = vunpack.c.l.b16 %v86
  %v1647 = vunpack.c.h.b16 %v86
  %v1648 = vunpack.c.l.b16 %v87
  %v1649 = vunpack.c.h.b16 %v87
  %v1650 = vunpack.c.l.b16 %v88
  %v1651 = vunpack.c.h.b16 %v88
  %v1652 = vunpack.c.l.b16 %v89
  %v1653 = vunpack.c.h.b16 %v89
  %v1654 = vunpack.c.l.b16 %v90
  %v1655 = vunpack.c.h.b16 %v90
  %v1656 = vunpack.c.l.b16 %v91
  %v1657 = vunpack.c.h.b16 %v91
  %v1658 = vunpack.c.l.b16 %v92
  %v1659 = vunpack.c.h.b16 %v92
  %v1660 = vunpack.c.l.b16 %v93
  %v1661 = vunpack.c.h.b16 %v93
  %v1662 = vunpack.c.l.b16 %v94
  %v1663 = vunpack.c.h.b16 %v94
  %v1664 = vunpack.c.l.b16 %v95
  %v1665 = vunpack.c.h.b16 %v95
  %v1666 = vunpack.c.l.b16 %v96
  %v1667 = vunpack.c.h.b16 %v96
  %v1668 = vunpack.c.l.b16 %v97
  %v1669 = vunpack.c.h.b16 %v97
  %v1670 = vunpack.c.l.b16 %v98
  %v1671 = vunpack.c.h.b16 %v98
  %v1672 = vunpack.c.l.b16 %v99
  %v1673 = vunpack.c.h.b16 %v99
  %v1674 = vunpack.c.l.b16 %v100
  %v1675 = vunpack.c.h.b16 %v100
  %v1676 = vunpack.c.l.b16 %v101
  %v1677 = vunpack.c.h.b16 %v101
  %v1678 = vunpack.c.l.b16 %v102
  %v1679 = vunpack.c.h.b16 %v102
  %v1680 = vunpack.c.l.b16 %v103
  %v1681 = vunpack.c.h.b16 %v103
  %v1682 = vunpack.c.l.b16 %v104
  %v1683 = vunpack.c.h.b16 %v104
  %v1684 = vunpack.c.l.b16 %v105
  %v1685 = vunpack.c.h.b16 %v105
  %v1686 = vunpack.c.l.b16 %v106
  %v1687 = vunpack.c.h.b16 %v106
  %v1688 = vunpack.c.l.b16 %v107
  %v1689 = vunpack.c.h.b16 %v107
  %v1690 = vunpack.c.l.b16 %v108
  %v1691 = vunpack.c.h.b16 %v108
  %v1692 = vunpack.c.l.b16 %v109
  %v1693 = vunpack.c.h.b16 %v109
  %v1694 = vunpack.c.l.b16 %v110
  %v1695 = vunpack.c.h.b16 %v110
  %v1696 = vunpack.c.l.b16 %v111
  %v1697 = vunpack.c.h.b16 %v111
  %v1698 = vunpack.c.l.b16 %v112
  %v1699 = vunpack.c.h.b16 %v112
  %v1700 = vunpack.c.l.b16 %v113
  %v1701 = vunpack.c.h.b16 %v113
  %v1702 = vunpack.c.l.b16 %v114
  %v1703 = vunpack.c.h.b16 %v114
  %v1704 = vunpack.c.l.b16 %v115
  %v1705 = vunpack.c.h.b16 %v115
  %v1706 = vunpack.c.l.b16 %v116
  %v1707 = vunpack.c.h.b16 %v116
  %v1708 = vunpack.c.l.b16 %v117
  %v1709 = vunpack.c.h.b16 %v117
  %v1710 = vunpack.c.l.b16 %v118
  %v1711 = vunpack.c.h.b16 %v118
  %v1712 = vunpack.c.l.b16 %v119
  %v1713 = vunpack.c.h.b16 %v119
  %v1714 = vunpack.c.l.b16 %v120
  %v1715 = vunpack.c.h.b16 %v120
  %v1716 = vunpack.c.l.b16 %v121
  %v1717 = vunpack.c.h.b16 %v121
  %v1718 = vunpack.c.l.b16 %v122
  %v1719 = vunpack.c.h.b16 %v122
  %v1720 = vunpack.c.l.b16 %v123
  %v1721 = vunpack.c.h.b16 %v123
  %v1722 = vunpack.c.l.b16 %v124
  %v1723 = vunpack.c.h.b16 %v124
  %v1724 = vunpack.c.l.b16 %v125
  %v1725 = vunpack.c.h.b16 %v125
  %v1726 = vunpack.c.l.b16 %v126
  %v1727 = vunpack.c.h.b16 %v126
  %v1728 = vunpack.c.l.b16 %v127
  %v1729 = vunpack.c.h.b16 %v127
  %v1730 = vunpack.c.l.b16 %v128
  %v1731 = vunpack.c.h.b16 %v128
  %v1732 = vunpack.c.l.b16 %v129
  %v1733 = vunpack.c.h.b16 %v129
  %v1734 = vunpack.c.l.b16 %v130
  %v1735 = vunpack.c.h.b16 %v130
  %v1736 = vunpack.c.l.b16 %v131
  %v1737 = vunpack.c.h.b16 %v131
  %v1738 = vunpack.c.l.b16 %v132
  %v1739 = vunpack.c.h.b16 %v132
  %v1740 = vunpack.c.l.b16 %v133
  %v1741 = vunpack.c.h.b16 %v133
  %v1742 = vunpack.c.l.b16 %v134
  %v1743 = vunpack.c.h.b16 %v134
  %v1744 = vunpack.c.l.b16 %v135
  %v1745 = vunpack.c.h.b16 %v135
  %v1746 = vunpack.c.l.b16 %v136
  %v1747 = vunpack.c.h.b16 %v136
  %v1748 = vunpack.c.l.b16 %v137
  %v1749 = vunpack.c.h.b16 %v137
  %v1750 = vunpack.c.l.b16 %v138
  %v1751 = vunpack.c.h.b16 %v138
  %v1752 = vunpack.c.l.b16 %v139
  %v1753 = vunpack.c.h.b16 %v139
  %v1754 = vunpack.c.l.b16 %v140
  %v1755 = vunpack.c.h.b16 %v140
  %v1756 = vunpack.c.l.b16 %v141
  %v1757 = vunpack.c.h.b16 %v141
  %v1758 = vunpack.c.l.b16 %v142
  %v1759 = vunpack.c.h.b16 %v142
  %v1760 = vunpack.c.l.b16 %v143
  %v1761 = vunpack.c.h.b16 %v143
  %v1762 = vunpack.c.l.b16 %v144
  %v1763 = vunpack.c.h.b16 %v144
  %v1764 = vunpack.c.l.b16 %v145
  %v1765 = vunpack.c.h.b16 %v145
  %v1766 = vunpack.c.l.b16 %v146
  %v1767 = vunpack.c.h.b16 %v146
  %v1768 = vunpack.c.l.b16 %v147
  %v1769 = vunpack.c.h.b16 %v147
  %v1770 = vunpack.c.l.b16 %v148
  %v1771 = vunpack.c.h.b16 %v148
  %v1772 = vunpack.c.l.b16 %v149
  %v1773 = vunpack.c.h.b16 %v149
  %v1774 = vunpack.c.l.b16 %v150
  %v1775 = vunpack.c.h.b16 %v150
  %v1776 = vunpack.c.l.b16 %v151
  %v1777 = vunpack.c.h.b16 %v151
  %v1778 = vunpack.c.l.b16 %v152
  %v1779 = vunpack.c.h.b16 %v152
  %v1780 = vunpack.c.l.b16 %v153
  %v1781 = vunpack.c.h.b16 %v153
  %v1782 = vunpack.c.l.b16 %v154
  %v1783 = vunpack.c.h.b16 %v154
  %v1784 = vunpack.c.l.b16 %v155
  %v1785 = vunpack.c.h.b16 %v155
  %v1786 = vunpack.c.l.b16 %v156
  %v1787 = vunpack.c.h.b16 %v156
  %v1788 = vunpack.c.l.b16 %v157
  %v1789 = vunpack.c.h.b16 %v157
  %v1790 = vunpack.c.l.b16 %v158
  %v1791 = vunpack.c.h.b16 %v158
  %v1792 = vunpack.c.l.b16 %v159
  %v1793 = vunpack.c.h.b16 %v159
  %v1794 = vunpack.c.l.b16 %v160
  %v1795 = vunpack.c.h.b16 %v160
  %v1796 = vunpack.c.l.b16 %v161
  %v1797 = vunpack.c.h.b16 %v161
  %v1798 = vunpack.c.l.b16 %v162
  %v1799 = vunpack.c.h.b16 %v162
  %v1800 = vunpack.c.l.b16 %v163
  %v1801 = vunpack.c.h.b16 %v163
  %v1802 = vunpack.c.l.b16 %v164
  %v1803 = vunpack.c.h.b16 %v164
  %v1804 = vunpack.c.l.b16 %v165
  %v1805 = vunpack.c.h.b16 %v165
  %v1806 = vunpack.c.l.b16 %v166
  %v1807 = vunpack.c.h.b16 %v166
  %v1808 = vunpack.c.l.b16 %v167
  %v1809 = vunpack.c.h.b16 %v167
  %v1810 = vunpack.c.l.b16 %v168
  %v1811 = vunpack.c.h.b16 %v168
  %v1812 = vunpack.c.l.b16 %v169
  %v1813 = vunpack.c.h.b16 %v169
  %v1814 = vunpack.c.l.b16 %v170
  %v1815 = vunpack.c.h.b16 %v170
  %v1816 = vunpack.c.l.b16 %v171
  %v1817 = vunpack.c.h.b16 %v171
  %v1818 = vunpack.c.l.b16 %v172
  %v1819 = vunpack.c.h.b16 %v172
  %v1820 = vunpack.c.l.b16 %v173
  %v1821 = vunpack.c.h.b16 %v173
  %v1822 = vunpack.c.l.b16 %v174
  %v1823 = vunpack.c.h.b16 %v174
  %v1824 = vunpack.c.l.b16 %v175
  %v1825 = vunpack.c.h.b16 %v175
  %v1826 = vunpack.c.l.b16 %v176
  %v1827 = vunpack.c.h.b16 %v176
  %v1828 = vunpack.c.l.b16 %v177
  %v1829 = vunpack.c.h.b16 %v177
  %v1830 = vunpack.c.l.b16 %v178
  %v1831 = vunpack.c.h.b16 %v178
  %v1832 = vunpack.c.l.b16 %v179
  %v1833 = vunpack.c.h.b16 %v179
  %v1834 = vunpack.c.l.b16 %v180
  %v1835 = vunpack.c.h.b16 %v180
  %v1836 = vunpack.c.l.b16 %v181
  %v1837 = vunpack.c.h.b16 %v181
  %v1838 = vunpack.c.l.b16 %v182
  %v1839 = vunpack.c.h.b16 %v182
  %v1840 = vunpack.c.l.b16 %v183
  %v1841 = vunpack.c.h.b16 %v183
  %v1842 = vunpack.c.l.b16 %v184
  %v1843 = vunpack.c.h.b16 %v184
  %v1844 = vunpack.c.l.b16 %v185
  %v1845 = vunpack.c.h.b16 %v185
  %v1846 = vunpack.c.l.b16 %v186
  %v1847 = vunpack.c.h.b16 %v186
  %v1848 = vunpack.c.l.b16 %v187
  %v1849 = vunpack.c.h.b16 %v187
  %v1850 = vunpack.c.l.b16 %v188
  %v1851 = vunpack.c.h.b16 %v188
  %v1852 = vunpack.c.l.b16 %v189
  %v1853 = vunpack.c.h.b16 %v189
  %v1854 = vunpack.c.l.b16 %v190
  %v1855 = vunpack.c.h.b16 %v190
  %v1856 = vunpack.c.l.b16 %v191
  %v1857 = vunpack.c.h.b16 %v191
  %v1858 = vunpack.c.l.b16 %v192
  %v1859 = vunpack.c.h.b16 %v192
  %v1860 = vunpack.c.l.b16 %v193
  %v1861 = vunpack.c.h.b16 %v193
  %v1862 = vunpack.c.l.b16 %v194
  %v1863 = vunpack.c.h.b16 %v194
  %v1864 = vunpack.c.l.b16 %v195
  %v1865 = vunpack.c.h.b16 %v195
  %v1866 = vunpack.c.l.b16 %v196
  %v1867 = vunpack.c.h.b16 %v196
  %v1868 = vunpack.c.l.b16 %v197
  %v1869 = vunpack.c.h.b16 %v197
  %v1870 = vunpack.c.l.b16 %v198
  %v1871 = vunpack.c.h.b16 %v198
  %v1872 = vunpack.c.l.b16 %v199
  %v1873 = vunpack.c.h.b16 %v199
  %v1874 = vunpack.c.l.b16 %v200
  %v1875 = vunpack.c.h.b16 %v200
  %v1876 = vunpack.c.l.b16 %v201
  %v1877 = vunpack.c.h.b16 %v201
  %v1878 = vunpack.c.l.b16 %v202
  %v1879 = vunpack.c.h.b16 %v202
  %v1880 = vunpack.c.l.b16 %v203
  %v1881 = vunpack.c.h.b16 %v203
  %v1882 = vunpack.c.l.b16 %v204
  %v1883 = vunpack.c.h.b16 %v204
  %v1884 = vunpack.c.l.b16 %v205
  %v1885 = vunpack.c.h.b16 %v205
  %v1886 = vunpack.c.l.b16 %v206
  %v1887 = vunpack.c.h.b16 %v206
  %v1888 = vunpack.c.l.b16 %v207
  %v1889 = vunpack.c.h.b16 %v207
  %v1890 = vunpack.c.l.b16 %v208
  %v1891 = vunpack.c.h.b16 %v208
  %v1892 = vunpack.c.l.b16 %v209
  %v1893 = vunpack.c.h.b16 %v209
  %v1894 = vunpack.c.l.b16 %v210
  %v1895 = vunpack.c.h.b16 %v210
  %v1896 = vunpack.c.l.b16 %v211
  %v1897 = vunpack.c.h.b16 %v211
  %v1898 = vunpack.c.l.b16 %v212
  %v1899 = vunpack.c.h.b16 %v212
  %v1900 = vunpack.c.l.b16 %v213
  %v1901 = vunpack.c.h.b16 %v213
  %v1902 = vunpack.c.l.b16 %v214
  %v1903 = vunpack.c.h.b16 %v214
  %v1904 = vunpack.c.l.b16 %v215
  %v1905 = vunpack.c.h.b16 %v215
  %v1906 = vunpack.c.l.b16 %v216
  %v1907 = vunpack.c.h.b16 %v216
  %v1908 = vunpack.c.l.b16 %v217
  %v1909 = vunpack.c.h.b16 %v217
  %v1910 = vunpack.c.l.b16 %v218
  %v1911 = vunpack.c.h.b16 %v218
  %v1912 = vunpack.c.l.b16 %v219
  %v1913 = vunpack.c.h.b16 %v219
  %v1914 = vunpack.c.l.b16 %v220
  %v1915 = vunpack.c.h.b16 %v220
  %v1916 = vunpack.c.l.b16 %v221
  %v1917 = vunpack.c.h.b16 %v221
  %v1918 = vunpack.c.l.b16 %v222
  %v1919 = vunpack.c.h.b16 %v222
  %v1920 = vunpack.c.l.b16 %v223
  %v1921 = vunpack.c.h.b16 %v223
  %v1922 = vunpack.c.l.b16 %v224
  %v1923 = vunpack.c.h.b16 %v224
  %v1924 = vunpack.c.l.b16 %v225
  %v1925 = vunpack.c.h.b16 %v225
  %v1926 = vunpack.c.l.b16 %v226
  %v1927 = vunpack.c.h.b16 %v226
  %v1928 = vunpack.c.l.b16 %v227
  %v1929 = vunpack.c.h.b16 %v227
  %v1930 = vunpack.c.l.b16 %v228
  %v1931 = vunpack.c.h.b16 %v228
  %v1932 = vunpack.c.l.b16 %v229
  %v1933 = vunpack.c.h.b16 %v229
  %v1934 = vunpack.c.l.b16 %v230
  %v1935 = vunpack.c.h.b16 %v230
  %v1936 = vunpack.c.l.b16 %v231
  %v1937 = vunpack.c.h.b16 %v231
  %v1938 = vunpack.c.l.b16 %v232
  %v1939 = vunpack.c.h.b16 %v232
  %v1940 = vunpack.c.l.b16 %v233
  %v1941 = vunpack.c.h.b16 %v233
  %v1942 = vunpack.c.l.b16 %v234
  %v1943 = vunpack.c.h.b16 %v234
  %v1944 = vunpack.c.l.b16 %v235
  %v1945 = vunpack.c.h.b16 %v235
  %v1946 = vunpack.c.l.b16 %v236
  %v1947 = vunpack.c.h.b16 %v236
  %v1948 = vunpack.c.l.b16 %v237
  %v1949 = vunpack.c.h.b16 %v237
  %v1950 = vunpack.c.l.b16 %v238
  %v1951 = vunpack.c.h.b16 %v238
  %v1952 = vunpack.c.l.b16 %v239
  %v1953 = vunpack.c.h.b16 %v239
  %v1954 = vunpack.c.l.b16 %v240
  %v1955 = vunpack.c.h.b16 %v240
  %v1956 = vunpack.c.l.b16 %v241
  %v1957 = vunpack.c.h.b16 %v241
  %v1958 = vunpack.c.l.b16 %v242
  %v1959 = vunpack.c.h.b16 %v242
  %v1960 = vunpack.c.l.b16 %v243
  %v1961 = vunpack.c.h.b16 %v243
  %v1962 = vunpack.c.l.b16 %v244
  %v1963 = vunpack.c.h.b16 %v244
  %v1964 = vunpack.c.l.b16 %v245
  %v1965 = vunpack.c.h.b16 %v245
  %v1966 = vunpack.c.l.b16 %v246
  %v1967 = vunpack.c.h.b16 %v246
  %v1968 = vunpack.c.l.b16 %v247
  %v1969 = vunpack.c.h.b16 %v247
  %v1970 = vunpack.c.l.b16 %v248
  %v1971 = vunpack.c.h.b16 %v248
  %v1972 = vunpack.c.l.b16 %v249
  %v1973 = vunpack.c.h.b16 %v249
  %v1974 = vunpack.c.l.b16 %v250
  %v1975 = vunpack.c.h.b16 %v250
  %v1976 = vunpack.c.l.b16 %v251
  %v1977 = vunpack.c.h.b16 %v251
  %v1978 = vunpack.c.l.b16 %v252
  %v1979 = vunpack.c.h.b16 %v252
  %v1980 = vunpack.c.l.b16 %v253
  %v1981 = vunpack.c.h.b16 %v253
  %v1982 = vunpack.c.l.b16 %v254
  %v1983 = vunpack.c.h.b16 %v254
  %v1984 = vunpack.c.l.b16 %v255
  %v1985 = vunpack.c.h.b16 %v255
  %v1986 = vunpack.c.l.b16 %v256
  %v1987 = vunpack.c.h.b16 %v256
  %v1988 = vunpack.c.l.b16 %v257
  %v1989 = vunpack.c.h.b16 %v257
  %v1990 = vunpack.c.l.b16 %v258
  %v1991 = vunpack.c.h.b16 %v258
  %v1992 = vunpack.c.l.b16 %v259
  %v1993 = vunpack.c.h.b16 %v259
  %v1994 = vunpack.c.l.b16 %v260
  %v1995 = vunpack.c.h.b16 %v260
  %v1996 = vunpack.c.l.b16 %v261
  %v1997 = vunpack.c.h.b16 %v261
  %v1998 = vunpack.c.l.b16 %v262
  %v1999 = vunpack.c.h.b16 %v262
  %v2000 = vunpack.c.l.b16 %v263
  %v2001 = vunpack.c.h.b16 %v263
  %v2002 = vunpack.c.l.b16 %v264
  %v2003 = vunpack.c.h.b16 %v264
  %v2004 = vunpack.c.l.b16 %v265
  %v2005 = vunpack.c.h.b16 %v265
  %v2006 = vunpack.c.l.b16 %v266
  %v2007 = vunpack.c.h.b16 %v266
  %v2008 = vunpack.c.l.b16 %v267
  %v2009 = vunpack.c.h.b16 %v267
  %v2010 = vunpack.c.l.b16 %v268
  %v2011 = vunpack.c.h.b16 %v268
  %v2012 = vunpack.c.l.b16 %v269
  %v2013 = vunpack.c.h.b16 %v269
  %v2014 = vunpack.c.l.b16 %v270
  %v2015 = vunpack.c.h.b16 %v270
  %v2016 = vunpack.c.l.b16 %v271
  %v2017 = vunpack.c.h.b16 %v271
  %v2018 = vunpack.c.l.b16 %v272
  %v2019 = vunpack.c.h.b16 %v272
  %v2020 = vunpack.c.l.b16 %v273
  %v2021 = vunpack.c.h.b16 %v273
  %v2022 = vunpack.c.l.b16 %v274
  %v2023 = vunpack.c.h.b16 %v274
  %v2024 = vunpack.c.l.b16 %v275
  %v2025 = vunpack.c.h.b16 %v275
  %v2026 = vunpack.c.l.b16 %v276
  %v2027 = vunpack.c.h.b16 %v276
  %v2028 = vunpack.c.l.b16 %v277
  %v2029 = vunpack.c.h.b16 %v277
  %v2030 = vunpack.c.l.b16 %v278
  %v2031 = vunpack.c.h.b16 %v278
  %v2032 = vunpack.c.l.b16 %v279
  %v2033 = vunpack.c.h.b16 %v279
  %v2034 = vunpack.c.l.b16 %v280
  %v2035 = vunpack.c.h.b16 %v280
  %v2036 = vunpack.c.l.b16 %v281
  %v2037 = vunpack.c.h.b16 %v281
  %v2038 = vunpack.c.l.b16 %v282
  %v2039 = vunpack.c.h.b16 %v282
  %v2040 = vunpack.c.l.b16 %v283
  %v2041 = vunpack.c.h.b16 %v283
  %v2042 = vunpack.c.l.b16 %v284
  %v2043 = vunpack.c.h.b16 %v284
  %v2044 = vunpack.c.l.b16 %v285
  %v2045 = vunpack.c.h.b16 %v285
  %v2046 = vunpack.c.l.b16 %v286
  %v2047 = vunpack.c.h.b16 %v286
  %v2048 = vunpack.c.l.b16 %v287
  %v2049 = vunpack.c.h.b16 %v287
  %v2050 = vunpack.c.l.b16 %v288
  %v2051 = vunpack.c.h.b16 %v288
  %v2052 = vunpack.c.l.b16 %v289
  %v2053 = vunpack.c.h.b16 %v289
  %v2054 = vunpack.c.l.b16 %v290
  %v2055 = vunpack.c.h.b16 %v290
  %v2056 = vunpack.c.l.b16 %v291
  %v2057 = vunpack.c.h.b16 %v291
  %v2058 = vunpack.c.l.b16 %v292
  %v2059 = vunpack.c.h.b16 %v292
  %v2060 = vunpack.c.l.b16 %v293
  %v2061 = vunpack.c.h.b16 %v293
  %v2062 = vunpack.c.l.b16 %v294
  %v2063 = vunpack.c.h.b16 %v294
  %v2064 = vunpack.c.l.b16 %v295
  %v2065 = vunpack.c.h.b16 %v295
  %v2066 = vunpack.c.l.b16 %v296
  %v2067 = vunpack.c.h.b16 %v296
  %v2068 = vunpack.c.l.b16 %v297
  %v2069 = vunpack.c.h.b16 %v297
  %v2070 = vunpack.c.l.b16 %v298
  %v2071 = vunpack.c.h.b16 %v298
  %v2072 = vunpack.c.l.b16 %v299
  %v2073 = vunpack.c.h.b16 %v299
  %v2074 = vunpack.c.l.b16 %v300
  %v2075 = vunpack.c.h.b16 %v300
  %v2076 = vunpack.c.l.b16 %v301
  %v2077 = vunpack.c.h.b16 %v301
  %v2078 = vunpack.c.l.b16 %v302
  %v2079 = vunpack.c.h.b16 %v302
  %v2080 = vunpack.c.l.b16 %v303
  %v2081 = vunpack.c.h.b16 %v303
  %v2082 = vunpack.c.l.b16 %v304
  %v2083 = vunpack.c.h.b16 %v304
  %v2084 = vunpack.c.l.b16 %v305
  %v2085 = vunpack.c.h.b16 %v305
  %v2086 = vunpack.c.l.b16 %v306
  %v2087 = vunpack.c.h.b16 %v306
  %v2088 = vunpack.c.l.b16 %v307
  %v2089 = vunpack.c.h.b16 %v307
  %v2090 = vunpack.c.l.b16 %v308
  %v2091 = vunpack.c.h.b16 %v308
  %v2092 = vunpack.c.l.b16 %v309
  %v2093 = vunpack.c.h.b16 %v309
  %v2094 = vunpack.c.l.b16 %v310
  %v2095 = vunpack.c.h.b16 %v310
  %v2096 = vunpack.c.l.b16 %v311
  %v2097 = vunpack.c.h.b16 %v311
  %v2098 = vunpack.c.l.b16 %v312
  %v2099 = vunpack.c.h.b16 %v312
  %v2100 = vunpack.c.l.b16 %v313
  %v2101 = vunpack.c.h.b16 %v313
  %v2102 = vunpack.c.l.b16 %v314
  %v2103 = vunpack.c.h.b16 %v314
  %v2104 = vunpack.c.l.b16 %v315
  %v2105 = vunpack.c.h.b16 %v315
  %v2106 = vunpack.c.l.b16 %v316
  %v2107 = vunpack.c.h.b16 %v316
  %v2108 = vunpack.c.l.b16 %v317
  %v2109 = vunpack.c.h.b16 %v317
  %v2110 = vunpack.c.l.b16 %v318
  %v2111 = vunpack.c.h.b16 %v318
  %v2112 = vunpack.c.l.b16 %v319
  %v2113 = vunpack.c.h.b16 %v319
  %v2114 = vunpack.c.l.b16 %v320
  %v2115 = vunpack.c.h.b16 %v320
  %v2116 = vunpack.c.l.b16 %v321
  %v2117 = vunpack.c.h.b16 %v321
  %v2118 = vunpack.c.l.b16 %v322
  %v2119 = vunpack.c.h.b16 %v322
  %v2120 = vunpack.c.l.b16 %v323
  %v2121 = vunpack.c.h.b16 %v323
  %v2122 = vunpack.c.l.b16 %v324
  %v2123 = vunpack.c.h.b16 %v324
  %v2124 = vunpack.c.l.b16 %v325
  %v2125 = vunpack.c.h.b16 %v325
  %v2126 = vunpack.c.l.b16 %v326
  %v2127 = vunpack.c.h.b16 %v326
  %v2128 = vunpack.c.l.b16 %v327
  %v2129 = vunpack.c.h.b16 %v327
  %v2130 = vunpack.c.l.b16 %v328
  %v2131 = vunpack.c.h.b16 %v328
  %v2132 = vunpack.c.l.b16 %v329
  %v2133 = vunpack.c.h.b16 %v329
  %v2134 = vunpack.c.l.b16 %v330
  %v2135 = vunpack.c.h.b16 %v330
  %v2136 = vunpack.c.l.b16 %v331
  %v2137 = vunpack.c.h.b16 %v331
  %v2138 = vunpack.c.l.b16 %v332
  %v2139 = vunpack.c.h.b16 %v332
  %v2140 = vunpack.c.l.b16 %v333
  %v2141 = vunpack.c.h.b16 %v333
  %v2142 = vunpack.c.l.b16 %v334
  %v2143 = vunpack.c.h.b16 %v334
  %v2144 = vunpack.c.l.b16 %v335
  %v2145 = vunpack.c.h.b16 %v335
  %v2146 = vunpack.c.l.b16 %v336
  %v2147 = vunpack.c.h.b16 %v336
  %v2148 = vunpack.c.l.b16 %v337
  %v2149 = vunpack.c.h.b16 %v337
  %v2150 = vunpack.c.l.b16 %v338
  %v2151 = vunpack.c.h.b16 %v338
  %v2152 = vunpack.c.l.b16 %v339
  %v2153 = vunpack.c.h.b16 %v339
  %v2154 = vunpack.c.l.b16 %v340
  %v2155 = vunpack.c.h.b16 %v340
  %v2156 = vunpack.c.l.b16 %v341
  %v2157 = vunpack.c.h.b16 %v341
  %v2158 = vunpack.c.l.b16 %v342
  %v2159 = vunpack.c.h.b16 %v342
  %v2160 = vunpack.c.l.b16 %v343
  %v2161 = vunpack.c.h.b16 %v343
  %v2162 = vunpack.c.l.b16 %v344
  %v2163 = vunpack.c.h.b16 %v344
  %v2164 = vunpack.c.l.b16 %v345
  %v2165 = vunpack.c.h.b16 %v345
  %v2166 = vunpack.c.l.b16 %v346
  %v2167 = vunpack.c.h.b16 %v346
  %v2168 = vunpack.c.l.b16 %v347
  %v2169 = vunpack.c.h.b16 %v347
  %v2170 = vunpack.c.l.b16 %v348
  %v2171 = vunpack.c.h.b16 %v348
  %v2172 = vunpack.c.l.b16 %v349
  %v2173 = vunpack.c.h.b16 %v349
  %v2174 = vunpack.c.l.b16 %v350
  %v2175 = vunpack.c.h.b16 %v350
  %v2176 = vunpack.c.l.b16 %v351
  %v2177 = vunpack.c.h.b16 %v351
  %v2178 = vunpack.c.l.b16 %v352
  %v2179 = vunpack.c.h.b16 %v352
  %v2180 = vunpack.c.l.b16 %v353
  %v2181 = vunpack.c.h.b16 %v353
  %v2182 = vunpack.c.l.b16 %v354
  %v2183 = vunpack.c.h.b16 %v354
  %v2184 = vunpack.c.l.b16 %v355
  %v2185 = vunpack.c.h.b16 %v355
  %v2186 = vunpack.c.l.b16 %v356
  %v2187 = vunpack.c.h.b16 %v356
  %v2188 = vunpack.c.l.b16 %v357
  %v2189 = vunpack.c.h.b16 %v357
  %v2190 = vunpack.c.l.b16 %v358
  %v2191 = vunpack.c.h.b16 %v358
  %v2192 = vunpack.c.l.b16 %v359
  %v2193 = vunpack.c.h.b16 %v359
  %v2194 = vunpack.c.l.b16 %v360
  %v2195 = vunpack.c.h.b16 %v360
  %v2196 = vunpack.c.l.b16 %v361
  %v2197 = vunpack.c.h.b16 %v361
  %v2198 = vunpack.c.l.b16 %v362
  %v2199 = vunpack.c.h.b16 %v362
  %v2200 = vunpack.c.l.b16 %v363
  %v2201 = vunpack.c.h.b16 %v363
  %v2202 = vunpack.c.l.b16 %v364
  %v2203 = vunpack.c.h.b16 %v364
  %v2204 = vunpack.c.l.b16 %v365
  %v2205 = vunpack.c.h.b16 %v365
  %v2206 = vunpack.c.l.b16 %v366
  %v2207 = vunpack.c.h.b16 %v366
  %v2208 = vunpack.c.l.b16 %v367
  %v2209 = vunpack.c.h.b16 %v367
  %v2210 = vunpack.c.l.b16 %v368
  %v2211 = vunpack.c.h.b16 %v368
  %v2212 = vunpack.c.l.b16 %v369
  %v2213 = vunpack.c.h.b16 %v369
  %v2214 = vunpack.c.l.b16 %v370
  %v2215 = vunpack.c.h.b16 %v370
  %v2216 = vunpack.c.l.b16 %v371
  %v2217 = vunpack.c.h.b16 %v371
  %v2218 = vunpack.c.l.b16 %v372
  %v2219 = vunpack.c.h.b16 %v372
  %v2220 = vunpack.c.l.b16 %v373
  %v2221 = vunpack.c.h.b16 %v373
  %v2222 = vunpack.c.l.b16 %v374
  %v2223 = vunpack.c.h.b16 %v374
  %v2224 = vunpack.c.l.b16 %v375
  %v2225 = vunpack.c.h.b16 %v375
  %v2226 = vunpack.c.l.b16 %v376
  %v2227 = vunpack.c.h.b16 %v376
  %v2228 = vunpack.c.l.b16 %v377
  %v2229 = vunpack.c.h.b16 %v377
  %v2230 = vunpack.c.l.b16 %v378
  %v2231 = vunpack.c.h.b16 %v378
  %v2232 = vunpack.c.l.b16 %v379
  %v2233 = vunpack.c.h.b16 %v379
  %v2234 = vunpack.c.l.b16 %v380
  %v2235 = vunpack.c.h.b16 %v380
  %v2236 = vunpack.c.l.b16 %v381
  %v2237 = vunpack.c.h.b16 %v381
  %v2238 = vunpack.c.l.b16 %v382
  %v2239 = vunpack.c.h.b16 %v382
  %v2240 = vunpack.c.l.b16 %v383
  %v2241 = vunpack.c.h.b16 %v383
  %v2242 = vunpack.c.l.b16 %v384
  %v2243 = vunpack.c.h.b16 %v384
  %v2244 = vunpack.c.l.b16 %v385
  %v2245 = vunpack.c.h.b16 %v385
  %v2246 = vunpack.c.l.b16 %v386
  %v2247 = vunpack.c.h.b16 %v386
  %v2248 = vunpack.c.l.b16 %v387
  %v2249 = vunpack.c.h.b16 %v387
  %v2250 = vunpack.c.l.b16 %v388
  %v2251 = vunpack.c.h.b16 %v388
  %v2252 = vunpack.c.l.b16 %v389
  %v2253 = vunpack.c.h.b16 %v389
  %v2254 = vunpack.c.l.b16 %v390
  %v2255 = vunpack.c.h.b16 %v390
  %v2256 = vunpack.c.l.b16 %v391
  %v2257 = vunpack.c.h.b16 %v391
  %v2258 = vunpack.c.l.b16 %v392
  %v2259 = vunpack.c.h.b16 %v392
  %v2260 = vunpack.c.l.b16 %v393
  %v2261 = vunpack.c.h.b16 %v393
  %v2262 = vunpack.c.l.b16 %v394
  %v2263 = vunpack.c.h.b16 %v394
  %v2264 = vunpack.c.l.b16 %v395
  %v2265 = vunpack.c.h.b16 %v395
  %v2266 = vunpack.c.l.b16 %v396
  %v2267 = vunpack.c.h.b16 %v396
  %v2268 = vunpack.c.l.b16 %v397
  %v2269 = vunpack.c.h.b16 %v397
  %v2270 = vunpack.c.l.b16 %v398
  %v2271 = vunpack.c.h.b16 %v398
  %v2272 = vunpack.c.l.b16 %v399
  %v2273 = vunpack.c.h.b16 %v399
  %v2274 = vunpack.c.l.b16 %v400
  %v2275 = vunpack.c.h.b16 %v400
  %v2276 = vunpack.c.l.b16 %v401
  %v2277 = vunpack.c.h.b16 %v401
  %v2278 = vunpack.c.l.b16 %v402
  %v2279 = vunpack.c.h.b16 %v402
  %v2280 = vunpack.c.l.b16 %v403
  %v2281 = vunpack.c.h.b16 %v403
  %v2282 = vunpack.c.l.b16 %v404
  %v2283 = vunpack.c.h.b16 %v404
  %v2284 = vunpack.c.l.b16 %v405
  %v2285 = vunpack.c.h.b16 %v405
  %v2286 = vunpack.c.l.b16 %v406
  %v2287 = vunpack.c.h.b16 %v406
  %v2288 = vunpack.c.l.b16 %v407
  %v2289 = vunpack.c.h.b16 %v407
  %v2290 = vunpack.c.l.b16 %v408
  %v2291 = vunpack.c.h.b16 %v408
  %v2292 = vunpack.c.l.b16 %v409
  %v2293 = vunpack.c.h.b16 %v409
  %v2294 = vunpack.c.l.b16 %v410
  %v2295 = vunpack.c.h.b16 %v410
  %v2296 = vunpack.c.l.b16 %v411
  %v2297 = vunpack.c.h.b16 %v411
  %v2298 = vunpack.c.l.b16 %v412
  %v2299 = vunpack.c.h.b16 %v412
  %v2300 = vunpack.c.l.b16 %v413
  %v2301 = vunpack.c.h.b16 %v413
  %v2302 = vunpack.c.l.b16 %v414
  %v2303 = vunpack.c.h.b16 %v414
  %v2304 = vunpack.c.l.b16 %v415
  %v2305 = vunpack.c.h.b16 %v415
  %v2306 = vunpack.c.l.b16 %v416
  %v2307 = vunpack.c.h.b16 %v416
  %v2308 = vunpack.c.l.b16 %v417
  %v2309 = vunpack.c.h.b16 %v417
  %v2310 = vunpack.c.l.b16 %v418
  %v2311 = vunpack.c.h.b16 %v418
  %v2312 = vunpack.c.l.b16 %v419
  %v2313 = vunpack.c.h.b16 %v419
  %v2314 = vunpack.c.l.b16 %v420
  %v2315 = vunpack.c.h.b16 %v420
  %v2316 = vunpack.c.l.b16 %v421
  %v2317 = vunpack.c.h.b16 %v421
  %v2318 = vunpack.c.l.b16 %v422
  %v2319 = vunpack.c.h.b16 %v422
  %v2320 = vunpack.c.l.b16 %v423
  %v2321 = vunpack.c.h.b16 %v423
  %v2322 = vunpack.c.l.b16 %v424
  %v2323 = vunpack.c.h.b16 %v424
  %v2324 = vunpack.c.l.b16 %v425
  %v2325 = vunpack.c.h.b16 %v425
  %v2326 = vunpack.c.l.b16 %v426
  %v2327 = vunpack.c.h.b16 %v426
  %v2328 = vunpack.c.l.b16 %v427
  %v2329 = vunpack.c.h.b16 %v427
  %v2330 = vunpack.c.l.b16 %v428
  %v2331 = vunpack.c.h.b16 %v428
  %v2332 = vunpack.c.l.b16 %v429
  %v2333 = vunpack.c.h.b16 %v429
  %v2334 = vunpack.c.l.b16 %v430
  %v2335 = vunpack.c.h.b16 %v430
  %v2336 = vunpack.c.l.b16 %v431
  %v2337 = vunpack.c.h.b16 %v431
  %v2338 = vunpack.c.l.b16 %v432
  %v2339 = vunpack.c.h.b16 %v432
  %v2340 = vunpack.c.l.b16 %v433
  %v2341 = vunpack.c.h.b16 %v433
  %v2342 = vunpack.c.l.b16 %v434
  %v2343 = vunpack.c.h.b16 %v434
  %v2344 = vunpack.c.l.b16 %v435
  %v2345 = vunpack.c.h.b16 %v435
  %v2346 = vunpack.c.l.b16 %v436
  %v2347 = vunpack.c.h.b16 %v436
  %v2348 = vunpack.c.l.b16 %v437
  %v2349 = vunpack.c.h.b16 %v437
  %v2350 = vunpack.c.l.b16 %v438
  %v2351 = vunpack.c.h.b16 %v438
  %v2352 = vunpack.c.l.b16 %v439
  %v2353 = vunpack.c.h.b16 %v439
  %v2354 = vunpack.c.l.b16 %v440
  %v2355 = vunpack.c.h.b16 %v440
  %v2356 = vunpack.c.l.b16 %v441
  %v2357 = vunpack.c.h.b16 %v441
  %v2358 = vunpack.c.l.b16 %v442
  %v2359 = vunpack.c.h.b16 %v442
  %v2360 = vunpack.c.l.b16 %v443
  %v2361 = vunpack.c.h.b16 %v443
  %v2362 = vunpack.c.l.b16 %v444
  %v2363 = vunpack.c.h.b16 %v444
  %v2364 = vunpack.c.l.b16 %v445
  %v2365 = vunpack.c.h.b16 %v445
  %v2366 = vunpack.c.l.b16 %v446
  %v2367 = vunpack.c.h.b16 %v446
  %v2368 = vunpack.c.l.b16 %v447
  %v2369 = vunpack.c.h.b16 %v447
  %v2370 = vunpack.c.l.b16 %v448
  %v2371 = vunpack.c.h.b16 %v448
  %v2372 = vunpack.c.l.b16 %v449
  %v2373 = vunpack.c.h.b16 %v449
  %v2374 = vunpack.c.l.b16 %v450
  %v2375 = vunpack.c.h.b16 %v450
  %v2376 = vunpack.c.l.b16 %v451
  %v2377 = vunpack.c.h.b16 %v451
  %v2378 = vunpack.c.l.b16 %v452
  %v2379 = vunpack.c.h.b16 %v452
  %v2380 = vunpack.c.l.b16 %v453
  %v2381 = vunpack.c.h.b16 %v453
  %v2382 = vunpack.c.l.b16 %v454
  %v2383 = vunpack.c.h.b16 %v454
  %v2384 = vunpack.c.l.b16 %v455
  %v2385 = vunpack.c.h.b16 %v455
  %v2386 = vunpack.c.l.b16 %v456
  %v2387 = vunpack.c.h.b16 %v456
  %v2388 = vunpack.c.l.b16 %v457
  %v2389 = vunpack.c.h.b16 %v457
  %v2390 = vunpack.c.l.b16 %v458
  %v2391 = vunpack.c.h.b16 %v458
  %v2392 = vunpack.c.l.b16 %v459
  %v2393 = vunpack.c.h.b16 %v459
  %v2394 = vunpack.c.l.b16 %v460
  %v2395 = vunpack.c.h.b16 %v460
  %v2396 = vunpack.c.l.b16 %v461
  %v2397 = vunpack.c.h.b16 %v461
  %v2398 = vunpack.c.l.b16 %v462
  %v2399 = vunpack.c.h.b16 %v462
  %v2400 = vunpack.c.l.b16 %v463
  %v2401 = vunpack.c.h.b16 %v463
  %v2402 = vunpack.c.l.b16 %v464
  %v2403 = vunpack.c.h.b16 %v464
  %v2404 = vunpack.c.l.b16 %v465
  %v2405 = vunpack.c.h.b16 %v465
  %v2406 = vunpack.c.l.b16 %v466
  %v2407 = vunpack.c.h.b16 %v466
  %v2408 = vunpack.c.l.b16 %v467
  %v2409 = vunpack.c.h.b16 %v467
  %v2410 = vunpack.c.l.b16 %v468
  %v2411 = vunpack.c.h.b16 %v468
  %v2412 = vunpack.c.l.b16 %v469
  %v2413 = vunpack.c.h.b16 %v469
  %v2414 = vunpack.c.l.b16 %v470
  %v2415 = vunpack.c.h.b16 %v470
  %v2416 = vunpack.c.l.b16 %v471
  %v2417 = vunpack.c.h.b16 %v471
  %v2418 = vunpack.c.l.b16 %v472
  %v2419 = vunpack.c.h.b16 %v472
  %v2420 = vunpack.c.l.b16 %v473
  %v2421 = vunpack.c.h.b16 %v473
  %v2422 = vunpack.c.l.b16 %v474
  %v2423 = vunpack.c.h.b16 %v474
  %v2424 = vunpack.c.l.b16 %v475
  %v2425 = vunpack.c.h.b16 %v475
  %v2426 = vunpack.c.l.b16 %v476
  %v2427 = vunpack.c.h.b16 %v476
  %v2428 = vunpack.c.l.b16 %v477
  %v2429 = vunpack.c.h.b16 %v477
  %v2430 = vunpack.c.l.b16 %v478
  %v2431 = vunpack.c.h.b16 %v478
  %v2432 = vunpack.c.l.b16 %v479
  %v2433 = vunpack.c.h.b16 %v479
  %v2434 = vunpack.c.l.b16 %v480
  %v2435 = vunpack.c.h.b16 %v480
  %v2436 = vunpack.c.l.b16 %v481
  %v2437 = vunpack.c.h.b16 %v481
  %v2438 = vunpack.c.l.b16 %v482
  %v2439 = vunpack.c.h.b16 %v482
  %v2440 = vunpack.c.l.b16 %v483
  %v2441 = vunpack.c.h.b16 %v483
  %v2442 = vunpack.c.l.b16 %v484
  %v2443 = vunpack.c.h.b16 %v484
  %v2444 = vunpack.c.l.b16 %v485
  %v2445 = vunpack.c.h.b16 %v485
  %v2446 = vunpack.c.l.b16 %v486
  %v2447 = vunpack.c.h.b16 %v486
  %v2448 = vunpack.c.l.b16 %v487
  %v2449 = vunpack.c.h.b16 %v487
  %v2450 = vunpack.c.l.b16 %v488
  %v2451 = vunpack.c.h.b16 %v488
  %v2452 = vunpack.c.l.b16 %v489
  %v2453 = vunpack.c.h.b16 %v489
  %v2454 = vunpack.c.l.b16 %v490
  %v2455 = vunpack.c.h.b16 %v490
  %v2456 = vunpack.c.l.b16 %v491
  %v2457 = vunpack.c.h.b16 %v491
  %v2458 = vunpack.c.l.b16 %v492
  %v2459 = vunpack.c.h.b16 %v492
  %v2460 = vunpack.c.l.b16 %v493
  %v2461 = vunpack.c.h.b16 %v493
  %v2462 = vunpack.c.l.b16 %v494
  %v2463 = vunpack.c.h.b16 %v494
  %v2464 = vunpack.c.l.b16 %v495
  %v2465 = vunpack.c.h.b16 %v495
  %v2466 = vunpack.c.l.b16 %v496
  %v2467 = vunpack.c.h.b16 %v496
  %v2468 = vunpack.c.l.b16 %v497
  %v2469 = vunpack.c.h.b16 %v497
  %v2470 = vunpack.c.l.b16 %v498
  %v2471 = vunpack.c.h.b16 %v498
  %v2472 = vunpack.c.l.b16 %v499
  %v2473 = vunpack.c.h.b16 %v499
  %v2474 = vunpack.c.l.b16 %v500
  %v2475 = vunpack.c.h.b16 %v500
  %v2476 = vunpack.c.l.b16 %v501
  %v2477 = vunpack.c.h.b16 %v501
  %v2478 = vunpack.c.l.b16 %v502
  %v2479 = vunpack.c.h.b16 %v502
  %v2480 = vunpack.c.l.b16 %v503
  %v2481 = vunpack.c.h.b16 %v503
  %v2482 = vunpack.c.l.b16 %v504
  %v2483 = vunpack.c.h.b16 %v504
  %v2484 = vunpack.c.l.b16 %v505
  %v2485 = vunpack.c.h.b16 %v505
  %v2486 = vunpack.c.l.b16 %v506
  %v2487 = vunpack.c.h.b16 %v506
  %v2488 = vunpack.c.l.b16 %v507
  %v2489 = vunpack.c.h.b16 %v507
  %v2490 = vunpack.c.l.b16 %v508
  %v2491 = vunpack.c.h.b16 %v508
  %v2492 = vunpack.c.l.b16 %v509
  %v2493 = vunpack.c.h.b16 %v509
  %v2494 = vunpack.c.l.b16 %v510
  %v2495 = vunpack.c.h.b16 %v510
  %v2496 = vunpack.c.l.b16 %v511
  %v2497 = vunpack.c.h.b16 %v511
  %v2498 = vunpack.c.l.b16 %v512
  %v2499 = vunpack.c.h.b16 %v512
  %v2500 = vunpack.c.l.b16 %v513
  %v2501 = vunpack.c.h.b16 %v513
  %v2502 = vunpack.c.l.b16 %v514
  %v2503 = vunpack.c.h.b16 %v514
  %v2504 = vunpack.c.l.b16 %v515
  %v2505 = vunpack.c.h.b16 %v515
  %v2506 = vunpack.c.l.b16 %v516
  %v2507 = vunpack.c.h.b16 %v516
  %v2508 = vunpack.c.l.b16 %v517
  %v2509 = vunpack.c.h.b16 %v517
  %v2510 = vunpack.c.l.b16 %v518
  %v2511 = vunpack.c.h.b16 %v518
  %v2512 = vunpack.c.l.b16 %v519
  %v2513 = vunpack.c.h.b16 %v519
  %v2514 = vunpack.c.l.b16 %v520
  %v2515 = vunpack.c.h.b16 %v520
  %v2516 = vunpack.c.l.b16 %v521
  %v2517 = vunpack.c.h.b16 %v521
  %v2518 = vunpack.c.l.b16 %v522
  %v2519 = vunpack.c.h.b16 %v522
  %v2520 = vunpack.c.l.b16 %v523
  %v2521 = vunpack.c.h.b16 %v523
  %v2522 = vunpack.c.l.b16 %v524
  %v2523 = vunpack.c.h.b16 %v524
  %v2524 = vunpack.c.l.b16 %v525
  %v2525 = vunpack.c.h.b16 %v525
  %v2526 = vunpack.c.l.b16 %v526
  %v2527 = vunpack.c.h.b16 %v526
  %v2528 = vunpack.c.l.b16 %v527
  %v2529 = vunpack.c.h.b16 %v527
  %v2530 = vunpack.c.l.b16 %v528
  %v2531 = vunpack.c.h.b16 %v528
  %v2532 = vunpack.c.l.b16 %v529
  %v2533 = vunpack.c.h.b16 %v529
  %v2534 = vunpack.c.l.b16 %v530
  %v2535 = vunpack.c.h.b16 %v530
  %v2536 = vunpack.c.l.b16 %v531
  %v2537 = vunpack.c.h.b16 %v531
  %v2538 = vunpack.c.l.b16 %v532
  %v2539 = vunpack.c.h.b16 %v532
  %v2540 = vunpack.c.l.b16 %v533
  %v2541 = vunpack.c.h.b16 %v533
  %v2542 = vunpack.c.l.b16 %v534
  %v2543 = vunpack.c.h.b16 %v534
  %v2544 = vunpack.c.l.b16 %v535
  %v2545 = vunpack.c.h.b16 %v535
  %v2546 = vunpack.c.l.b16 %v536
  %v2547 = vunpack.c.h.b16 %v536
  %v2548 = vunpack.c.l.b16 %v537
  %v2549 = vunpack.c.h.b16 %v537
  %v2550 = vunpack.c.l.b16 %v538
  %v2551 = vunpack.c.h.b16 %v538
  %v2552 = vunpack.c.l.b16 %v539
  %v2553 = vunpack.c.h.b16 %v539
  %v2554 = vunpack.c.l.b16 %v540
  %v2555 = vunpack.c.h.b16 %v540
  %v2556 = vunpack.c.l.b16 %v541
  %v2557 = vunpack.c.h.b16 %v541
  %v2558 = vunpack.c.l.b16 %v542
  %v2559 = vunpack.c.h.b16 %v542
  %v2560 = vunpack.c.l.b16 %v543
  %v2561 = vunpack.c.h.b16 %v543
  %v2562 = vunpack.c.l.b16 %v544
  %v2563 = vunpack.c.h.b16 %v544
  %v2564 = vunpack.c.l.b16 %v545
  %v2565 = vunpack.c.h.b16 %v545
  %v2566 = vunpack.c.l.b16 %v546
  %v2567 = vunpack.c.h.b16 %v546
  %v2568 = vunpack.c.l.b16 %v547
  %v2569 = vunpack.c.h.b16 %v547
  %v2570 = vunpack.c.l.b16 %v548
  %v2571 = vunpack.c.h.b16 %v548
  %v2572 = vunpack.c.l.b16 %v549
  %v2573 = vunpack.c.h.b16 %v549
  %v2574 = vunpack.c.l.b16 %v550
  %v2575 = vunpack.c.h.b16 %v550
  %v2576 = vunpack.c.l.b16 %v551
  %v2577 = vunpack.c.h.b16 %v551
  %v2578 = vunpack.c.l.b16 %v552
  %v2579 = vunpack.c.h.b16 %v552
  %v2580 = vunpack.c.l.b16 %v553
  %v2581 = vunpack.c.h.b16 %v553
  %v2582 = vunpack.c.l.b16 %v554
  %v2583 = vunpack.c.h.b16 %v554
  %v2584 = vunpack.c.l.b16 %v555
  %v2585 = vunpack.c.h.b16 %v555
  %v2586 = vunpack.c.l.b16 %v556
  %v2587 = vunpack.c.h.b16 %v556
  %v2588 = vunpack.c.l.b16 %v557
  %v2589 = vunpack.c.h.b16 %v557
  %v2590 = vunpack.c.l.b16 %v558
  %v2591 = vunpack.c.h.b16 %v558
  %v2592 = vunpack.c.l.b16 %v559
  %v2593 = vunpack.c.h.b16 %v559
  %v2594 = vunpack.c.l.b16 %v560
  %v2595 = vunpack.c.h.b16 %v560
  %v2596 = vunpack.c.l.b16 %v561
  %v2597 = vunpack.c.h.b16 %v561
  %v2598 = vunpack.c.l.b16 %v562
  %v2599 = vunpack.c.h.b16 %v562
  %v2600 = vunpack.c.l.b16 %v563
  %v2601 = vunpack.c.h.b16 %v563
  %v2602 = vunpack.c.l.b16 %v564
  %v2603 = vunpack.c.h.b16 %v564
  %v2604 = vunpack.c.l.b16 %v565
  %v2605 = vunpack.c.h.b16 %v565
  %v2606 = vunpack.c.l.b16 %v566
  %v2607 = vunpack.c.h.b16 %v566
  %v2608 = vunpack.c.l.b16 %v567
  %v2609 = vunpack.c.h.b16 %v567
  %v2610 = vunpack.c.l.b16 %v568
  %v2611 = vunpack.c.h.b16 %v568
  %v2612 = vunpack.c.l.b16 %v569
  %v2613 = vunpack.c.h.b16 %v569
  %v2614 = vunpack.c.l.b16 %v570
  %v2615 = vunpack.c.h.b16 %v570
  %v2616 = vunpack.c.l.b16 %v571
  %v2617 = vunpack.c.h.b16 %v571
  %v2618 = vunpack.c.l.b16 %v572
  %v2619 = vunpack.c.h.b16 %v572
  %v2620 = vunpack.c.l.b16 %v573
  %v2621 = vunpack.c.h.b16 %v573
  %v2622 = vunpack.c.l.b16 %v574
  %v2623 = vunpack.c.h.b16 %v574
  %v2624 = vunpack.c.l.b16 %v575
  %v2625 = vunpack.c.h.b16 %v575
  %v2626 = vunpack.c.l.b16 %v576
  %v2627 = vunpack.c.h.b16 %v576
  %v2628 = vunpack.c.l.b16 %v577
  %v2629 = vunpack.c.h.b16 %v577
  %v2630 = vunpack.c.l.b16 %v578
  %v2631 = vunpack.c.h.b16 %v578
  %v2632 = vunpack.c.l.b16 %v579
  %v2633 = vunpack.c.h.b16 %v579
  %v2634 = vunpack.c.l.b16 %v580
  %v2635 = vunpack.c.h.b16 %v580
  %v2636 = vunpack.c.l.b16 %v581
  %v2637 = vunpack.c.h.b16 %v581
  %v2638 = vunpack.c.l.b16 %v582
  %v2639 = vunpack.c.h.b16 %v582
  %v2640 = vunpack.c.l.b16 %v583
  %v2641 = vunpack.c.h.b16 %v583
  %v2642 = vunpack.c.l.b16 %v584
  %v2643 = vunpack.c.h.b16 %v584
  %v2644 = vunpack.c.l.b16 %v585
  %v2645 = vunpack.c.h.b16 %v585
  %v2646 = vunpack.c.l.b16 %v586
  %v2647 = vunpack.c.h.b16 %v586
  %v2648 = vunpack.c.l.b16 %v587
  %v2649 = vunpack.c.h.b16 %v587
  %v2650 = vunpack.c.l.b16 %v588
  %v2651 = vunpack.c.h.b16 %v588
  %v2652 = vunpack.c.l.b16 %v589
  %v2653 = vunpack.c.h.b16 %v589
  %v2654 = vunpack.c.l.b16 %v590
  %v2655 = vunpack.c.h.b16 %v590
  %v2656 = vunpack.c.l.b16 %v591
  %v2657 = vunpack.c.h.b16 %v591
  %v2658 = vunpack.c.l.b16 %v592
  %v2659 = vunpack.c.h.b16 %v592
  %v2660 = vunpack.c.l.b16 %v593
  %v2661 = vunpack.c.h.b16 %v593
  %v2662 = vunpack.c.l.b16 %v594
  %v2663 = vunpack.c.h.b16 %v594
  %v2664 = vunpack.c.l.b16 %v595
  %v2665 = vunpack.c.h.b16 %v595
  %v2666 = vunpack.c.l.b16 %v596
  %v2667 = vunpack.c.h.b16 %v596
  %v2668 = vunpack.c.l.b16 %v597
  %v2669 = vunpack.c.h.b16 %v597
  %v2670 = vunpack.c.l.b16 %v598
  %v2671 = vunpack.c.h.b16 %v598
  %v2672 = vunpack.c.l.b16 %v599
  %v2673 = vunpack.c.h.b16 %v599
  %v2674 = vunpack.c.l.b16 %v600
  %v2675 = vunpack.c.h.b16 %v600
  %v2676 = vunpack.c.l.b16 %v601
  %v2677 = vunpack.c.h.b16 %v601
  %v2678 = vunpack.c.l.b16 %v602
  %v2679 = vunpack.c.h.b16 %v602
  %v2680 = vunpack.c.l.b16 %v603
  %v2681 = vunpack.c.h.b16 %v603
  %v2682 = vunpack.c.l.b16 %v604
  %v2683 = vunpack.c.h.b16 %v604
  %v2684 = vunpack.c.l.b16 %v605
  %v2685 = vunpack.c.h.b16 %v605
  %v2686 = vunpack.c.l.b16 %v606
  %v2687 = vunpack.c.h.b16 %v606
  %v2688 = vunpack.c.l.b16 %v607
  %v2689 = vunpack.c.h.b16 %v607
  %v2690 = vunpack.c.l.b16 %v608
  %v2691 = vunpack.c.h.b16 %v608
  %v2692 = vunpack.c.l.b16 %v609
  %v2693 = vunpack.c.h.b16 %v609
  %v2694 = vunpack.c.l.b16 %v610
  %v2695 = vunpack.c.h.b16 %v610
  %v2696 = vunpack.c.l.b16 %v611
  %v2697 = vunpack.c.h.b16 %v611
  %v2698 = vunpack.c.l.b16 %v612
  %v2699 = vunpack.c.h.b16 %v612
  %v2700 = vunpack.c.l.b16 %v613
  %v2701 = vunpack.c.h.b16 %v613
  %v2702 = vunpack.c.l.b16 %v614
  %v2703 = vunpack.c.h.b16 %v614
  %v2704 = vunpack.c.l.b16 %v615
  %v2705 = vunpack.c.h.b16 %v615
  %v2706 = vunpack.c.l.b16 %v616
  %v2707 = vunpack.c.h.b16 %v616
  %v2708 = vunpack.c.l.b16 %v617
  %v2709 = vunpack.c.h.b16 %v617
  %v2710 = vunpack.c.l.b16 %v618
  %v2711 = vunpack.c.h.b16 %v618
  %v2712 = vunpack.c.l.b16 %v619
  %v2713 = vunpack.c.h.b16 %v619
  %v2714 = vunpack.c.l.b16 %v620
  %v2715 = vunpack.c.h.b16 %v620
  %v2716 = vunpack.c.l.b16 %v621
  %v2717 = vunpack.c.h.b16 %v621
  %v2718 = vunpack.c.l.b16 %v622
  %v2719 = vunpack.c.h.b16 %v622
  %v2720 = vunpack.c.l.b16 %v623
  %v2721 = vunpack.c.h.b16 %v623
  %v2722 = vunpack.c.l.b16 %v624
  %v2723 = vunpack.c.h.b16 %v624
  %v2724 = vunpack.c.l.b16 %v625
  %v2725 = vunpack.c.h.b16 %v625
  %v2726 = vunpack.c.l.b16 %v626
  %v2727 = vunpack.c.h.b16 %v626
  %v2728 = vunpack.c.l.b16 %v627
  %v2729 = vunpack.c.h.b16 %v627
  %v2730 = vunpack.c.l.b16 %v628
  %v2731 = vunpack.c.h.b16 %v628
  %v2732 = vunpack.c.l.b16 %v629
  %v2733 = vunpack.c.h.b16 %v629
  %v2734 = vunpack.c.l.b16 %v630
  %v2735 = vunpack.c.h.b16 %v630
  %v2736 = vunpack.c.l.b16 %v631
  %v2737 = vunpack.c.h.b16 %v631
  %v2738 = vunpack.c.l.b16 %v632
  %v2739 = vunpack.c.h.b16 %v632
  %v2740 = vunpack.c.l.b16 %v633
  %v2741 = vunpack.c.h.b16 %v633
  %v2742 = vunpack.c.l.b16 %v634
  %v2743 = vunpack.c.h.b16 %v634
  %v2744 = vunpack.c.l.b16 %v635
  %v2745 = vunpack.c.h.b16 %v635
  %v2746 = vunpack.c.l.b16 %v636
  %v2747 = vunpack.c.h.b16 %v636
  %v2748 = vunpack.c.l.b16 %v637
  %v2749 = vunpack.c.h.b16 %v637
  %v2750 = vunpack.c.l.b16 %v638
  %v2751 = vunpack.c.h.b16 %v638
  %v2752 = vunpack.c.l.b16 %v639
  %v2753 = vunpack.c.h.b16 %v639
  %v2754 = vunpack.c.l.b16 %v640
  %v2755 = vunpack.c.h.b16 %v640
  %v2756 = vunpack.c.l.b16 %v641
  %v2757 = vunpack.c.h.b16 %v641
  %v2758 = vunpack.c.l.b16 %v642
  %v2759 = vunpack.c.h.b16 %v642
  %v2760 = vunpack.c.l.b16 %v643
  %v2761 = vunpack.c.h.b16 %v643
  %v2762 = vunpack.c.l.b16 %v644
  %v2763 = vunpack.c.h.b16 %v644
  %v2764 = vunpack.c.l.b16 %v645
  %v2765 = vunpack.c.h.b16 %v645
  %v2766 = vunpack.c.l.b16 %v646
  %v2767 = vunpack.c.h.b16 %v646
  %v2768 = vunpack.c.l.b16 %v647
  %v2769 = vunpack.c.h.b16 %v647
  %v2770 = vunpack.c.l.b16 %v648
  %v2771 = vunpack.c.h.b16 %v648
  %v2772 = vunpack.c.l.b16 %v649
  %v2773 = vunpack.c.h.b16 %v649
  %v2774 = vunpack.c.l.b16 %v650
  %v2775 = vunpack.c.h.b16 %v650
  %v2776 = vunpack.c.l.b16 %v651
  %v2777 = vunpack.c.h.b16 %v651
  %v2778 = vunpack.c.l.b16 %v652
  %v2779 = vunpack.c.h.b16 %v652
  %v2780 = vunpack.c.l.b16 %v653
  %v2781 = vunpack.c.h.b16 %v653
  %v2782 = vunpack.c.l.b16 %v654
  %v2783 = vunpack.c.h.b16 %v654
  %v2784 = vunpack.c.l.b16 %v655
  %v2785 = vunpack.c.h.b16 %v655
  %v2786 = vunpack.c.l.b16 %v656
  %v2787 = vunpack.c.h.b16 %v656
  %v2788 = vunpack.c.l.b16 %v657
  %v2789 = vunpack.c.h.b16 %v657
  %v2790 = vunpack.c.l.b16 %v658
  %v2791 = vunpack.c.h.b16 %v658
  %v2792 = vunpack.c.l.b16 %v659
  %v2793 = vunpack.c.h.b16 %v659
  %v2794 = vunpack.c.l.b16 %v660
  %v2795 = vunpack.c.h.b16 %v660
  %v2796 = vunpack.c.l.b16 %v661
  %v2797 = vunpack.c.h.b16 %v661
  %v2798 = vunpack.c.l.b16 %v662
  %v2799 = vunpack.c.h.b16 %v662
  %v2800 = vunpack.c.l.b16 %v663
  %v2801 = vunpack.c.h.b16 %v663
  %v2802 = vunpack.c.l.b16 %v664
  %v2803 = vunpack.c.h.b16 %v664
  %v2804 = vunpack.c.l.b16 %v665
  %v2805 = vunpack.c.h.b16 %v665
  %v2806 = vunpack.c.l.b16 %v666
  %v2807 = vunpack.c.h.b16 %v666
  %v2808 = vunpack.c.l.b16 %v667
  %v2809 = vunpack.c.h.b16 %v667
  %v2810 = vunpack.c.l.b16 %v668
  %v2811 = vunpack.c.h.b16 %v668
  %v2812 = vunpack.c.l.b16 %v669
  %v2813 = vunpack.c.h.b16 %v669
  %v2814 = vunpack.c.l.b16 %v670
  %v2815 = vunpack.c.h.b16 %v670
  %v2816 = vunpack.c.l.b16 %v671
  %v2817 = vunpack.c.h.b16 %v671
  %v2818 = vunpack.c.l.b16 %v672
  %v2819 = vunpack.c.h.b16 %v672
  %v2820 = vunpack.c.l.b16 %v673
  %v2821 = vunpack.c.h.b16 %v673
  %v2822 = vunpack.c.l.b16 %v674
  %v2823 = vunpack.c.h.b16 %v674
  %v2824 = vunpack.c.l.b16 %v675
  %v2825 = vunpack.c.h.b16 %v675
  %v2826 = vunpack.c.l.b16 %v676
  %v2827 = vunpack.c.h.b16 %v676
  %v2828 = vunpack.c.l.b16 %v677
  %v2829 = vunpack.c.h.b16 %v677
  %v2830 = vunpack.c.l.b16 %v678
  %v2831 = vunpack.c.h.b16 %v678
  %v2832 = vunpack.c.l.b16 %v679
  %v2833 = vunpack.c.h.b16 %v679
  %v2834 = vunpack.c.l.b16 %v680
  %v2835 = vunpack.c.h.b16 %v680
  %v2836 = vunpack.c.l.b16 %v681
  %v2837 = vunpack.c.h.b16 %v681
  %v2838 = vunpack.c.l.b16 %v682
  %v2839 = vunpack.c.h.b16 %v682
  %v2840 = vunpack.c.l.b16 %v683
  %v2841 = vunpack.c.h.b16 %v683
  %v2842 = vunpack.c.l.b16 %v684
  %v2843 = vunpack.c.h.b16 %v684
  %v2844 = vunpack.c.l.b16 %v685
  %v2845 = vunpack.c.h.b16 %v685
  %v2846 = vunpack.c.l.b16 %v686
  %v2847 = vunpack.c.h.b16 %v686
  %v2848 = vunpack.c.l.b16 %v687
  %v2849 = vunpack.c.h.b16 %v687
  %v2850 = vunpack.c.l.b16 %v688
  %v2851 = vunpack.c.h.b16 %v688
  %v2852 = vunpack.c.l.b16 %v689
  %v2853 = vunpack.c.h.b16 %v689
  %v2854 = vunpack.c.l.b16 %v690
  %v2855 = vunpack.c.h.b16 %v690
  %v2856 = vunpack.c.l.b16 %v691
  %v2857 = vunpack.c.h.b16 %v691
  %v2858 = vunpack.c.l.b16 %v692
  %v2859 = vunpack.c.h.b16 %v692
  %v2860 = vunpack.c.l.b16 %v693
  %v2861 = vunpack.c.h.b16 %v693
  %v2862 = vunpack.c.l.b16 %v694
  %v2863 = vunpack.c.h.b16 %v694
  %v2864 = vunpack.c.l.b16 %v695
  %v2865 = vunpack.c.h.b16 %v695
  %v2866 = vunpack.c.l.b16 %v696
  %v2867 = vunpack.c.h.b16 %v696
  %v2868 = vunpack.c.l.b16 %v697
  %v2869 = vunpack.c.h.b16 %v697
  %v2870 = vunpack.c.l.b16 %v698
  %v2871 = vunpack.c.h.b16 %v698
  %v2872 = vunpack.c.l.b16 %v699
  %v2873 = vunpack.c.h.b16 %v699
  %v2874 = vunpack.c.l.b16 %v700
  %v2875 = vunpack.c.h.b16 %v700
  %v2876 = vunpack.c.l.b16 %v701
  %v2877 = vunpack.c.h.b16 %v701
  %v2878 = vunpack.c.l.b16 %v702
  %v2879 = vunpack.c.h.b16 %v702
  %v2880 = vunpack.c.l.b16 %v703
  %v2881 = vunpack.c.h.b16 %v703
  %v2882 = vunpack.c.l.b16 %v704
  %v2883 = vunpack.c.h.b16 %v704
  %v2884 = vunpack.c.l.b16 %v705
  %v2885 = vunpack.c.h.b16 %v705
  %v2886 = vunpack.c.l.b16 %v706
  %v2887 = vunpack.c.h.b16 %v706
  %v2888 = vunpack.c.l.b16 %v707
  %v2889 = vunpack.c.h.b16 %v707
  %v2890 = vunpack.c.l.b16 %v708
  %v2891 = vunpack.c.h.b16 %v708
  %v2892 = vunpack.c.l.b16 %v709
  %v2893 = vunpack.c.h.b16 %v709
  %v2894 = vunpack.c.l.b16 %v710
  %v2895 = vunpack.c.h.b16 %v710
  %v2896 = vunpack.c.l.b16 %v711
  %v2897 = vunpack.c.h.b16 %v711
  %v2898 = vunpack.c.l.b16 %v712
  %v2899 = vunpack.c.h.b16 %v712
  %v2900 = vunpack.c.l.b16 %v713
  %v2901 = vunpack.c.h.b16 %v713
  %v2902 = vunpack.c.l.b16 %v714
  %v2903 = vunpack.c.h.b16 %v714
  %v2904 = vunpack.c.l.b16 %v715
  %v2905 = vunpack.c.h.b16 %v715
  %v2906 = vunpack.c.l.b16 %v716
  %v2907 = vunpack.c.h.b16 %v716
  %v2908 = vunpack.c.l.b16 %v717
  %v2909 = vunpack.c.h.b16 %v717
  %v2910 = vunpack.c.l.b16 %v718
  %v2911 = vunpack.c.h.b16 %v718
  %v2912 = vunpack.c.l.b16 %v719
  %v2913 = vunpack.c.h.b16 %v719
  %v2914 = vunpack.c.l.b16 %v720
  %v2915 = vunpack.c.h.b16 %v720
  %v2916 = vunpack.c.l.b16 %v721
  %v2917 = vunpack.c.h.b16 %v721
  %v2918 = vunpack.c.l.b16 %v722
  %v2919 = vunpack.c.h.b16 %v722
  %v2920 = vunpack.c.l.b16 %v723
  %v2921 = vunpack.c.h.b16 %v723
  %v2922 = vunpack.c.l.b16 %v724
  %v2923 = vunpack.c.h.b16 %v724
  %v2924 = vunpack.c.l.b16 %v725
  %v2925 = vunpack.c.h.b16 %v725
  %v2926 = vunpack.c.l.b16 %v726
  %v2927 = vunpack.c.h.b16 %v726
  %v2928 = vunpack.c.l.b16 %v727
  %v2929 = vunpack.c.h.b16 %v727
  %v2930 = vunpack.c.l.b16 %v728
  %v2931 = vunpack.c.h.b16 %v728
  %v2932 = vunpack.c.l.b16 %v729
  %v2933 = vunpack.c.h.b16 %v729
  %v2934 = vunpack.c.l.b16 %v730
  %v2935 = vunpack.c.h.b16 %v730
  %v2936 = vunpack.c.l.b16 %v731
  %v2937 = vunpack.c.h.b16 %v731
  %v2938 = vunpack.c.l.b16 %v732
  %v2939 = vunpack.c.h.b16 %v732
  %v2940 = vunpack.c.l.b16 %v733
  %v2941 = vunpack.c.h.b16 %v733
  %v2942 = vunpack.c.l.b16 %v734
  %v2943 = vunpack.c.h.b16 %v734
  %v2944 = vunpack.c.l.b16 %v735
  %v2945 = vunpack.c.h.b16 %v735
  %v2946 = vunpack.c.l.b16 %v736
  %v2947 = vunpack.c.h.b16 %v736
  %v2948 = vunpack.c.l.b16 %v737
  %v2949 = vunpack.c.h.b16 %v737
  %v2950 = vunpack.c.l.b16 %v738
  %v2951 = vunpack.c.h.b16 %v738
  %v2952 = vunpack.c.l.b16 %v739
  %v2953 = vunpack.c.h.b16 %v739
  %v2954 = vunpack.c.l.b16 %v740
  %v2955 = vunpack.c.h.b16 %v740
  %v2956 = vunpack.c.l.b16 %v741
  %v2957 = vunpack.c.h.b16 %v741
  %v2958 = vunpack.c.l.b16 %v742
  %v2959 = vunpack.c.h.b16 %v742
  %v2960 = vunpack.c.l.b16 %v743
  %v2961 = vunpack.c.h.b16 %v743
  %v2962 = vunpack.c.l.b16 %v744
  %v2963 = vunpack.c.h.b16 %v744
  %v2964 = vunpack.c.l.b16 %v745
  %v2965 = vunpack.c.h.b16 %v745
  %v2966 = vunpack.c.l.b16 %v746
  %v2967 = vunpack.c.h.b16 %v746
  %v2968 = vunpack.c.l.b16 %v747
  %v2969 = vunpack.c.h.b16 %v747
  %v2970 = vunpack.c.l.b16 %v748
  %v2971 = vunpack.c.h.b16 %v748
  %v2972 = vunpack.c.l.b16 %v749
  %v2973 = vunpack.c.h.b16 %v749
  %v2974 = vunpack.c.l.b16 %v750
  %v2975 = vunpack.c.h.b16 %v750
  %v2976 = vunpack.c.l.b16 %v751
  %v2977 = vunpack.c.h.b16 %v751
  %v2978 = vunpack.c.l.b16 %v752
  %v2979 = vunpack.c.h.b16 %v752
  %v2980 = vunpack.c.l.b16 %v753
  %v2981 = vunpack.c.h.b16 %v753
  %v2982 = vunpack.c.l.b16 %v754
  %v2983 = vunpack.c.h.b16 %v754
  %v2984 = vunpack.c.l.b16 %v755
  %v2985 = vunpack.c.h.b16 %v755
  %v2986 = vunpack.c.l.b16 %v756
  %v2987 = vunpack.c.h.b16 %v756
  %v2988 = vunpack.c.l.b16 %v757
  %v2989 = vunpack.c.h.b16 %v757
  %v2990 = vunpack.c.l.b16 %v758
  %v2991 = vunpack.c.h.b16 %v758
  %v2992 = vunpack.c.l.b16 %v759
  %v2993 = vunpack.c.h.b16 %v759
  %v2994 = vunpack.c.l.b16 %v760
  %v2995 = vunpack.c.h.b16 %v760
  %v2996 = vunpack.c.l.b16 %v761
  %v2997 = vunpack.c.h.b16 %v761
  %v2998 = vunpack.c.l.b16 %v762
  %v2999 = vunpack.c.h.b16 %v762
  %v3000 = vunpack.c.l.b16 %v763
  %v3001 = vunpack.c.h.b16 %v763
  %v3002 = vunpack.c.l.b16 %v764
  %v3003 = vunpack.c.h.b16 %v764
  %v3004 = vunpack.c.l.b16 %v765
  %v3005 = vunpack.c.h.b16 %v765
  %v3006 = vunpack.c.l.b16 %v766
  %v3007 = vunpack.c.h.b16 %v766
  %v3008 = vunpack.c.l.b16 %v767
  %v3009 = vunpack.c.h.b16 %v767
  %v3010 = vunpack.c.l.b16 %v768
  %v3011 = vunpack.c.h.b16 %v768
  %v3012 = vunpack.c.l.b16 %v769
  %v3013 = vunpack.c.h.b16 %v769
  %v3014 = vunpack.c.l.b16 %v770
  %v3015 = vunpack.c.h.b16 %v770
  %v3016 = vunpack.c.l.b16 %v771
  %v3017 = vunpack.c.h.b16 %v771
  %v3018 = vunpack.c.l.b16 %v772
  %v3019 = vunpack.c.h.b16 %v772
  %v3020 = vunpack.c.l.b16 %v773
  %v3021 = vunpack.c.h.b16 %v773
  %v3022 = vunpack.c.l.b16 %v774
  %v3023 = vunpack.c.h.b16 %v774
  %v3024 = vunpack.c.l.b16 %v775
  %v3025 = vunpack.c.h.b16 %v775
  %v3026 = vunpack.c.l.b16 %v776
  %v3027 = vunpack.c.h.b16 %v776
  %v3028 = vunpack.c.l.b16 %v777
  %v3029 = vunpack.c.h.b16 %v777
  %v3030 = vunpack.c.l.b16 %v778
  %v3031 = vunpack.c.h.b16 %v778
  %v3032 = vunpack.c.l.b16 %v779
  %v3033 = vunpack.c.h.b16 %v779
  %v3034 = vunpack.c.l.b16 %v780
  %v3035 = vunpack.c.h.b16 %v780
  %v3036 = vunpack.c.l.b16 %v781
  %v3037 = vunpack.c.h.b16 %v781
  %v3038 = vunpack.c.l.b16 %v782
  %v3039 = vunpack.c.h.b16 %v782
  %v3040 = vunpack.c.l.b16 %v783
  %v3041 = vunpack.c.h.b16 %v783
  %v3042 = vunpack.c.l.b16 %v784
  %v3043 = vunpack.c.h.b16 %v784
  %v3044 = vunpack.c.l.b16 %v785
  %v3045 = vunpack.c.h.b16 %v785
  %v3046 = vunpack.c.l.b16 %v786
  %v3047 = vunpack.c.h.b16 %v786
  %v3048 = vunpack.c.l.b16 %v787
  %v3049 = vunpack.c.h.b16 %v787
  %v3050 = vunpack.c.l.b16 %v788
  %v3051 = vunpack.c.h.b16 %v788
  %v3052 = vunpack.c.l.b16 %v789
  %v3053 = vunpack.c.h.b16 %v789
  %v3054 = vunpack.c.l.b16 %v790
  %v3055 = vunpack.c.h.b16 %v790
  %v3056 = vunpack.c.l.b16 %v791
  %v3057 = vunpack.c.h.b16 %v791
  %v3058 = vunpack.c.l.b16 %v792
  %v3059 = vunpack.c.h.b16 %v792
  %v3060 = vunpack.c.l.b16 %v793
  %v3061 = vunpack.c.h.b16 %v793
  %v3062 = vunpack.c.l.b16 %v794
  %v3063 = vunpack.c.h.b16 %v794
  %v3064 = vunpack.c.l.b16 %v795
  %v3065 = vunpack.c.h.b16 %v795
  %v3066 = vunpack.c.l.b16 %v796
  %v3067 = vunpack.c.h.b16 %v796
  %v3068 = vunpack.c.l.b16 %v797
  %v3069 = vunpack.c.h.b16 %v797
  %v3070 = vunpack.c.l.b16 %v798
  %v3071 = vunpack.c.h.b16 %v798
  %v3072 = vunpack.c.l.b16 %v799
  %v3073 = vunpack.c.h.b16 %v799
  %v3074 = vunpack.c.l.b16 %v800
  %v3075 = vunpack.c.h.b16 %v800
  %v3076 = vunpack.c.l.b16 %v801
  %v3077 = vunpack.c.h.b16 %v801
  %v3078 = vunpack.c.l.b16 %v802
  %v3079 = vunpack.c.h.b16 %v802
  %v3080 = vunpack.c.l.b16 %v803
  %v3081 = vunpack.c.h.b16 %v803
  %v3082 = vunpack.c.l.b16 %v804
  %v3083 = vunpack.c.h.b16 %v804
  %v3084 = vunpack.c.l.b16 %v805
  %v3085 = vunpack.c.h.b16 %v805
  %v3086 = vunpack.c.l.b16 %v806
  %v3087 = vunpack.c.h.b16 %v806
  %v3088 = vunpack.c.l.b16 %v807
  %v3089 = vunpack.c.h.b16 %v807
  %v3090 = vunpack.c.l.b16 %v808
  %v3091 = vunpack.c.h.b16 %v808
  %v3092 = vunpack.c.l.b16 %v809
  %v3093 = vunpack.c.h.b16 %v809
  %v3094 = vunpack.c.l.b16 %v810
  %v3095 = vunpack.c.h.b16 %v810
  %v3096 = vunpack.c.l.b16 %v811
  %v3097 = vunpack.c.h.b16 %v811
  %v3098 = vunpack.c.l.b16 %v812
  %v3099 = vunpack.c.h.b16 %v812
  %v3100 = vunpack.c.l.b16 %v813
  %v3101 = vunpack.c.h.b16 %v813
  %v3102 = vunpack.c.l.b16 %v814
  %v3103 = vunpack.c.h.b16 %v814
  %v3104 = vunpack.c.l.b16 %v815
  %v3105 = vunpack.c.h.b16 %v815
  %v3106 = vunpack.c.l.b16 %v816
  %v3107 = vunpack.c.h.b16 %v816
  %v3108 = vunpack.c.l.b16 %v817
  %v3109 = vunpack.c.h.b16 %v817
  %v3110 = vunpack.c.l.b16 %v818
  %v3111 = vunpack.c.h.b16 %v818
  %v3112 = vunpack.c.l.b16 %v819
  %v3113 = vunpack.c.h.b16 %v819
  %v3114 = vunpack.c.l.b16 %v820
  %v3115 = vunpack.c.h.b16 %v820
  %v3116 = vunpack.c.l.b16 %v821
  %v3117 = vunpack.c.h.b16 %v821
  %v3118 = vunpack.c.l.b16 %v822
  %v3119 = vunpack.c.h.b16 %v822
  %v3120 = vunpack.c.l.b16 %v823
  %v3121 = vunpack.c.h.b16 %v823
  %v3122 = vunpack.c.l.b16 %v824
  %v3123 = vunpack.c.h.b16 %v824
  %v3124 = vunpack.c.l.b16 %v825
  %v3125 = vunpack.c.h.b16 %v825
  %v3126 = vunpack.c.l.b16 %v826
  %v3127 = vunpack.c.h.b16 %v826
  %v3128 = vunpack.c.l.b16 %v827
  %v3129 = vunpack.c.h.b16 %v827
  %v3130 = vunpack.c.l.b16 %v828
  %v3131 = vunpack.c.h.b16 %v828
  %v3132 = vunpack.c.l.b16 %v829
  %v3133 = vunpack.c.h.b16 %v829
  %v3134 = vunpack.c.l.b16 %v830
  %v3135 = vunpack.c.h.b16 %v830
  %v3136 = vunpack.c.l.b16 %v831
  %v3137 = vunpack.c.h.b16 %v831
  %v3138 = vunpack.c.l.b16 %v832
  %v3139 = vunpack.c.h.b16 %v832
  %v3140 = vunpack.c.l.b16 %v833
  %v3141 = vunpack.c.h.b16 %v833
  %v3142 = vunpack.c.l.b16 %v834
  %v3143 = vunpack.c.h.b16 %v834
  %v3144 = vunpack.c.l.b16 %v835
  %v3145 = vunpack.c.h.b16 %v835
  %v3146 = vunpack.c.l.b16 %v836
  %v3147 = vunpack.c.h.b16 %v836
  %v3148 = vunpack.c.l.b16 %v837
  %v3149 = vunpack.c.h.b16 %v837
  %v3150 = vunpack.c.l.b16 %v838
  %v3151 = vunpack.c.h.b16 %v838
  %v3152 = vunpack.c.l.b16 %v839
  %v3153 = vunpack.c.h.b16 %v839
  %v3154 = vunpack.c.l.b16 %v840
  %v3155 = vunpack.c.h.b16 %v840
  %v3156 = vunpack.c.l.b16 %v841
  %v3157 = vunpack.c.h.b16 %v841
  %v3158 = vpack.c.b16 %v1628, %v1622
  %v3159 = vpack.c.b16 %v1629, %v1623
  %v3160 = vpack.c.b16 %v1630, %v1624
  %v3161 = vpack.c.b16 %v1631, %v1625
  %v3162 = vpack.c.b16 %v1632, %v1626
  %v3163 = vpack.c.b16 %v1633, %v1627
  %v3164 = vpack.c.b16 %v1640, %v1634
  %v3165 = vpack.c.b16 %v1641, %v1635
  %v3166 = vpack.c.b16 %v1642, %v1636
  %v3167 = vpack.c.b16 %v1643, %v1637
  %v3168 = vpack.c.b16 %v1644, %v1638
  %v3169 = vpack.c.b16 %v1645, %v1639
  %v3170 = vpack.c.b16 %v1652, %v1646
  %v3171 = vpack.c.b16 %v1653, %v1647
  %v3172 = vpack.c.b16 %v1654, %v1648
  %v3173 = vpack.c.b16 %v1655, %v1649
  %v3174 = vpack.c.b16 %v1656, %v1650
  %v3175 = vpack.c.b16 %v1657, %v1651
  %v3176 = vpack.c.b16 %v1664, %v1658
  %v3177 = vpack.c.b16 %v1665, %v1659
  %v3178 = vpack.c.b16 %v1666, %v1660
  %v3179 = vpack.c.b16 %v1667, %v1661
  %v3180 = vpack.c.b16 %v1668, %v1662
  %v3181 = vpack.c.b16 %v1669, %v1663
  %v3182 = vpack.c.b16 %v1676, %v1670
  %v3183 = vpack.c.b16 %v1677, %v1671
  %v3184 = vpack.c.b16 %v1678, %v1672
  %v3185 = vpack.c.b16 %v1679, %v1673
  %v3186 = vpack.c.b16 %v1680, %v1674
  %v3187 = vpack.c.b16 %v1681, %v1675
  %v3188 = vpack.c.b16 %v1688, %v1682
  %v3189 = vpack.c.b16 %v1689, %v1683
  %v3190 = vpack.c.b16 %v1690, %v1684
  %v3191 = vpack.c.b16 %v1691, %v1685
  %v3192 = vpack.c.b16 %v1692, %v1686
  %v3193 = vpack.c.b16 %v1693, %v1687
  %v3194 = vpack.c.b16 %v1700, %v1694
  %v3195 = vpack.c.b16 %v1701, %v1695
  %v3196 = vpack.c.b16 %v1702, %v1696
  %v3197 = vpack.c.b16 %v1703, %v1697
  %v3198 = vpack.c.b16 %v1704, %v1698
  %v3199 = vpack.c.b16 %v1705, %v1699
  %v3200 = vpack.c.b16 %v1712, %v1706
  %v3201 = vpack.c.b16 %v1713, %v1707
  %v3202 = vpack.c.b16 %v1714, %v1708
  %v3203 = vpack.c.b16 %v1715, %v1709
  %v3204 = vpack.c.b16 %v1716, %v1710
  %v3205 = vpack.c.b16 %v1717, %v1711
  %v3206 = vpack.c.b16 %v1724, %v1718
  %v3207 = vpack.c.b16 %v1725, %v1719
  %v3208 = vpack.c.b16 %v1726, %v1720
  %v3209 = vpack.c.b16 %v1727, %v1721
  %v3210 = vpack.c.b16 %v1728, %v1722
  %v3211 = vpack.c.b16 %v1729, %v1723
  %v3212 = vpack.c.b16 %v1736, %v1730
  %v3213 = vpack.c.b16 %v1737, %v1731
  %v3214 = vpack.c.b16 %v1738, %v1732
  %v3215 = vpack.c.b16 %v1739, %v1733
  %v3216 = vpack.c.b16 %v1740, %v1734
  %v3217 = vpack.c.b16 %v1741, %v1735
  %v3218 = vpack.c.b16 %v1748, %v1742
  %v3219 = vpack.c.b16 %v1749, %v1743
  %v3220 = vpack.c.b16 %v1750, %v1744
  %v3221 = vpack.c.b16 %v1751, %v1745
  %v3222 = vpack.c.b16 %v1752, %v1746
  %v3223 = vpack.c.b16 %v1753, %v1747
  %v3224 = vpack.c.b16 %v1760, %v1754
  %v3225 = vpack.c.b16 %v1761, %v1755
  %v3226 = vpack.c.b16 %v1762, %v1756
  %v3227 = vpack.c.b16 %v1763, %v1757
  %v3228 = vpack.c.b16 %v1764, %v1758
  %v3229 = vpack.c.b16 %v1765, %v1759
  %v3230 = vpack.c.b16 %v1772, %v1766
  %v3231 = vpack.c.b16 %v1773, %v1767
  %v3232 = vpack.c.b16 %v1774, %v1768
  %v3233 = vpack.c.b16 %v1775, %v1769
  %v3234 = vpack.c.b16 %v1776, %v1770
  %v3235 = vpack.c.b16 %v1777, %v1771
  %v3236 = vpack.c.b16 %v1784, %v1778
  %v3237 = vpack.c.b16 %v1785, %v1779
  %v3238 = vpack.c.b16 %v1786, %v1780
  %v3239 = vpack.c.b16 %v1787, %v1781
  %v3240 = vpack.c.b16 %v1788, %v1782
  %v3241 = vpack.c.b16 %v1789, %v1783
  %v3242 = vpack.c.b16 %v1796, %v1790
  %v3243 = vpack.c.b16 %v1797, %v1791
  %v3244 = vpack.c.b16 %v1798, %v1792
  %v3245 = vpack.c.b16 %v1799, %v1793
  %v3246 = vpack.c.b16 %v1800, %v1794
  %v3247 = vpack.c.b16 %v1801, %v1795
  %v3248 = vpack.c.b16 %v1808, %v1802
  %v3249 = vpack.c.b16 %v1809, %v1803
  %v3250 = vpack.c.b16 %v1810, %v1804
  %v3251 = vpack.c.b16 %v1811, %v1805
  %v3252 = vpack.c.b16 %v1812, %v1806
  %v3253 = vpack.c.b16 %v1813, %v1807
  %v3254 = vpack.c.b16 %v1820, %v1814
  %v3255 = vpack.c.b16 %v1821, %v1815
  %v3256 = vpack.c.b16 %v1822, %v1816
  %v3257 = vpack.c.b16 %v1823, %v1817
  %v3258 = vpack.c.b16 %v1824, %v1818
  %v3259 = vpack.c.b16 %v1825, %v1819
  %v3260 = vpack.c.b16 %v1832, %v1826
  %v3261 = vpack.c.b16 %v1833, %v1827
  %v3262 = vpack.c.b16 %v1834, %v1828
  %v3263 = vpack.c.b16 %v1835, %v1829
  %v3264 = vpack.c.b16 %v1836, %v1830
  %v3265 = vpack.c.b16 %v1837, %v1831
  %v3266 = vpack.c.b16 %v1844, %v1838
  %v3267 = vpack.c.b16 %v1845, %v1839
  %v3268 = vpack.c.b16 %v1846, %v1840
  %v3269 = vpack.c.b16 %v1847, %v1841
  %v3270 = vpack.c.b16 %v1848, %v1842
  %v3271 = vpack.c.b16 %v1849, %v1843
  %v3272 = vpack.c.b16 %v1856, %v1850
  %v3273 = vpack.c.b16 %v1857, %v1851
  %v3274 = vpack.c.b16 %v1858, %v1852
  %v3275 = vpack.c.b16 %v1859, %v1853
  %v3276 = vpack.c.b16 %v1860, %v1854
  %v3277 = vpack.c.b16 %v1861, %v1855
  %v3278 = vpack.c.b16 %v1868, %v1862
  %v3279 = vpack.c.b16 %v1869, %v1863
  %v3280 = vpack.c.b16 %v1870, %v1864
  %v3281 = vpack.c.b16 %v1871, %v1865
  %v3282 = vpack.c.b16 %v1872, %v1866
  %v3283 = vpack.c.b16 %v1873, %v1867
  %v3284 = vpack.c.b16 %v1880, %v1874
  %v3285 = vpack.c.b16 %v1881, %v1875
  %v3286 = vpack.c.b16 %v1882, %v1876
  %v3287 = vpack.c.b16 %v1883, %v1877
  %v3288 = vpack.c.b16 %v1884, %v1878
  %v3289 = vpack.c.b16 %v1885, %v1879
  %v3290 = vpack.c.b16 %v1892, %v1886
  %v3291 = vpack.c.b16 %v1893, %v1887
  %v3292 = vpack.c.b16 %v1894, %v1888
  %v3293 = vpack.c.b16 %v1895, %v1889
  %v3294 = vpack.c.b16 %v1896, %v1890
  %v3295 = vpack.c.b16 %v1897, %v1891
  %v3296 = vpack.c.b16 %v1904, %v1898
  %v3297 = vpack.c.b16 %v1905, %v1899
  %v3298 = vpack.c.b16 %v1906, %v1900
  %v3299 = vpack.c.b16 %v1907, %v1901
  %v3300 = vpack.c.b16 %v1908, %v1902
  %v3301 = vpack.c.b16 %v1909, %v1903
  %v3302 = vpack.c.b16 %v1916, %v1910
  %v3303 = vpack.c.b16 %v1917, %v1911
  %v3304 = vpack.c.b16 %v1918, %v1912
  %v3305 = vpack.c.b16 %v1919, %v1913
  %v3306 = vpack.c.b16 %v1920, %v1914
  %v3307 = vpack.c.b16 %v1921, %v1915
  %v3308 = vpack.c.b16 %v1928, %v1922
  %v3309 = vpack.c.b16 %v1929, %v1923
  %v3310 = vpack.c.b16 %v1930, %v1924
  %v3311 = vpack.c.b16 %v1931, %v1925
  %v3312 = vpack.c.b16 %v1932, %v1926
  %v3313 = vpack.c.b16 %v1933, %v1927
  %v3314 = vpack.c.b16 %v1940, %v1934
  %v3315 = vpack.c.b16 %v1941, %v1935
  %v3316 = vpack.c.b16 %v1942, %v1936
  %v3317 = vpack.c.b16 %v1943, %v1937
  %v3318 = vpack.c.b16 %v1944, %v1938
  %v3319 = vpack.c.b16 %v1945, %v1939
  %v3320 = vpack.c.b16 %v1952, %v1946
  %v3321 = vpack.c.b16 %v1953, %v1947
  %v3322 = vpack.c.b16 %v1954, %v1948
  %v3323 = vpack.c.b16 %v1955, %v1949
  %v3324 = vpack.c.b16 %v1956, %v1950
  %v3325 = vpack.c.b16 %v1957, %v1951
  %v3326 = vpack.c.b16 %v1964, %v1958
  %v3327 = vpack.c.b16 %v1965, %v1959
  %v3328 = vpack.c.b16 %v1966, %v1960
  %v3329 = vpack.c.b16 %v1967, %v1961
  %v3330 = vpack.c.b16 %v1968, %v1962
  %v3331 = vpack.c.b16 %v1969, %v1963
  %v3332 = vpack.c.b16 %v1976, %v1970
  %v3333 = vpack.c.b16 %v1977, %v1971
  %v3334 = vpack.c.b16 %v1978, %v1972
  %v3335 = vpack.c.b16 %v1979, %v1973
  %v3336 = vpack.c.b16 %v1980, %v1974
  %v3337 = vpack.c.b16 %v1981, %v1975
  %v3338 = vpack.c.b16 %v1988, %v1982
  %v3339 = vpack.c.b16 %v1989, %v1983
  %v3340 = vpack.c.b16 %v1990, %v1984
  %v3341 = vpack.c.b16 %v1991, %v1985
  %v3342 = vpack.c.b16 %v1992, %v1986
  %v3343 = vpack.c.b16 %v1993, %v1987
  %v3344 = vpack.c.b16 %v2000, %v1994
  %v3345 = vpack.c.b16 %v2001, %v1995
  %v3346 = vpack.c.b16 %v2002, %v1996
  %v3347 = vpack.c.b16 %v2003, %v1997
  %v3348 = vpack.c.b16 %v2004, %v1998
  %v3349 = vpack.c.b16 %v2005, %v1999
  %v3350 = vpack.c.b16 %v2012, %v2006
  %v3351 = vpack.c.b16 %v2013, %v2007
  %v3352 = vpack.c.b16 %v2014, %v2008
  %v3353 = vpack.c.b16 %v2015, %v2009
  %v3354 = vpack.c.b16 %v2016, %v2010
  %v3355 = vpack.c.b16 %v2017, %v2011
  %v3356 = vpack.c.b16 %v2024, %v2018
  %v3357 = vpack.c.b16 %v2025, %v2019
  %v3358 = vpack.c.b16 %v2026, %v2020
  %v3359 = vpack.c.b16 %v2027, %v2021
  %v3360 = vpack.c.b16 %v2028, %v2022
  %v3361 = vpack.c.b16 %v2029, %v2023
  %v3362 = vpack.c.b16 %v2036, %v2030
  %v3363 = vpack.c.b16 %v2037, %v2031
  %v3364 = vpack.c.b16 %v2038, %v2032
  %v3365 = vpack.c.b16 %v2039, %v2033
  %v3366 = vpack.c.b16 %v2040, %v2034
  %v3367 = vpack.c.b16 %v2041, %v2035
  %v3368 = vpack.c.b16 %v2048, %v2042
  %v3369 = vpack.c.b16 %v2049, %v2043
  %v3370 = vpack.c.b16 %v2050, %v2044
  %v3371 = vpack.c.b16 %v2051, %v2045
  %v3372 = vpack.c.b16 %v2052, %v2046
  %v3373 = vpack.c.b16 %v2053, %v2047
  %v3374 = vpack.c.b16 %v2060, %v2054
  %v3375 = vpack.c.b16 %v2061, %v2055
  %v3376 = vpack.c.b16 %v2062, %v2056
  %v3377 = vpack.c.b16 %v2063, %v2057
  %v3378 = vpack.c.b16 %v2064, %v2058
  %v3379 = vpack.c.b16 %v2065, %v2059
  %v3380 = vpack.c.b16 %v2072, %v2066
  %v3381 = vpack.c.b16 %v2073, %v2067
  %v3382 = vpack.c.b16 %v2074, %v2068
  %v3383 = vpack.c.b16 %v2075, %v2069
  %v3384 = vpack.c.b16 %v2076, %v2070
  %v3385 = vpack.c.b16 %v2077, %v2071
  %v3386 = vpack.c.b16 %v2084, %v2078
  %v3387 = vpack.c.b16 %v2085, %v2079
  %v3388 = vpack.c.b16 %v2086, %v2080
  %v3389 = vpack.c.b16 %v2087, %v2081
  %v3390 = vpack.c.b16 %v2088, %v2082
  %v3391 = vpack.c.b16 %v2089, %v2083
  %v3392 = vpack.c.b16 %v2096, %v2090
  %v3393 = vpack.c.b16 %v2097, %v2091
  %v3394 = vpack.c.b16 %v2098, %v2092
  %v3395 = vpack.c.b16 %v2099, %v2093
  %v3396 = vpack.c.b16 %v2100, %v2094
  %v3397 = vpack.c.b16 %v2101, %v2095
  %v3398 = vpack.c.b16 %v2108, %v2102
  %v3399 = vpack.c.b16 %v2109, %v2103
  %v3400 = vpack.c.b16 %v2110, %v2104
  %v3401 = vpack.c.b16 %v2111, %v2105
  %v3402 = vpack.c.b16 %v2112, %v2106
  %v3403 = vpack.c.b16 %v2113, %v2107
  %v3404 = vpack.c.b16 %v2120, %v2114
  %v3405 = vpack.c.b16 %v2121, %v2115
  %v3406 = vpack.c.b16 %v2122, %v2116
  %v3407 = vpack.c.b16 %v2123, %v2117
  %v3408 = vpack.c.b16 %v2124, %v2118
  %v3409 = vpack.c.b16 %v2125, %v2119
  %v3410 = vpack.c.b16 %v2132, %v2126
  %v3411 = vpack.c.b16 %v2133, %v2127
  %v3412 = vpack.c.b16 %v2134, %v2128
  %v3413 = vpack.c.b16 %v2135, %v2129
  %v3414 = vpack.c.b16 %v2136, %v2130
  %v3415 = vpack.c.b16 %v2137, %v2131
  %v3416 = vpack.c.b16 %v2144, %v2138
  %v3417 = vpack.c.b16 %v2145, %v2139
  %v3418 = vpack.c.b16 %v2146, %v2140
  %v3419 = vpack.c.b16 %v2147, %v2141
  %v3420 = vpack.c.b16 %v2148, %v2142
  %v3421 = vpack.c.b16 %v2149, %v2143
  %v3422 = vpack.c.b16 %v2156, %v2150
  %v3423 = vpack.c.b16 %v2157, %v2151
  %v3424 = vpack.c.b16 %v2158, %v2152
  %v3425 = vpack.c.b16 %v2159, %v2153
  %v3426 = vpack.c.b16 %v2160, %v2154
  %v3427 = vpack.c.b16 %v2161, %v2155
  %v3428 = vpack.c.b16 %v2168, %v2162
  %v3429 = vpack.c.b16 %v2169, %v2163
  %v3430 = vpack.c.b16 %v2170, %v2164
  %v3431 = vpack.c.b16 %v2171, %v2165
  %v3432 = vpack.c.b16 %v2172, %v2166
  %v3433 = vpack.c.b16 %v2173, %v2167
  %v3434 = vpack.c.b16 %v2180, %v2174
  %v3435 = vpack.c.b16 %v2181, %v2175
  %v3436 = vpack.c.b16 %v2182, %v2176
  %v3437 = vpack.c.b16 %v2183, %v2177
  %v3438 = vpack.c.b16 %v2184, %v2178
  %v3439 = vpack.c.b16 %v2185, %v2179
  %v3440 = vpack.c.b16 %v2192, %v2186
  %v3441 = vpack.c.b16 %v2193, %v2187
  %v3442 = vpack.c.b16 %v2194, %v2188
  %v3443 = vpack.c.b16 %v2195, %v2189
  %v3444 = vpack.c.b16 %v2196, %v2190
  %v3445 = vpack.c.b16 %v2197, %v2191
  %v3446 = vpack.c.b16 %v2204, %v2198
  %v3447 = vpack.c.b16 %v2205, %v2199
  %v3448 = vpack.c.b16 %v2206, %v2200
  %v3449 = vpack.c.b16 %v2207, %v2201
  %v3450 = vpack.c.b16 %v2208, %v2202
  %v3451 = vpack.c.b16 %v2209, %v2203
  %v3452 = vpack.c.b16 %v2216, %v2210
  %v3453 = vpack.c.b16 %v2217, %v2211
  %v3454 = vpack.c.b16 %v2218, %v2212
  %v3455 = vpack.c.b16 %v2219, %v2213
  %v3456 = vpack.c.b16 %v2220, %v2214
  %v3457 = vpack.c.b16 %v2221, %v2215
  %v3458 = vpack.c.b16 %v2228, %v2222
  %v3459 = vpack.c.b16 %v2229, %v2223
  %v3460 = vpack.c.b16 %v2230, %v2224
  %v3461 = vpack.c.b16 %v2231, %v2225
  %v3462 = vpack.c.b16 %v2232, %v2226
  %v3463 = vpack.c.b16 %v2233, %v2227
  %v3464 = vpack.c.b16 %v2240, %v2234
  %v3465 = vpack.c.b16 %v2241, %v2235
  %v3466 = vpack.c.b16 %v2242, %v2236
  %v3467 = vpack.c.b16 %v2243, %v2237
  %v3468 = vpack.c.b16 %v2244, %v2238
  %v3469 = vpack.c.b16 %v2245, %v2239
  %v3470 = vpack.c.b16 %v2252, %v2246
  %v3471 = vpack.c.b16 %v2253, %v2247
  %v3472 = vpack.c.b16 %v2254, %v2248
  %v3473 = vpack.c.b16 %v2255, %v2249
  %v3474 = vpack.c.b16 %v2256, %v2250
  %v3475 = vpack.c.b16 %v2257, %v2251
  %v3476 = vpack.c.b16 %v2264, %v2258
  %v3477 = vpack.c.b16 %v2265, %v2259
  %v3478 = vpack.c.b16 %v2266, %v2260
  %v3479 = vpack.c.b16 %v2267, %v2261
  %v3480 = vpack.c.b16 %v2268, %v2262
  %v3481 = vpack.c.b16 %v2269, %v2263
  %v3482 = vpack.c.b16 %v2276, %v2270
  %v3483 = vpack.c.b16 %v2277, %v2271
  %v3484 = vpack.c.b16 %v2278, %v2272
  %v3485 = vpack.c.b16 %v2279, %v2273
  %v3486 = vpack.c.b16 %v2280, %v2274
  %v3487 = vpack.c.b16 %v2281, %v2275
  %v3488 = vpack.c.b16 %v2288, %v2282
  %v3489 = vpack.c.b16 %v2289, %v2283
  %v3490 = vpack.c.b16 %v2290, %v2284
  %v3491 = vpack.c.b16 %v2291, %v2285
  %v3492 = vpack.c.b16 %v2292, %v2286
  %v3493 = vpack.c.b16 %v2293, %v2287
  %v3494 = vpack.c.b16 %v2300, %v2294
  %v3495 = vpack.c.b16 %v2301, %v2295
  %v3496 = vpack.c.b16 %v2302, %v2296
  %v3497 = vpack.c.b16 %v2303, %v2297
  %v3498 = vpack.c.b16 %v2304, %v2298
  %v3499 = vpack.c.b16 %v2305, %v2299
  %v3500 = vpack.c.b16 %v2312, %v2306
  %v3501 = vpack.c.b16 %v2313, %v2307
  %v3502 = vpack.c.b16 %v2314, %v2308
  %v3503 = vpack.c.b16 %v2315, %v2309
  %v3504 = vpack.c.b16 %v2316, %v2310
  %v3505 = vpack.c.b16 %v2317, %v2311
  %v3506 = vpack.c.b16 %v2324, %v2318
  %v3507 = vpack.c.b16 %v2325, %v2319
  %v3508 = vpack.c.b16 %v2326, %v2320
  %v3509 = vpack.c.b16 %v2327, %v2321
  %v3510 = vpack.c.b16 %v2328, %v2322
  %v3511 = vpack.c.b16 %v2329, %v2323
  %v3512 = vpack.c.b16 %v2336, %v2330
  %v3513 = vpack.c.b16 %v2337, %v2331
  %v3514 = vpack.c.b16 %v2338, %v2332
  %v3515 = vpack.c.b16 %v2339, %v2333
  %v3516 = vpack.c.b16 %v2340, %v2334
  %v3517 = vpack.c.b16 %v2341, %v2335
  %v3518 = vpack.c.b16 %v2348, %v2342
  %v3519 = vpack.c.b16 %v2349, %v2343
  %v3520 = vpack.c.b16 %v2350, %v2344
  %v3521 = vpack.c.b16 %v2351, %v2345
  %v3522 = vpack.c.b16 %v2352, %v2346
  %v3523 = vpack.c.b16 %v2353, %v2347
  %v3524 = vpack.c.b16 %v2360, %v2354
  %v3525 = vpack.c.b16 %v2361, %v2355
  %v3526 = vpack.c.b16 %v2362, %v2356
  %v3527 = vpack.c.b16 %v2363, %v2357
  %v3528 = vpack.c.b16 %v2364, %v2358
  %v3529 = vpack.c.b16 %v2365, %v2359
  %v3530 = vpack.c.b16 %v2372, %v2366
  %v3531 = vpack.c.b16 %v2373, %v2367
  %v3532 = vpack.c.b16 %v2374, %v2368
  %v3533 = vpack.c.b16 %v2375, %v2369
  %v3534 = vpack.c.b16 %v2376, %v2370
  %v3535 = vpack.c.b16 %v2377, %v2371
  %v3536 = vpack.c.b16 %v2384, %v2378
  %v3537 = vpack.c.b16 %v2385, %v2379
  %v3538 = vpack.c.b16 %v2386, %v2380
  %v3539 = vpack.c.b16 %v2387, %v2381
  %v3540 = vpack.c.b16 %v2388, %v2382
  %v3541 = vpack.c.b16 %v2389, %v2383
  %v3542 = vpack.c.b16 %v2396, %v2390
  %v3543 = vpack.c.b16 %v2397, %v2391
  %v3544 = vpack.c.b16 %v2398, %v2392
  %v3545 = vpack.c.b16 %v2399, %v2393
  %v3546 = vpack.c.b16 %v2400, %v2394
  %v3547 = vpack.c.b16 %v2401, %v2395
  %v3548 = vpack.c.b16 %v2408, %v2402
  %v3549 = vpack.c.b16 %v2409, %v2403
  %v3550 = vpack.c.b16 %v2410, %v2404
  %v3551 = vpack.c.b16 %v2411, %v2405
  %v3552 = vpack.c.b16 %v2412, %v2406
  %v3553 = vpack.c.b16 %v2413, %v2407
  %v3554 = vpack.c.b16 %v2420, %v2414
  %v3555 = vpack.c.b16 %v2421, %v2415
  %v3556 = vpack.c.b16 %v2422, %v2416
  %v3557 = vpack.c.b16 %v2423, %v2417
  %v3558 = vpack.c.b16 %v2424, %v2418
  %v3559 = vpack.c.b16 %v2425, %v2419
  %v3560 = vpack.c.b16 %v2432, %v2426
  %v3561 = vpack.c.b16 %v2433, %v2427
  %v3562 = vpack.c.b16 %v2434, %v2428
  %v3563 = vpack.c.b16 %v2435, %v2429
  %v3564 = vpack.c.b16 %v2436, %v2430
  %v3565 = vpack.c.b16 %v2437, %v2431
  %v3566 = vpack.c.b16 %v2444, %v2438
  %v3567 = vpack.c.b16 %v2445, %v2439
  %v3568 = vpack.c.b16 %v2446, %v2440
  %v3569 = vpack.c.b16 %v2447, %v2441
  %v3570 = vpack.c.b16 %v2448, %v2442
  %v3571 = vpack.c.b16 %v2449, %v2443
  %v3572 = vpack.c.b16 %v2456, %v2450
  %v3573 = vpack.c.b16 %v2457, %v2451
  %v3574 = vpack.c.b16 %v2458, %v2452
  %v3575 = vpack.c.b16 %v2459, %v2453
  %v3576 = vpack.c.b16 %v2460, %v2454
  %v3577 = vpack.c.b16 %v2461, %v2455
  %v3578 = vpack.c.b16 %v2468, %v2462
  %v3579 = vpack.c.b16 %v2469, %v2463
  %v3580 = vpack.c.b16 %v2470, %v2464
  %v3581 = vpack.c.b16 %v2471, %v2465
  %v3582 = vpack.c.b16 %v2472, %v2466
  %v3583 = vpack.c.b16 %v2473, %v2467
  %v3584 = vpack.c.b16 %v2480, %v2474
  %v3585 = vpack.c.b16 %v2481, %v2475
  %v3586 = vpack.c.b16 %v2482, %v2476
  %v3587 = vpack.c.b16 %v2483, %v2477
  %v3588 = vpack.c.b16 %v2484, %v2478
  %v3589 = vpack.c.b16 %v2485, %v2479
  %v3590 = vpack.c.b16 %v2492, %v2486
  %v3591 = vpack.c.b16 %v2493, %v2487
  %v3592 = vpack.c.b16 %v2494, %v2488
  %v3593 = vpack.c.b16 %v2495, %v2489
  %v3594 = vpack.c.b16 %v2496, %v2490
  %v3595 = vpack.c.b16 %v2497, %v2491
  %v3596 = vpack.c.b16 %v2504, %v2498
  %v3597 = vpack.c.b16 %v2505, %v2499
  %v3598 = vpack.c.b16 %v2506, %v2500
  %v3599 = vpack.c.b16 %v2507, %v2501
  %v3600 = vpack.c.b16 %v2508, %v2502
  %v3601 = vpack.c.b16 %v2509, %v2503
  %v3602 = vpack.c.b16 %v2516, %v2510
  %v3603 = vpack.c.b16 %v2517, %v2511
  %v3604 = vpack.c.b16 %v2518, %v2512
  %v3605 = vpack.c.b16 %v2519, %v2513
  %v3606 = vpack.c.b16 %v2520, %v2514
  %v3607 = vpack.c.b16 %v2521, %v2515
  %v3608 = vpack.c.b16 %v2528, %v2522
  %v3609 = vpack.c.b16 %v2529, %v2523
  %v3610 = vpack.c.b16 %v2530, %v2524
  %v3611 = vpack.c.b16 %v2531, %v2525
  %v3612 = vpack.c.b16 %v2532, %v2526
  %v3613 = vpack.c.b16 %v2533, %v2527
  %v3614 = vpack.c.b16 %v2540, %v2534
  %v3615 = vpack.c.b16 %v2541, %v2535
  %v3616 = vpack.c.b16 %v2542, %v2536
  %v3617 = vpack.c.b16 %v2543, %v2537
  %v3618 = vpack.c.b16 %v2544, %v2538
  %v3619 = vpack.c.b16 %v2545, %v2539
  %v3620 = vpack.c.b16 %v2552, %v2546
  %v3621 = vpack.c.b16 %v2553, %v2547
  %v3622 = vpack.c.b16 %v2554, %v2548
  %v3623 = vpack.c.b16 %v2555, %v2549
  %v3624 = vpack.c.b16 %v2556, %v2550
  %v3625 = vpack.c.b16 %v2557, %v2551
  %v3626 = vpack.c.b16 %v2564, %v2558
  %v3627 = vpack.c.b16 %v2565, %v2559
  %v3628 = vpack.c.b16 %v2566, %v2560
  %v3629 = vpack.c.b16 %v2567, %v2561
  %v3630 = vpack.c.b16 %v2568, %v2562
  %v3631 = vpack.c.b16 %v2569, %v2563
  %v3632 = vpack.c.b16 %v2576, %v2570
  %v3633 = vpack.c.b16 %v2577, %v2571
  %v3634 = vpack.c.b16 %v2578, %v2572
  %v3635 = vpack.c.b16 %v2579, %v2573
  %v3636 = vpack.c.b16 %v2580, %v2574
  %v3637 = vpack.c.b16 %v2581, %v2575
  %v3638 = vpack.c.b16 %v2588, %v2582
  %v3639 = vpack.c.b16 %v2589, %v2583
  %v3640 = vpack.c.b16 %v2590, %v2584
  %v3641 = vpack.c.b16 %v2591, %v2585
  %v3642 = vpack.c.b16 %v2592, %v2586
  %v3643 = vpack.c.b16 %v2593, %v2587
  %v3644 = vpack.c.b16 %v2600, %v2594
  %v3645 = vpack.c.b16 %v2601, %v2595
  %v3646 = vpack.c.b16 %v2602, %v2596
  %v3647 = vpack.c.b16 %v2603, %v2597
  %v3648 = vpack.c.b16 %v2604, %v2598
  %v3649 = vpack.c.b16 %v2605, %v2599
  %v3650 = vpack.c.b16 %v2612, %v2606
  %v3651 = vpack.c.b16 %v2613, %v2607
  %v3652 = vpack.c.b16 %v2614, %v2608
  %v3653 = vpack.c.b16 %v2615, %v2609
  %v3654 = vpack.c.b16 %v2616, %v2610
  %v3655 = vpack.c.b16 %v2617, %v2611
  %v3656 = vpack.c.b16 %v2624, %v2618
  %v3657 = vpack.c.b16 %v2625, %v2619
  %v3658 = vpack.c.b16 %v2626, %v2620
  %v3659 = vpack.c.b16 %v2627, %v2621
  %v3660 = vpack.c.b16 %v2628, %v2622
  %v3661 = vpack.c.b16 %v2629, %v2623
  %v3662 = vpack.c.b16 %v2636, %v2630
  %v3663 = vpack.c.b16 %v2637, %v2631
  %v3664 = vpack.c.b16 %v2638, %v2632
  %v3665 = vpack.c.b16 %v2639, %v2633
  %v3666 = vpack.c.b16 %v2640, %v2634
  %v3667 = vpack.c.b16 %v2641, %v2635
  %v3668 = vpack.c.b16 %v2648, %v2642
  %v3669 = vpack.c.b16 %v2649, %v2643
  %v3670 = vpack.c.b16 %v2650, %v2644
  %v3671 = vpack.c.b16 %v2651, %v2645
  %v3672 = vpack.c.b16 %v2652, %v2646
  %v3673 = vpack.c.b16 %v2653, %v2647
  %v3674 = vpack.c.b16 %v2660, %v2654
  %v3675 = vpack.c.b16 %v2661, %v2655
  %v3676 = vpack.c.b16 %v2662, %v2656
  %v3677 = vpack.c.b16 %v2663, %v2657
  %v3678 = vpack.c.b16 %v2664, %v2658
  %v3679 = vpack.c.b16 %v2665, %v2659
  %v3680 = vpack.c.b16 %v2672, %v2666
  %v3681 = vpack.c.b16 %v2673, %v2667
  %v3682 = vpack.c.b16 %v2674, %v2668
  %v3683 = vpack.c.b16 %v2675, %v2669
  %v3684 = vpack.c.b16 %v2676, %v2670
  %v3685 = vpack.c.b16 %v2677, %v2671
  %v3686 = vpack.c.b16 %v2684, %v2678
  %v3687 = vpack.c.b16 %v2685, %v2679
  %v3688 = vpack.c.b16 %v2686, %v2680
  %v3689 = vpack.c.b16 %v2687, %v2681
  %v3690 = vpack.c.b16 %v2688, %v2682
  %v3691 = vpack.c.b16 %v2689, %v2683
  %v3692 = vpack.c.b16 %v2696, %v2690
  %v3693 = vpack.c.b16 %v2697, %v2691
  %v3694 = vpack.c.b16 %v2698, %v2692
  %v3695 = vpack.c.b16 %v2699, %v2693
  %v3696 = vpack.c.b16 %v2700, %v2694
  %v3697 = vpack.c.b16 %v2701, %v2695
  %v3698 = vpack.c.b16 %v2708, %v2702
  %v3699 = vpack.c.b16 %v2709, %v2703
  %v3700 = vpack.c.b16 %v2710, %v2704
  %v3701 = vpack.c.b16 %v2711, %v2705
  %v3702 = vpack.c.b16 %v2712, %v2706
  %v3703 = vpack.c.b16 %v2713, %v2707
  %v3704 = vpack.c.b16 %v2720, %v2714
  %v3705 = vpack.c.b16 %v2721, %v2715
  %v3706 = vpack.c.b16 %v2722, %v2716
  %v3707 = vpack.c.b16 %v2723, %v2717
  %v3708 = vpack.c.b16 %v2724, %v2718
  %v3709 = vpack.c.b16 %v2725, %v2719
  %v3710 = vpack.c.b16 %v2732, %v2726
  %v3711 = vpack.c.b16 %v2733, %v2727
  %v3712 = vpack.c.b16 %v2734, %v2728
  %v3713 = vpack.c.b16 %v2735, %v2729
  %v3714 = vpack.c.b16 %v2736, %v2730
  %v3715 = vpack.c.b16 %v2737, %v2731
  %v3716 = vpack.c.b16 %v2744, %v2738
  %v3717 = vpack.c.b16 %v2745, %v2739
  %v3718 = vpack.c.b16 %v2746, %v2740
  %v3719 = vpack.c.b16 %v2747, %v2741
  %v3720 = vpack.c.b16 %v2748, %v2742
  %v3721 = vpack.c.b16 %v2749, %v2743
  %v3722 = vpack.c.b16 %v2756, %v2750
  %v3723 = vpack.c.b16 %v2757, %v2751
  %v3724 = vpack.c.b16 %v2758, %v2752
  %v3725 = vpack.c.b16 %v2759, %v2753
  %v3726 = vpack.c.b16 %v2760, %v2754
  %v3727 = vpack.c.b16 %v2761, %v2755
  %v3728 = vpack.c.b16 %v2768, %v2762
  %v3729 = vpack.c.b16 %v2769, %v2763
  %v3730 = vpack.c.b16 %v2770, %v2764
  %v3731 = vpack.c.b16 %v2771, %v2765
  %v3732 = vpack.c.b16 %v2772, %v2766
  %v3733 = vpack.c.b16 %v2773, %v2767
  %v3734 = vpack.c.b16 %v2780, %v2774
  %v3735 = vpack.c.b16 %v2781, %v2775
  %v3736 = vpack.c.b16 %v2782, %v2776
  %v3737 = vpack.c.b16 %v2783, %v2777
  %v3738 = vpack.c.b16 %v2784, %v2778
  %v3739 = vpack.c.b16 %v2785, %v2779
  %v3740 = vpack.c.b16 %v2792, %v2786
  %v3741 = vpack.c.b16 %v2793, %v2787
  %v3742 = vpack.c.b16 %v2794, %v2788
  %v3743 = vpack.c.b16 %v2795, %v2789
  %v3744 = vpack.c.b16 %v2796, %v2790
  %v3745 = vpack.c.b16 %v2797, %v2791
  %v3746 = vpack.c.b16 %v2804, %v2798
  %v3747 = vpack.c.b16 %v2805, %v2799
  %v3748 = vpack.c.b16 %v2806, %v2800
  %v3749 = vpack.c.b16 %v2807, %v2801
  %v3750 = vpack.c.b16 %v2808, %v2802
  %v3751 = vpack.c.b16 %v2809, %v2803
  %v3752 = vpack.c.b16 %v2816, %v2810
  %v3753 = vpack.c.b16 %v2817, %v2811
  %v3754 = vpack.c.b16 %v2818, %v2812
  %v3755 = vpack.c.b16 %v2819, %v2813
  %v3756 = vpack.c.b16 %v2820, %v2814
  %v3757 = vpack.c.b16 %v2821, %v2815
  %v3758 = vpack.c.b16 %v2828, %v2822
  %v3759 = vpack.c.b16 %v2829, %v2823
  %v3760 = vpack.c.b16 %v2830, %v2824
  %v3761 = vpack.c.b16 %v2831, %v2825
  %v3762 = vpack.c.b16 %v2832, %v2826
  %v3763 = vpack.c.b16 %v2833, %v2827
  %v3764 = vpack.c.b16 %v2840, %v2834
  %v3765 = vpack.c.b16 %v2841, %v2835
  %v3766 = vpack.c.b16 %v2842, %v2836
  %v3767 = vpack.c.b16 %v2843, %v2837
  %v3768 = vpack.c.b16 %v2844, %v2838
  %v3769 = vpack.c.b16 %v2845, %v2839
  %v3770 = vpack.c.b16 %v2852, %v2846
  %v3771 = vpack.c.b16 %v2853, %v2847
  %v3772 = vpack.c.b16 %v2854, %v2848
  %v3773 = vpack.c.b16 %v2855, %v2849
  %v3774 = vpack.c.b16 %v2856, %v2850
  %v3775 = vpack.c.b16 %v2857, %v2851
  %v3776 = vpack.c.b16 %v2864, %v2858
  %v3777 = vpack.c.b16 %v2865, %v2859
  %v3778 = vpack.c.b16 %v2866, %v2860
  %v3779 = vpack.c.b16 %v2867, %v2861
  %v3780 = vpack.c.b16 %v2868, %v2862
  %v3781 = vpack.c.b16 %v2869, %v2863
  %v3782 = vpack.c.b16 %v2876, %v2870
  %v3783 = vpack.c.b16 %v2877, %v2871
  %v3784 = vpack.c.b16 %v2878, %v2872
  %v3785 = vpack.c.b16 %v2879, %v2873
  %v3786 = vpack.c.b16 %v2880, %v2874
  %v3787 = vpack.c.b16 %v2881, %v2875
  %v3788 = vpack.c.b16 %v2888, %v2882
  %v3789 = vpack.c.b16 %v2889, %v2883
  %v3790 = vpack.c.b16 %v2890, %v2884
  %v3791 = vpack.c.b16 %v2891, %v2885
  %v3792 = vpack.c.b16 %v2892, %v2886
  %v3793 = vpack.c.b16 %v2893, %v2887
  %v3794 = vpack.c.b16 %v2900, %v2894
  %v3795 = vpack.c.b16 %v2901, %v2895
  %v3796 = vpack.c.b16 %v2902, %v2896
  %v3797 = vpack.c.b16 %v2903, %v2897
  %v3798 = vpack.c.b16 %v2904, %v2898
  %v3799 = vpack.c.b16 %v2905, %v2899
  %v3800 = vpack.c.b16 %v2912, %v2906
  %v3801 = vpack.c.b16 %v2913, %v2907
  %v3802 = vpack.c.b16 %v2914, %v2908
  %v3803 = vpack.c.b16 %v2915, %v2909
  %v3804 = vpack.c.b16 %v2916, %v2910
  %v3805 = vpack.c.b16 %v2917, %v2911
  %v3806 = vpack.c.b16 %v2924, %v2918
  %v3807 = vpack.c.b16 %v2925, %v2919
  %v3808 = vpack.c.b16 %v2926, %v2920
  %v3809 = vpack.c.b16 %v2927, %v2921
  %v3810 = vpack.c.b16 %v2928, %v2922
  %v3811 = vpack.c.b16 %v2929, %v2923
  %v3812 = vpack.c.b16 %v2936, %v2930
  %v3813 = vpack.c.b16 %v2937, %v2931
  %v3814 = vpack.c.b16 %v2938, %v2932
  %v3815 = vpack.c.b16 %v2939, %v2933
  %v3816 = vpack.c.b16 %v2940, %v2934
  %v3817 = vpack.c.b16 %v2941, %v2935
  %v3818 = vpack.c.b16 %v2948, %v2942
  %v3819 = vpack.c.b16 %v2949, %v2943
  %v3820 = vpack.c.b16 %v2950, %v2944
  %v3821 = vpack.c.b16 %v2951, %v2945
  %v3822 = vpack.c.b16 %v2952, %v2946
  %v3823 = vpack.c.b16 %v2953, %v2947
  %v3824 = vpack.c.b16 %v2960, %v2954
  %v3825 = vpack.c.b16 %v2961, %v2955
  %v3826 = vpack.c.b16 %v2962, %v2956
  %v3827 = vpack.c.b16 %v2963, %v2957
  %v3828 = vpack.c.b16 %v2964, %v2958
  %v3829 = vpack.c.b16 %v2965, %v2959
  %v3830 = vpack.c.b16 %v2972, %v2966
  %v3831 = vpack.c.b16 %v2973, %v2967
  %v3832 = vpack.c.b16 %v2974, %v2968
  %v3833 = vpack.c.b16 %v2975, %v2969
  %v3834 = vpack.c.b16 %v2976, %v2970
  %v3835 = vpack.c.b16 %v2977, %v2971
  %v3836 = vpack.c.b16 %v2984, %v2978
  %v3837 = vpack.c.b16 %v2985, %v2979
  %v3838 = vpack.c.b16 %v2986, %v2980
  %v3839 = vpack.c.b16 %v2987, %v2981
  %v3840 = vpack.c.b16 %v2988, %v2982
  %v3841 = vpack.c.b16 %v2989, %v2983
  %v3842 = vpack.c.b16 %v2996, %v2990
  %v3843 = vpack.c.b16 %v2997, %v2991
  %v3844 = vpack.c.b16 %v2998, %v2992
  %v3845 = vpack.c.b16 %v2999, %v2993
  %v3846 = vpack.c.b16 %v3000, %v2994
  %v3847 = vpack.c.b16 %v3001, %v2995
  %v3848 = vpack.c.b16 %v3008, %v3002
  %v3849 = vpack.c.b16 %v3009, %v3003
  %v3850 = vpack.c.b16 %v3010, %v3004
  %v3851 = vpack.c.b16 %v3011, %v3005
  %v3852 = vpack.c.b16 %v3012, %v3006
  %v3853 = vpack.c.b16 %v3013, %v3007
  %v3854 = vpack.c.b16 %v3020, %v3014
  %v3855 = vpack.c.b16 %v3021, %v3015
  %v3856 = vpack.c.b16 %v3022, %v3016
  %v3857 = vpack.c.b16 %v3023, %v3017
  %v3858 = vpack.c.b16 %v3024, %v3018
  %v3859 = vpack.c.b16 %v3025, %v3019
  %v3860 = vpack.c.b16 %v3032, %v3026
  %v3861 = vpack.c.b16 %v3033, %v3027
  %v3862 = vpack.c.b16 %v3034, %v3028
  %v3863 = vpack.c.b16 %v3035, %v3029
  %v3864 = vpack.c.b16 %v3036, %v3030
  %v3865 = vpack.c.b16 %v3037, %v3031
  %v3866 = vpack.c.b16 %v3044, %v3038
  %v3867 = vpack.c.b16 %v3045, %v3039
  %v3868 = vpack.c.b16 %v3046, %v3040
  %v3869 = vpack.c.b16 %v3047, %v3041
  %v3870 = vpack.c.b16 %v3048, %v3042
  %v3871 = vpack.c.b16 %v3049, %v3043
  %v3872 = vpack.c.b16 %v3056, %v3050
  %v3873 = vpack.c.b16 %v3057, %v3051
  %v3874 = vpack.c.b16 %v3058, %v3052
  %v3875 = vpack.c.b16 %v3059, %v3053
  %v3876 = vpack.c.b16 %v3060, %v3054
  %v3877 = vpack.c.b16 %v3061, %v3055
  %v3878 = vpack.c.b16 %v3068, %v3062
  %v3879 = vpack.c.b16 %v3069, %v3063
  %v3880 = vpack.c.b16 %v3070, %v3064
  %v3881 = vpack.c.b16 %v3071, %v3065
  %v3882 = vpack.c.b16 %v3072, %v3066
  %v3883 = vpack.c.b16 %v3073, %v3067
  %v3884 = vpack.c.b16 %v3080, %v3074
  %v3885 = vpack.c.b16 %v3081, %v3075
  %v3886 = vpack.c.b16 %v3082, %v3076
  %v3887 = vpack.c.b16 %v3083, %v3077
  %v3888 = vpack.c.b16 %v3084, %v3078
  %v3889 = vpack.c.b16 %v3085, %v3079
  %v3890 = vpack.c.b16 %v3092, %v3086
  %v3891 = vpack.c.b16 %v3093, %v3087
  %v3892 = vpack.c.b16 %v3094, %v3088
  %v3893 = vpack.c.b16 %v3095, %v3089
  %v3894 = vpack.c.b16 %v3096, %v3090
  %v3895 = vpack.c.b16 %v3097, %v3091
  %v3896 = vpack.c.b16 %v3104, %v3098
  %v3897 = vpack.c.b16 %v3105, %v3099
  %v3898 = vpack.c.b16 %v3106, %v3100
  %v3899 = vpack.c.b16 %v3107, %v3101
  %v3900 = vpack.c.b16 %v3108, %v3102
  %v3901 = vpack.c.b16 %v3109, %v3103
  %v3902 = vpack.c.b16 %v3116, %v3110
  %v3903 = vpack.c.b16 %v3117, %v3111
  %v3904 = vpack.c.b16 %v3118, %v3112
  %v3905 = vpack.c.b16 %v3119, %v3113
  %v3906 = vpack.c.b16 %v3120, %v3114
  %v3907 = vpack.c.b16 %v3121, %v3115
  %v3908 = vpack.c.b16 %v3128, %v3122
  %v3909 = vpack.c.b16 %v3129, %v3123
  %v3910 = vpack.c.b16 %v3130, %v3124
  %v3911 = vpack.c.b16 %v3131, %v3125
  %v3912 = vpack.c.b16 %v3132, %v3126
  %v3913 = vpack.c.b16 %v3133, %v3127
  %v3914 = vpack.c.b16 %v3140, %v3134
  %v3915 = vpack.c.b16 %v3141, %v3135
  %v3916 = vpack.c.b16 %v3142, %v3136
  %v3917 = vpack.c.b16 %v3143, %v3137
  %v3918 = vpack.c.b16 %v3144, %v3138
  %v3919 = vpack.c.b16 %v3145, %v3139
  %v3920 = vpack.c.b16 %v3152, %v3146
  %v3921 = vpack.c.b16 %v3153, %v3147
  %v3922 = vpack.c.b16 %v3154, %v3148
  %v3923 = vpack.c.b16 %v3155, %v3149
  %v3924 = vpack.c.b16 %v3156, %v3150
  %v3925 = vpack.c.b16 %v3157, %v3151
  %4694 = vmatprep.subr.bf16.mxu0 %v3159
  %4695 = vmatpush1.bf16.msra.mxu0 %v3158
  %4696 = vmatprep.subr.bf16.mxu0 %v3165
  %4697 = vmatpush1.bf16.msra.mxu0 %v3164
  %4698 = vmatprep.subr.bf16.mxu0 %v3171
  %4699 = vmatpush1.bf16.msra.mxu0 %v3170
  %4700 = vmatprep.subr.bf16.mxu0 %v3177
  %4701 = vmatpush1.bf16.msra.mxu0 %v3176
  %4702 = vmatprep.subr.bf16.mxu0 %v3183
  %4703 = vmatpush1.bf16.msra.mxu0 %v3182
  %4704 = vmatprep.subr.bf16.mxu0 %v3189
  %4705 = vmatpush1.bf16.msra.mxu0 %v3188
  %4706 = vmatprep.subr.bf16.mxu0 %v3195
  %4707 = vmatpush1.bf16.msra.mxu0 %v3194
  %4708 = vmatprep.subr.bf16.mxu0 %v3201
  %4709 = vmatpush1.bf16.msra.mxu0 %v3200
  %4710 = vmatprep.subr.bf16.mxu0 %v3207
  %4711 = vmatpush1.bf16.msra.mxu0 %v3206
  %4712 = vmatprep.subr.bf16.mxu0 %v3213
  %4713 = vmatpush1.bf16.msra.mxu0 %v3212
  %4714 = vmatprep.subr.bf16.mxu0 %v3219
  %4715 = vmatpush1.bf16.msra.mxu0 %v3218
  %4716 = vmatprep.subr.bf16.mxu0 %v3225
  %4717 = vmatpush1.bf16.msra.mxu0 %v3224
  %4718 = vmatprep.subr.bf16.mxu0 %v3231
  %4719 = vmatpush1.bf16.msra.mxu0 %v3230
  %4720 = vmatprep.subr.bf16.mxu0 %v3237
  %4721 = vmatpush1.bf16.msra.mxu0 %v3236
  %4722 = vmatprep.subr.bf16.mxu0 %v3243
  %4723 = vmatpush1.bf16.msra.mxu0 %v3242
  %4724 = vmatprep.subr.bf16.mxu0 %v3249
  %4725 = vmatpush1.bf16.msra.mxu0 %v3248
  %4726 = vmatprep.mubr.bf16.mxu0 %v59
  %4727 = vmatmul.mubr.bf16.gmra.mrb[0].mxu0 %v58
  %v4728 = vpop.f32.mrb[0].mxu0
  %v4729 = vadd.f32 %v842, %v4728
  %v4730 = vpop.f32.mrb[0].mxu0
  %v4731 = vadd.f32 %v843, %v4730
  %v4732 = vpop.f32.mrb[0].mxu0
  %v4733 = vadd.f32 %v848, %v4732
  %v4734 = vpop.f32.mrb[0].mxu0
  %v4735 = vadd.f32 %v849, %v4734
  %4736 = vdwg.mxu0
  %4737 = vmatprep.subr.bf16.mxu0 %v3255
  %4738 = vmatpush1.bf16.msra.mxu0 %v3254
  %4739 = vmatprep.subr.bf16.mxu0 %v3261
  %4740 = vmatpush1.bf16.msra.mxu0 %v3260
  %4741 = vmatprep.subr.bf16.mxu0 %v3267
  %4742 = vmatpush1.bf16.msra.mxu0 %v3266
  %4743 = vmatprep.subr.bf16.mxu0 %v3273
  %4744 = vmatpush1.bf16.msra.mxu0 %v3272
  %4745 = vmatprep.subr.bf16.mxu0 %v3279
  %4746 = vmatpush1.bf16.msra.mxu0 %v3278
  %4747 = vmatprep.subr.bf16.mxu0 %v3285
  %4748 = vmatpush1.bf16.msra.mxu0 %v3284
  %4749 = vmatprep.subr.bf16.mxu0 %v3291
  %4750 = vmatpush1.bf16.msra.mxu0 %v3290
  %4751 = vmatprep.subr.bf16.mxu0 %v3297
  %4752 = vmatpush1.bf16.msra.mxu0 %v3296
  %4753 = vmatprep.subr.bf16.mxu0 %v3303
  %4754 = vmatpush1.bf16.msra.mxu0 %v3302
  %4755 = vmatprep.subr.bf16.mxu0 %v3309
  %4756 = vmatpush1.bf16.msra.mxu0 %v3308
  %4757 = vmatprep.subr.bf16.mxu0 %v3315
  %4758 = vmatpush1.bf16.msra.mxu0 %v3314
  %4759 = vmatprep.subr.bf16.mxu0 %v3321
  %4760 = vmatpush1.bf16.msra.mxu0 %v3320
  %4761 = vmatprep.subr.bf16.mxu0 %v3327
  %4762 = vmatpush1.bf16.msra.mxu0 %v3326
  %4763 = vmatprep.subr.bf16.mxu0 %v3333
  %4764 = vmatpush1.bf16.msra.mxu0 %v3332
  %4765 = vmatprep.subr.bf16.mxu0 %v3339
  %4766 = vmatpush1.bf16.msra.mxu0 %v3338
  %4767 = vmatprep.subr.bf16.mxu0 %v3345
  %4768 = vmatpush1.bf16.msra.mxu0 %v3344
  %4769 = vmatprep.mubr.bf16.mxu0 %v61
  %4770 = vmatmul.mubr.bf16.gmra.mrb[0].mxu0 %v60
  %v4771 = vpop.f32.mrb[0].mxu0
  %v4772 = vadd.f32 %v4729, %v4771
  %v4773 = vpop.f32.mrb[0].mxu0
  %v4774 = vadd.f32 %v4731, %v4773
  %v4775 = vpop.f32.mrb[0].mxu0
  %v4776 = vadd.f32 %v4733, %v4775
  %v4777 = vpop.f32.mrb[0].mxu0
  %v4778 = vadd.f32 %v4735, %v4777
  %4779 = vdwg.mxu0
  %4780 = vmatprep.subr.bf16.mxu0 %v3351
  %4781 = vmatpush1.bf16.msra.mxu0 %v3350
  %4782 = vmatprep.subr.bf16.mxu0 %v3357
  %4783 = vmatpush1.bf16.msra.mxu0 %v3356
  %4784 = vmatprep.subr.bf16.mxu0 %v3363
  %4785 = vmatpush1.bf16.msra.mxu0 %v3362
  %4786 = vmatprep.subr.bf16.mxu0 %v3369
  %4787 = vmatpush1.bf16.msra.mxu0 %v3368
  %4788 = vmatprep.subr.bf16.mxu0 %v3375
  %4789 = vmatpush1.bf16.msra.mxu0 %v3374
  %4790 = vmatprep.subr.bf16.mxu0 %v3381
  %4791 = vmatpush1.bf16.msra.mxu0 %v3380
  %4792 = vmatprep.subr.bf16.mxu0 %v3387
  %4793 = vmatpush1.bf16.msra.mxu0 %v3386
  %4794 = vmatprep.subr.bf16.mxu0 %v3393
  %4795 = vmatpush1.bf16.msra.mxu0 %v3392
  %4796 = vmatprep.subr.bf16.mxu0 %v3399
  %4797 = vmatpush1.bf16.msra.mxu0 %v3398
  %4798 = vmatprep.subr.bf16.mxu0 %v3405
  %4799 = vmatpush1.bf16.msra.mxu0 %v3404
  %4800 = vmatprep.subr.bf16.mxu0 %v3411
  %4801 = vmatpush1.bf16.msra.mxu0 %v3410
  %4802 = vmatprep.subr.bf16.mxu0 %v3417
  %4803 = vmatpush1.bf16.msra.mxu0 %v3416
  %4804 = vmatprep.subr.bf16.mxu0 %v3423
  %4805 = vmatpush1.bf16.msra.mxu0 %v3422
  %4806 = vmatprep.subr.bf16.mxu0 %v3429
  %4807 = vmatpush1.bf16.msra.mxu0 %v3428
  %4808 = vmatprep.subr.bf16.mxu0 %v3435
  %4809 = vmatpush1.bf16.msra.mxu0 %v3434
  %4810 = vmatprep.subr.bf16.mxu0 %v3441
  %4811 = vmatpush1.bf16.msra.mxu0 %v3440
  %4812 = vmatprep.mubr.bf16.mxu0 %v63
  %4813 = vmatmul.mubr.bf16.gmra.mrb[0].mxu0 %v62
  %v4814 = vpop.f32.mrb[0].mxu0
  %v4815 = vadd.f32 %v4772, %v4814
  %v4816 = vpop.f32.mrb[0].mxu0
  %v4817 = vadd.f32 %v4774, %v4816
  %v4818 = vpop.f32.mrb[0].mxu0
  %v4819 = vadd.f32 %v4776, %v4818
  %v4820 = vpop.f32.mrb[0].mxu0
  %v4821 = vadd.f32 %v4778, %v4820
  %4822 = vdwg.mxu0
  %4823 = vmatprep.subr.bf16.mxu0 %v3447
  %4824 = vmatpush1.bf16.msra.mxu0 %v3446
  %4825 = vmatprep.subr.bf16.mxu0 %v3453
  %4826 = vmatpush1.bf16.msra.mxu0 %v3452
  %4827 = vmatprep.subr.bf16.mxu0 %v3459
  %4828 = vmatpush1.bf16.msra.mxu0 %v3458
  %4829 = vmatprep.subr.bf16.mxu0 %v3465
  %4830 = vmatpush1.bf16.msra.mxu0 %v3464
  %4831 = vmatprep.subr.bf16.mxu0 %v3471
  %4832 = vmatpush1.bf16.msra.mxu0 %v3470
  %4833 = vmatprep.subr.bf16.mxu0 %v3477
  %4834 = vmatpush1.bf16.msra.mxu0 %v3476
  %4835 = vmatprep.subr.bf16.mxu0 %v3483
  %4836 = vmatpush1.bf16.msra.mxu0 %v3482
  %4837 = vmatprep.subr.bf16.mxu0 %v3489
  %4838 = vmatpush1.bf16.msra.mxu0 %v3488
  %4839 = vmatprep.subr.bf16.mxu0 %v3495
  %4840 = vmatpush1.bf16.msra.mxu0 %v3494
  %4841 = vmatprep.subr.bf16.mxu0 %v3501
  %4842 = vmatpush1.bf16.msra.mxu0 %v3500
  %4843 = vmatprep.subr.bf16.mxu0 %v3507
  %4844 = vmatpush1.bf16.msra.mxu0 %v3506
  %4845 = vmatprep.subr.bf16.mxu0 %v3513
  %4846 = vmatpush1.bf16.msra.mxu0 %v3512
  %4847 = vmatprep.subr.bf16.mxu0 %v3519
  %4848 = vmatpush1.bf16.msra.mxu0 %v3518
  %4849 = vmatprep.subr.bf16.mxu0 %v3525
  %4850 = vmatpush1.bf16.msra.mxu0 %v3524
  %4851 = vmatprep.subr.bf16.mxu0 %v3531
  %4852 = vmatpush1.bf16.msra.mxu0 %v3530
  %4853 = vmatprep.subr.bf16.mxu0 %v3537
  %4854 = vmatpush1.bf16.msra.mxu0 %v3536
  %4855 = vmatprep.mubr.bf16.mxu0 %v65
  %4856 = vmatmul.mubr.bf16.gmra.mrb[0].mxu0 %v64
  %v4857 = vpop.f32.mrb[0].mxu0
  %v4858 = vadd.f32 %v4815, %v4857
  %v4859 = vpop.f32.mrb[0].mxu0
  %v4860 = vadd.f32 %v4817, %v4859
  %v4861 = vpop.f32.mrb[0].mxu0
  %v4862 = vadd.f32 %v4819, %v4861
  %v4863 = vpop.f32.mrb[0].mxu0
  %v4864 = vadd.f32 %v4821, %v4863
  %4865 = vdwg.mxu0
  %4866 = vmatprep.subr.bf16.mxu0 %v3543
  %4867 = vmatpush1.bf16.msra.mxu0 %v3542
  %4868 = vmatprep.subr.bf16.mxu0 %v3549
  %4869 = vmatpush1.bf16.msra.mxu0 %v3548
  %4870 = vmatprep.subr.bf16.mxu0 %v3555
  %4871 = vmatpush1.bf16.msra.mxu0 %v3554
  %4872 = vmatprep.subr.bf16.mxu0 %v3561
  %4873 = vmatpush1.bf16.msra.mxu0 %v3560
  %4874 = vmatprep.subr.bf16.mxu0 %v3567
  %4875 = vmatpush1.bf16.msra.mxu0 %v3566
  %4876 = vmatprep.subr.bf16.mxu0 %v3573
  %4877 = vmatpush1.bf16.msra.mxu0 %v3572
  %4878 = vmatprep.subr.bf16.mxu0 %v3579
  %4879 = vmatpush1.bf16.msra.mxu0 %v3578
  %4880 = vmatprep.subr.bf16.mxu0 %v3585
  %4881 = vmatpush1.bf16.msra.mxu0 %v3584
  %4882 = vmatprep.subr.bf16.mxu0 %v3591
  %4883 = vmatpush1.bf16.msra.mxu0 %v3590
  %4884 = vmatprep.subr.bf16.mxu0 %v3597
  %4885 = vmatpush1.bf16.msra.mxu0 %v3596
  %4886 = vmatprep.subr.bf16.mxu0 %v3603
  %4887 = vmatpush1.bf16.msra.mxu0 %v3602
  %4888 = vmatprep.subr.bf16.mxu0 %v3609
  %4889 = vmatpush1.bf16.msra.mxu0 %v3608
  %4890 = vmatprep.subr.bf16.mxu0 %v3615
  %4891 = vmatpush1.bf16.msra.mxu0 %v3614
  %4892 = vmatprep.subr.bf16.mxu0 %v3621
  %4893 = vmatpush1.bf16.msra.mxu0 %v3620
  %4894 = vmatprep.subr.bf16.mxu0 %v3627
  %4895 = vmatpush1.bf16.msra.mxu0 %v3626
  %4896 = vmatprep.subr.bf16.mxu0 %v3633
  %4897 = vmatpush1.bf16.msra.mxu0 %v3632
  %4898 = vmatprep.mubr.bf16.mxu0 %v67
  %4899 = vmatmul.mubr.bf16.gmra.mrb[0].mxu0 %v66
  %v4900 = vpop.f32.mrb[0].mxu0
  %v4901 = vadd.f32 %v4858, %v4900
  %v4902 = vpop.f32.mrb[0].mxu0
  %v4903 = vadd.f32 %v4860, %v4902
  %v4904 = vpop.f32.mrb[0].mxu0
  %v4905 = vadd.f32 %v4862, %v4904
  %v4906 = vpop.f32.mrb[0].mxu0
  %v4907 = vadd.f32 %v4864, %v4906
  %4908 = vdwg.mxu0
  %4909 = vmatprep.subr.bf16.mxu0 %v3639
  %4910 = vmatpush1.bf16.msra.mxu0 %v3638
  %4911 = vmatprep.subr.bf16.mxu0 %v3645
  %4912 = vmatpush1.bf16.msra.mxu0 %v3644
  %4913 = vmatprep.subr.bf16.mxu0 %v3651
  %4914 = vmatpush1.bf16.msra.mxu0 %v3650
  %4915 = vmatprep.subr.bf16.mxu0 %v3657
  %4916 = vmatpush1.bf16.msra.mxu0 %v3656
  %4917 = vmatprep.subr.bf16.mxu0 %v3663
  %4918 = vmatpush1.bf16.msra.mxu0 %v3662
  %4919 = vmatprep.subr.bf16.mxu0 %v3669
  %4920 = vmatpush1.bf16.msra.mxu0 %v3668
  %4921 = vmatprep.subr.bf16.mxu0 %v3675
  %4922 = vmatpush1.bf16.msra.mxu0 %v3674
  %4923 = vmatprep.subr.bf16.mxu0 %v3681
  %4924 = vmatpush1.bf16.msra.mxu0 %v3680
  %4925 = vmatprep.subr.bf16.mxu0 %v3687
  %4926 = vmatpush1.bf16.msra.mxu0 %v3686
  %4927 = vmatprep.subr.bf16.mxu0 %v3693
  %4928 = vmatpush1.bf16.msra.mxu0 %v3692
  %4929 = vmatprep.subr.bf16.mxu0 %v3699
  %4930 = vmatpush1.bf16.msra.mxu0 %v3698
  %4931 = vmatprep.subr.bf16.mxu0 %v3705
  %4932 = vmatpush1.bf16.msra.mxu0 %v3704
  %4933 = vmatprep.subr.bf16.mxu0 %v3711
  %4934 = vmatpush1.bf16.msra.mxu0 %v3710
  %4935 = vmatprep.subr.bf16.mxu0 %v3717
  %4936 = vmatpush1.bf16.msra.mxu0 %v3716
  %4937 = vmatprep.subr.bf16.mxu0 %v3723
  %4938 = vmatpush1.bf16.msra.mxu0 %v3722
  %4939 = vmatprep.subr.bf16.mxu0 %v3729
  %4940 = vmatpush1.bf16.msra.mxu0 %v3728
  %4941 = vmatprep.mubr.bf16.mxu0 %v69
  %4942 = vmatmul.mubr.bf16.gmra.mrb[0].mxu0 %v68
  %v4943 = vpop.f32.mrb[0].mxu0
  %v4944 = vadd.f32 %v4901, %v4943
  %v4945 = vpop.f32.mrb[0].mxu0
  %v4946 = vadd.f32 %v4903, %v4945
  %v4947 = vpop.f32.mrb[0].mxu0
  %v4948 = vadd.f32 %v4905, %v4947
  %v4949 = vpop.f32.mrb[0].mxu0
  %v4950 = vadd.f32 %v4907, %v4949
  %4951 = vdwg.mxu0
  %4952 = vmatprep.subr.bf16.mxu0 %v3735
  %4953 = vmatpush1.bf16.msra.mxu0 %v3734
  %4954 = vmatprep.subr.bf16.mxu0 %v3741
  %4955 = vmatpush1.bf16.msra.mxu0 %v3740
  %4956 = vmatprep.subr.bf16.mxu0 %v3747
  %4957 = vmatpush1.bf16.msra.mxu0 %v3746
  %4958 = vmatprep.subr.bf16.mxu0 %v3753
  %4959 = vmatpush1.bf16.msra.mxu0 %v3752
  %4960 = vmatprep.subr.bf16.mxu0 %v3759
  %4961 = vmatpush1.bf16.msra.mxu0 %v3758
  %4962 = vmatprep.subr.bf16.mxu0 %v3765
  %4963 = vmatpush1.bf16.msra.mxu0 %v3764
  %4964 = vmatprep.subr.bf16.mxu0 %v3771
  %4965 = vmatpush1.bf16.msra.mxu0 %v3770
  %4966 = vmatprep.subr.bf16.mxu0 %v3777
  %4967 = vmatpush1.bf16.msra.mxu0 %v3776
  %4968 = vmatprep.subr.bf16.mxu0 %v3783
  %4969 = vmatpush1.bf16.msra.mxu0 %v3782
  %4970 = vmatprep.subr.bf16.mxu0 %v3789
  %4971 = vmatpush1.bf16.msra.mxu0 %v3788
  %4972 = vmatprep.subr.bf16.mxu0 %v3795
  %4973 = vmatpush1.bf16.msra.mxu0 %v3794
  %4974 = vmatprep.subr.bf16.mxu0 %v3801
  %4975 = vmatpush1.bf16.msra.mxu0 %v3800
  %4976 = vmatprep.subr.bf16.mxu0 %v3807
  %4977 = vmatpush1.bf16.msra.mxu0 %v3806
  %4978 = vmatprep.subr.bf16.mxu0 %v3813
  %4979 = vmatpush1.bf16.msra.mxu0 %v3812
  %4980 = vmatprep.subr.bf16.mxu0 %v3819
  %4981 = vmatpush1.bf16.msra.mxu0 %v3818
  %4982 = vmatprep.subr.bf16.mxu0 %v3825
  %4983 = vmatpush1.bf16.msra.mxu0 %v3824
  %4984 = vmatprep.mubr.bf16.mxu0 %v71
  %4985 = vmatmul.mubr.bf16.gmra.mrb[0].mxu0 %v70
  %v4986 = vpop.f32.mrb[0].mxu0
  %v4987 = vadd.f32 %v4944, %v4986
  %v4988 = vpop.f32.mrb[0].mxu0
  %v4989 = vadd.f32 %v4946, %v4988
  %v4990 = vpop.f32.mrb[0].mxu0
  %v4991 = vadd.f32 %v4948, %v4990
  %v4992 = vpop.f32.mrb[0].mxu0
  %v4993 = vadd.f32 %v4950, %v4992
  %4994 = vdwg.mxu0
  %4995 = vmatprep.subr.bf16.mxu0 %v3831
  %4996 = vmatpush1.bf16.msra.mxu0 %v3830
  %4997 = vmatprep.subr.bf16.mxu0 %v3837
  %4998 = vmatpush1.bf16.msra.mxu0 %v3836
  %4999 = vmatprep.subr.bf16.mxu0 %v3843
  %5000 = vmatpush1.bf16.msra.mxu0 %v3842
  %5001 = vmatprep.subr.bf16.mxu0 %v3849
  %5002 = vmatpush1.bf16.msra.mxu0 %v3848
  %5003 = vmatprep.subr.bf16.mxu0 %v3855
  %5004 = vmatpush1.bf16.msra.mxu0 %v3854
  %5005 = vmatprep.subr.bf16.mxu0 %v3861
  %5006 = vmatpush1.bf16.msra.mxu0 %v3860
  %5007 = vmatprep.subr.bf16.mxu0 %v3867
  %5008 = vmatpush1.bf16.msra.mxu0 %v3866
  %5009 = vmatprep.subr.bf16.mxu0 %v3873
  %5010 = vmatpush1.bf16.msra.mxu0 %v3872
  %5011 = vmatprep.subr.bf16.mxu0 %v3879
  %5012 = vmatpush1.bf16.msra.mxu0 %v3878
  %5013 = vmatprep.subr.bf16.mxu0 %v3885
  %5014 = vmatpush1.bf16.msra.mxu0 %v3884
  %5015 = vmatprep.subr.bf16.mxu0 %v3891
  %5016 = vmatpush1.bf16.msra.mxu0 %v3890
  %5017 = vmatprep.subr.bf16.mxu0 %v3897
  %5018 = vmatpush1.bf16.msra.mxu0 %v3896
  %5019 = vmatprep.subr.bf16.mxu0 %v3903
  %5020 = vmatpush1.bf16.msra.mxu0 %v3902
  %5021 = vmatprep.subr.bf16.mxu0 %v3909
  %5022 = vmatpush1.bf16.msra.mxu0 %v3908
  %5023 = vmatprep.subr.bf16.mxu0 %v3915
  %5024 = vmatpush1.bf16.msra.mxu0 %v3914
  %5025 = vmatprep.subr.bf16.mxu0 %v3921
  %5026 = vmatpush1.bf16.msra.mxu0 %v3920
  %5027 = vmatprep.mubr.bf16.mxu0 %v73
  %5028 = vmatmul.mubr.bf16.gmra.mrb[0].mxu0 %v72
  %v5029 = vpop.f32.mrb[0].mxu0
  %v5030 = vadd.f32 %v4987, %v5029
  %v5031 = vpop.f32.mrb[0].mxu0
  %v5032 = vadd.f32 %v4989, %v5031
  %v5033 = vpop.f32.mrb[0].mxu0
  %v5034 = vadd.f32 %v4991, %v5033
  %v5035 = vpop.f32.mrb[0].mxu0
  %v5036 = vadd.f32 %v4993, %v5035
  %5037 = vdwg.mxu0
  %5038 = vmatprep.subr.bf16.mxu0 %v3161
  %5039 = vmatpush1.bf16.msra.mxu0 %v3160
  %5040 = vmatprep.subr.bf16.mxu0 %v3167
  %5041 = vmatpush1.bf16.msra.mxu0 %v3166
  %5042 = vmatprep.subr.bf16.mxu0 %v3173
  %5043 = vmatpush1.bf16.msra.mxu0 %v3172
  %5044 = vmatprep.subr.bf16.mxu0 %v3179
  %5045 = vmatpush1.bf16.msra.mxu0 %v3178
  %5046 = vmatprep.subr.bf16.mxu0 %v3185
  %5047 = vmatpush1.bf16.msra.mxu0 %v3184
  %5048 = vmatprep.subr.bf16.mxu0 %v3191
  %5049 = vmatpush1.bf16.msra.mxu0 %v3190
  %5050 = vmatprep.subr.bf16.mxu0 %v3197
  %5051 = vmatpush1.bf16.msra.mxu0 %v3196
  %5052 = vmatprep.subr.bf16.mxu0 %v3203
  %5053 = vmatpush1.bf16.msra.mxu0 %v3202
  %5054 = vmatprep.subr.bf16.mxu0 %v3209
  %5055 = vmatpush1.bf16.msra.mxu0 %v3208
  %5056 = vmatprep.subr.bf16.mxu0 %v3215
  %5057 = vmatpush1.bf16.msra.mxu0 %v3214
  %5058 = vmatprep.subr.bf16.mxu0 %v3221
  %5059 = vmatpush1.bf16.msra.mxu0 %v3220
  %5060 = vmatprep.subr.bf16.mxu0 %v3227
  %5061 = vmatpush1.bf16.msra.mxu0 %v3226
  %5062 = vmatprep.subr.bf16.mxu0 %v3233
  %5063 = vmatpush1.bf16.msra.mxu0 %v3232
  %5064 = vmatprep.subr.bf16.mxu0 %v3239
  %5065 = vmatpush1.bf16.msra.mxu0 %v3238
  %5066 = vmatprep.subr.bf16.mxu0 %v3245
  %5067 = vmatpush1.bf16.msra.mxu0 %v3244
  %5068 = vmatprep.subr.bf16.mxu0 %v3251
  %5069 = vmatpush1.bf16.msra.mxu0 %v3250
  %5070 = vmatprep.mubr.bf16.mxu0 %v59
  %5071 = vmatmul.mubr.bf16.gmra.mrb[0].mxu0 %v58
  %v5072 = vpop.f32.mrb[0].mxu0
  %v5073 = vadd.f32 %v844, %v5072
  %v5074 = vpop.f32.mrb[0].mxu0
  %v5075 = vadd.f32 %v845, %v5074
  %v5076 = vpop.f32.mrb[0].mxu0
  %v5077 = vadd.f32 %v850, %v5076
  %v5078 = vpop.f32.mrb[0].mxu0
  %v5079 = vadd.f32 %v851, %v5078
  %5080 = vdwg.mxu0
  %5081 = vmatprep.subr.bf16.mxu0 %v3257
  %5082 = vmatpush1.bf16.msra.mxu0 %v3256
  %5083 = vmatprep.subr.bf16.mxu0 %v3263
  %5084 = vmatpush1.bf16.msra.mxu0 %v3262
  %5085 = vmatprep.subr.bf16.mxu0 %v3269
  %5086 = vmatpush1.bf16.msra.mxu0 %v3268
  %5087 = vmatprep.subr.bf16.mxu0 %v3275
  %5088 = vmatpush1.bf16.msra.mxu0 %v3274
  %5089 = vmatprep.subr.bf16.mxu0 %v3281
  %5090 = vmatpush1.bf16.msra.mxu0 %v3280
  %5091 = vmatprep.subr.bf16.mxu0 %v3287
  %5092 = vmatpush1.bf16.msra.mxu0 %v3286
  %5093 = vmatprep.subr.bf16.mxu0 %v3293
  %5094 = vmatpush1.bf16.msra.mxu0 %v3292
  %5095 = vmatprep.subr.bf16.mxu0 %v3299
  %5096 = vmatpush1.bf16.msra.mxu0 %v3298
  %5097 = vmatprep.subr.bf16.mxu0 %v3305
  %5098 = vmatpush1.bf16.msra.mxu0 %v3304
  %5099 = vmatprep.subr.bf16.mxu0 %v3311
  %5100 = vmatpush1.bf16.msra.mxu0 %v3310
  %5101 = vmatprep.subr.bf16.mxu0 %v3317
  %5102 = vmatpush1.bf16.msra.mxu0 %v3316
  %5103 = vmatprep.subr.bf16.mxu0 %v3323
  %5104 = vmatpush1.bf16.msra.mxu0 %v3322
  %5105 = vmatprep.subr.bf16.mxu0 %v3329
  %5106 = vmatpush1.bf16.msra.mxu0 %v3328
  %5107 = vmatprep.subr.bf16.mxu0 %v3335
  %5108 = vmatpush1.bf16.msra.mxu0 %v3334
  %5109 = vmatprep.subr.bf16.mxu0 %v3341
  %5110 = vmatpush1.bf16.msra.mxu0 %v3340
  %5111 = vmatprep.subr.bf16.mxu0 %v3347
  %5112 = vmatpush1.bf16.msra.mxu0 %v3346
  %5113 = vmatprep.mubr.bf16.mxu0 %v61
  %5114 = vmatmul.mubr.bf16.gmra.mrb[0].mxu0 %v60
  %v5115 = vpop.f32.mrb[0].mxu0
  %v5116 = vadd.f32 %v5073, %v5115
  %v5117 = vpop.f32.mrb[0].mxu0
  %v5118 = vadd.f32 %v5075, %v5117
  %v5119 = vpop.f32.mrb[0].mxu0
  %v5120 = vadd.f32 %v5077, %v5119
  %v5121 = vpop.f32.mrb[0].mxu0
  %v5122 = vadd.f32 %v5079, %v5121
  %5123 = vdwg.mxu0
  %5124 = vmatprep.subr.bf16.mxu0 %v3353
  %5125 = vmatpush1.bf16.msra.mxu0 %v3352
  %5126 = vmatprep.subr.bf16.mxu0 %v3359
  %5127 = vmatpush1.bf16.msra.mxu0 %v3358
  %5128 = vmatprep.subr.bf16.mxu0 %v3365
  %5129 = vmatpush1.bf16.msra.mxu0 %v3364
  %5130 = vmatprep.subr.bf16.mxu0 %v3371
  %5131 = vmatpush1.bf16.msra.mxu0 %v3370
  %5132 = vmatprep.subr.bf16.mxu0 %v3377
  %5133 = vmatpush1.bf16.msra.mxu0 %v3376
  %5134 = vmatprep.subr.bf16.mxu0 %v3383
  %5135 = vmatpush1.bf16.msra.mxu0 %v3382
  %5136 = vmatprep.subr.bf16.mxu0 %v3389
  %5137 = vmatpush1.bf16.msra.mxu0 %v3388
  %5138 = vmatprep.subr.bf16.mxu0 %v3395
  %5139 = vmatpush1.bf16.msra.mxu0 %v3394
  %5140 = vmatprep.subr.bf16.mxu0 %v3401
  %5141 = vmatpush1.bf16.msra.mxu0 %v3400
  %5142 = vmatprep.subr.bf16.mxu0 %v3407
  %5143 = vmatpush1.bf16.msra.mxu0 %v3406
  %5144 = vmatprep.subr.bf16.mxu0 %v3413
  %5145 = vmatpush1.bf16.msra.mxu0 %v3412
  %5146 = vmatprep.subr.bf16.mxu0 %v3419
  %5147 = vmatpush1.bf16.msra.mxu0 %v3418
  %5148 = vmatprep.subr.bf16.mxu0 %v3425
  %5149 = vmatpush1.bf16.msra.mxu0 %v3424
  %5150 = vmatprep.subr.bf16.mxu0 %v3431
  %5151 = vmatpush1.bf16.msra.mxu0 %v3430
  %5152 = vmatprep.subr.bf16.mxu0 %v3437
  %5153 = vmatpush1.bf16.msra.mxu0 %v3436
  %5154 = vmatprep.subr.bf16.mxu0 %v3443
  %5155 = vmatpush1.bf16.msra.mxu0 %v3442
  %5156 = vmatprep.mubr.bf16.mxu0 %v63
  %5157 = vmatmul.mubr.bf16.gmra.mrb[0].mxu0 %v62
  %v5158 = vpop.f32.mrb[0].mxu0
  %v5159 = vadd.f32 %v5116, %v5158
  %v5160 = vpop.f32.mrb[0].mxu0
  %v5161 = vadd.f32 %v5118, %v5160
  %v5162 = vpop.f32.mrb[0].mxu0
  %v5163 = vadd.f32 %v5120, %v5162
  %v5164 = vpop.f32.mrb[0].mxu0
  %v5165 = vadd.f32 %v5122, %v5164
  %5166 = vdwg.mxu0
  %5167 = vmatprep.subr.bf16.mxu0 %v3449
  %5168 = vmatpush1.bf16.msra.mxu0 %v3448
  %5169 = vmatprep.subr.bf16.mxu0 %v3455
  %5170 = vmatpush1.bf16.msra.mxu0 %v3454
  %5171 = vmatprep.subr.bf16.mxu0 %v3461
  %5172 = vmatpush1.bf16.msra.mxu0 %v3460
  %5173 = vmatprep.subr.bf16.mxu0 %v3467
  %5174 = vmatpush1.bf16.msra.mxu0 %v3466
  %5175 = vmatprep.subr.bf16.mxu0 %v3473
  %5176 = vmatpush1.bf16.msra.mxu0 %v3472
  %5177 = vmatprep.subr.bf16.mxu0 %v3479
  %5178 = vmatpush1.bf16.msra.mxu0 %v3478
  %5179 = vmatprep.subr.bf16.mxu0 %v3485
  %5180 = vmatpush1.bf16.msra.mxu0 %v3484
  %5181 = vmatprep.subr.bf16.mxu0 %v3491
  %5182 = vmatpush1.bf16.msra.mxu0 %v3490
  %5183 = vmatprep.subr.bf16.mxu0 %v3497
  %5184 = vmatpush1.bf16.msra.mxu0 %v3496
  %5185 = vmatprep.subr.bf16.mxu0 %v3503
  %5186 = vmatpush1.bf16.msra.mxu0 %v3502
  %5187 = vmatprep.subr.bf16.mxu0 %v3509
  %5188 = vmatpush1.bf16.msra.mxu0 %v3508
  %5189 = vmatprep.subr.bf16.mxu0 %v3515
  %5190 = vmatpush1.bf16.msra.mxu0 %v3514
  %5191 = vmatprep.subr.bf16.mxu0 %v3521
  %5192 = vmatpush1.bf16.msra.mxu0 %v3520
  %5193 = vmatprep.subr.bf16.mxu0 %v3527
  %5194 = vmatpush1.bf16.msra.mxu0 %v3526
  %5195 = vmatprep.subr.bf16.mxu0 %v3533
  %5196 = vmatpush1.bf16.msra.mxu0 %v3532
  %5197 = vmatprep.subr.bf16.mxu0 %v3539
  %5198 = vmatpush1.bf16.msra.mxu0 %v3538
  %5199 = vmatprep.mubr.bf16.mxu0 %v65
  %5200 = vmatmul.mubr.bf16.gmra.mrb[0].mxu0 %v64
  %v5201 = vpop.f32.mrb[0].mxu0
  %v5202 = vadd.f32 %v5159, %v5201
  %v5203 = vpop.f32.mrb[0].mxu0
  %v5204 = vadd.f32 %v5161, %v5203
  %v5205 = vpop.f32.mrb[0].mxu0
  %v5206 = vadd.f32 %v5163, %v5205
  %v5207 = vpop.f32.mrb[0].mxu0
  %v5208 = vadd.f32 %v5165, %v5207
  %5209 = vdwg.mxu0
  %5210 = vmatprep.subr.bf16.mxu0 %v3545
  %5211 = vmatpush1.bf16.msra.mxu0 %v3544
  %5212 = vmatprep.subr.bf16.mxu0 %v3551
  %5213 = vmatpush1.bf16.msra.mxu0 %v3550
  %5214 = vmatprep.subr.bf16.mxu0 %v3557
  %5215 = vmatpush1.bf16.msra.mxu0 %v3556
  %5216 = vmatprep.subr.bf16.mxu0 %v3563
  %5217 = vmatpush1.bf16.msra.mxu0 %v3562
  %5218 = vmatprep.subr.bf16.mxu0 %v3569
  %5219 = vmatpush1.bf16.msra.mxu0 %v3568
  %5220 = vmatprep.subr.bf16.mxu0 %v3575
  %5221 = vmatpush1.bf16.msra.mxu0 %v3574
  %5222 = vmatprep.subr.bf16.mxu0 %v3581
  %5223 = vmatpush1.bf16.msra.mxu0 %v3580
  %5224 = vmatprep.subr.bf16.mxu0 %v3587
  %5225 = vmatpush1.bf16.msra.mxu0 %v3586
  %5226 = vmatprep.subr.bf16.mxu0 %v3593
  %5227 = vmatpush1.bf16.msra.mxu0 %v3592
  %5228 = vmatprep.subr.bf16.mxu0 %v3599
  %5229 = vmatpush1.bf16.msra.mxu0 %v3598
  %5230 = vmatprep.subr.bf16.mxu0 %v3605
  %5231 = vmatpush1.bf16.msra.mxu0 %v3604
  %5232 = vmatprep.subr.bf16.mxu0 %v3611
  %5233 = vmatpush1.bf16.msra.mxu0 %v3610
  %5234 = vmatprep.subr.bf16.mxu0 %v3617
  %5235 = vmatpush1.bf16.msra.mxu0 %v3616
  %5236 = vmatprep.subr.bf16.mxu0 %v3623
  %5237 = vmatpush1.bf16.msra.mxu0 %v3622
  %5238 = vmatprep.subr.bf16.mxu0 %v3629
  %5239 = vmatpush1.bf16.msra.mxu0 %v3628
  %5240 = vmatprep.subr.bf16.mxu0 %v3635
  %5241 = vmatpush1.bf16.msra.mxu0 %v3634
  %5242 = vmatprep.mubr.bf16.mxu0 %v67
  %5243 = vmatmul.mubr.bf16.gmra.mrb[0].mxu0 %v66
  %v5244 = vpop.f32.mrb[0].mxu0
  %v5245 = vadd.f32 %v5202, %v5244
  %v5246 = vpop.f32.mrb[0].mxu0
  %v5247 = vadd.f32 %v5204, %v5246
  %v5248 = vpop.f32.mrb[0].mxu0
  %v5249 = vadd.f32 %v5206, %v5248
  %v5250 = vpop.f32.mrb[0].mxu0
  %v5251 = vadd.f32 %v5208, %v5250
  %5252 = vdwg.mxu0
  %5253 = vmatprep.subr.bf16.mxu0 %v3641
  %5254 = vmatpush1.bf16.msra.mxu0 %v3640
  %5255 = vmatprep.subr.bf16.mxu0 %v3647
  %5256 = vmatpush1.bf16.msra.mxu0 %v3646
  %5257 = vmatprep.subr.bf16.mxu0 %v3653
  %5258 = vmatpush1.bf16.msra.mxu0 %v3652
  %5259 = vmatprep.subr.bf16.mxu0 %v3659
  %5260 = vmatpush1.bf16.msra.mxu0 %v3658
  %5261 = vmatprep.subr.bf16.mxu0 %v3665
  %5262 = vmatpush1.bf16.msra.mxu0 %v3664
  %5263 = vmatprep.subr.bf16.mxu0 %v3671
  %5264 = vmatpush1.bf16.msra.mxu0 %v3670
  %5265 = vmatprep.subr.bf16.mxu0 %v3677
  %5266 = vmatpush1.bf16.msra.mxu0 %v3676
  %5267 = vmatprep.subr.bf16.mxu0 %v3683
  %5268 = vmatpush1.bf16.msra.mxu0 %v3682
  %5269 = vmatprep.subr.bf16.mxu0 %v3689
  %5270 = vmatpush1.bf16.msra.mxu0 %v3688
  %5271 = vmatprep.subr.bf16.mxu0 %v3695
  %5272 = vmatpush1.bf16.msra.mxu0 %v3694
  %5273 = vmatprep.subr.bf16.mxu0 %v3701
  %5274 = vmatpush1.bf16.msra.mxu0 %v3700
  %5275 = vmatprep.subr.bf16.mxu0 %v3707
  %5276 = vmatpush1.bf16.msra.mxu0 %v3706
  %5277 = vmatprep.subr.bf16.mxu0 %v3713
  %5278 = vmatpush1.bf16.msra.mxu0 %v3712
  %5279 = vmatprep.subr.bf16.mxu0 %v3719
  %5280 = vmatpush1.bf16.msra.mxu0 %v3718
  %5281 = vmatprep.subr.bf16.mxu0 %v3725
  %5282 = vmatpush1.bf16.msra.mxu0 %v3724
  %5283 = vmatprep.subr.bf16.mxu0 %v3731
  %5284 = vmatpush1.bf16.msra.mxu0 %v3730
  %5285 = vmatprep.mubr.bf16.mxu0 %v69
  %5286 = vmatmul.mubr.bf16.gmra.mrb[0].mxu0 %v68
  %v5287 = vpop.f32.mrb[0].mxu0
  %v5288 = vadd.f32 %v5245, %v5287
  %v5289 = vpop.f32.mrb[0].mxu0
  %v5290 = vadd.f32 %v5247, %v5289
  %v5291 = vpop.f32.mrb[0].mxu0
  %v5292 = vadd.f32 %v5249, %v5291
  %v5293 = vpop.f32.mrb[0].mxu0
  %v5294 = vadd.f32 %v5251, %v5293
  %5295 = vdwg.mxu0
  %5296 = vmatprep.subr.bf16.mxu0 %v3737
  %5297 = vmatpush1.bf16.msra.mxu0 %v3736
  %5298 = vmatprep.subr.bf16.mxu0 %v3743
  %5299 = vmatpush1.bf16.msra.mxu0 %v3742
  %5300 = vmatprep.subr.bf16.mxu0 %v3749
  %5301 = vmatpush1.bf16.msra.mxu0 %v3748
  %5302 = vmatprep.subr.bf16.mxu0 %v3755
  %5303 = vmatpush1.bf16.msra.mxu0 %v3754
  %5304 = vmatprep.subr.bf16.mxu0 %v3761
  %5305 = vmatpush1.bf16.msra.mxu0 %v3760
  %5306 = vmatprep.subr.bf16.mxu0 %v3767
  %5307 = vmatpush1.bf16.msra.mxu0 %v3766
  %5308 = vmatprep.subr.bf16.mxu0 %v3773
  %5309 = vmatpush1.bf16.msra.mxu0 %v3772
  %5310 = vmatprep.subr.bf16.mxu0 %v3779
  %5311 = vmatpush1.bf16.msra.mxu0 %v3778
  %5312 = vmatprep.subr.bf16.mxu0 %v3785
  %5313 = vmatpush1.bf16.msra.mxu0 %v3784
  %5314 = vmatprep.subr.bf16.mxu0 %v3791
  %5315 = vmatpush1.bf16.msra.mxu0 %v3790
  %5316 = vmatprep.subr.bf16.mxu0 %v3797
  %5317 = vmatpush1.bf16.msra.mxu0 %v3796
  %5318 = vmatprep.subr.bf16.mxu0 %v3803
  %5319 = vmatpush1.bf16.msra.mxu0 %v3802
  %5320 = vmatprep.subr.bf16.mxu0 %v3809
  %5321 = vmatpush1.bf16.msra.mxu0 %v3808
  %5322 = vmatprep.subr.bf16.mxu0 %v3815
  %5323 = vmatpush1.bf16.msra.mxu0 %v3814
  %5324 = vmatprep.subr.bf16.mxu0 %v3821
  %5325 = vmatpush1.bf16.msra.mxu0 %v3820
  %5326 = vmatprep.subr.bf16.mxu0 %v3827
  %5327 = vmatpush1.bf16.msra.mxu0 %v3826
  %5328 = vmatprep.mubr.bf16.mxu0 %v71
  %5329 = vmatmul.mubr.bf16.gmra.mrb[0].mxu0 %v70
  %v5330 = vpop.f32.mrb[0].mxu0
  %v5331 = vadd.f32 %v5288, %v5330
  %v5332 = vpop.f32.mrb[0].mxu0
  %v5333 = vadd.f32 %v5290, %v5332
  %v5334 = vpop.f32.mrb[0].mxu0
  %v5335 = vadd.f32 %v5292, %v5334
  %v5336 = vpop.f32.mrb[0].mxu0
  %v5337 = vadd.f32 %v5294, %v5336
  %5338 = vdwg.mxu0
  %5339 = vmatprep.subr.bf16.mxu0 %v3833
  %5340 = vmatpush1.bf16.msra.mxu0 %v3832
  %5341 = vmatprep.subr.bf16.mxu0 %v3839
  %5342 = vmatpush1.bf16.msra.mxu0 %v3838
  %5343 = vmatprep.subr.bf16.mxu0 %v3845
  %5344 = vmatpush1.bf16.msra.mxu0 %v3844
  %5345 = vmatprep.subr.bf16.mxu0 %v3851
  %5346 = vmatpush1.bf16.msra.mxu0 %v3850
  %5347 = vmatprep.subr.bf16.mxu0 %v3857
  %5348 = vmatpush1.bf16.msra.mxu0 %v3856
  %5349 = vmatprep.subr.bf16.mxu0 %v3863
  %5350 = vmatpush1.bf16.msra.mxu0 %v3862
  %5351 = vmatprep.subr.bf16.mxu0 %v3869
  %5352 = vmatpush1.bf16.msra.mxu0 %v3868
  %5353 = vmatprep.subr.bf16.mxu0 %v3875
  %5354 = vmatpush1.bf16.msra.mxu0 %v3874
  %5355 = vmatprep.subr.bf16.mxu0 %v3881
  %5356 = vmatpush1.bf16.msra.mxu0 %v3880
  %5357 = vmatprep.subr.bf16.mxu0 %v3887
  %5358 = vmatpush1.bf16.msra.mxu0 %v3886
  %5359 = vmatprep.subr.bf16.mxu0 %v3893
  %5360 = vmatpush1.bf16.msra.mxu0 %v3892
  %5361 = vmatprep.subr.bf16.mxu0 %v3899
  %5362 = vmatpush1.bf16.msra.mxu0 %v3898
  %5363 = vmatprep.subr.bf16.mxu0 %v3905
  %5364 = vmatpush1.bf16.msra.mxu0 %v3904
  %5365 = vmatprep.subr.bf16.mxu0 %v3911
  %5366 = vmatpush1.bf16.msra.mxu0 %v3910
  %5367 = vmatprep.subr.bf16.mxu0 %v3917
  %5368 = vmatpush1.bf16.msra.mxu0 %v3916
  %5369 = vmatprep.subr.bf16.mxu0 %v3923
  %5370 = vmatpush1.bf16.msra.mxu0 %v3922
  %5371 = vmatprep.mubr.bf16.mxu0 %v73
  %5372 = vmatmul.mubr.bf16.gmra.mrb[0].mxu0 %v72
  %v5373 = vpop.f32.mrb[0].mxu0
  %v5374 = vadd.f32 %v5331, %v5373
  %v5375 = vpop.f32.mrb[0].mxu0
  %v5376 = vadd.f32 %v5333, %v5375
  %v5377 = vpop.f32.mrb[0].mxu0
  %v5378 = vadd.f32 %v5335, %v5377
  %v5379 = vpop.f32.mrb[0].mxu0
  %v5380 = vadd.f32 %v5337, %v5379
  %5381 = vdwg.mxu0
  %5382 = vmatprep.subr.bf16.mxu0 %v3163
  %5383 = vmatpush1.bf16.msra.mxu0 %v3162
  %5384 = vmatprep.subr.bf16.mxu0 %v3169
  %5385 = vmatpush1.bf16.msra.mxu0 %v3168
  %5386 = vmatprep.subr.bf16.mxu0 %v3175
  %5387 = vmatpush1.bf16.msra.mxu0 %v3174
  %5388 = vmatprep.subr.bf16.mxu0 %v3181
  %5389 = vmatpush1.bf16.msra.mxu0 %v3180
  %5390 = vmatprep.subr.bf16.mxu0 %v3187
  %5391 = vmatpush1.bf16.msra.mxu0 %v3186
  %5392 = vmatprep.subr.bf16.mxu0 %v3193
  %5393 = vmatpush1.bf16.msra.mxu0 %v3192
  %5394 = vmatprep.subr.bf16.mxu0 %v3199
  %5395 = vmatpush1.bf16.msra.mxu0 %v3198
  %5396 = vmatprep.subr.bf16.mxu0 %v3205
  %5397 = vmatpush1.bf16.msra.mxu0 %v3204
  %5398 = vmatprep.subr.bf16.mxu0 %v3211
  %5399 = vmatpush1.bf16.msra.mxu0 %v3210
  %5400 = vmatprep.subr.bf16.mxu0 %v3217
  %5401 = vmatpush1.bf16.msra.mxu0 %v3216
  %5402 = vmatprep.subr.bf16.mxu0 %v3223
  %5403 = vmatpush1.bf16.msra.mxu0 %v3222
  %5404 = vmatprep.subr.bf16.mxu0 %v3229
  %5405 = vmatpush1.bf16.msra.mxu0 %v3228
  %5406 = vmatprep.subr.bf16.mxu0 %v3235
  %5407 = vmatpush1.bf16.msra.mxu0 %v3234
  %5408 = vmatprep.subr.bf16.mxu0 %v3241
  %5409 = vmatpush1.bf16.msra.mxu0 %v3240
  %5410 = vmatprep.subr.bf16.mxu0 %v3247
  %5411 = vmatpush1.bf16.msra.mxu0 %v3246
  %5412 = vmatprep.subr.bf16.mxu0 %v3253
  %5413 = vmatpush1.bf16.msra.mxu0 %v3252
  %5414 = vmatprep.mubr.bf16.mxu0 %v59
  %5415 = vmatmul.mubr.bf16.gmra.mrb[0].mxu0 %v58
  %v5416 = vpop.f32.mrb[0].mxu0
  %v5417 = vadd.f32 %v846, %v5416
  %v5418 = vpop.f32.mrb[0].mxu0
  %v5419 = vadd.f32 %v847, %v5418
  %v5420 = vpop.f32.mrb[0].mxu0
  %v5421 = vadd.f32 %v852, %v5420
  %v5422 = vpop.f32.mrb[0].mxu0
  %v5423 = vadd.f32 %v853, %v5422
  %5424 = vdwg.mxu0
  %5425 = vmatprep.subr.bf16.mxu0 %v3259
  %5426 = vmatpush1.bf16.msra.mxu0 %v3258
  %5427 = vmatprep.subr.bf16.mxu0 %v3265
  %5428 = vmatpush1.bf16.msra.mxu0 %v3264
  %5429 = vmatprep.subr.bf16.mxu0 %v3271
  %5430 = vmatpush1.bf16.msra.mxu0 %v3270
  %5431 = vmatprep.subr.bf16.mxu0 %v3277
  %5432 = vmatpush1.bf16.msra.mxu0 %v3276
  %5433 = vmatprep.subr.bf16.mxu0 %v3283
  %5434 = vmatpush1.bf16.msra.mxu0 %v3282
  %5435 = vmatprep.subr.bf16.mxu0 %v3289
  %5436 = vmatpush1.bf16.msra.mxu0 %v3288
  %5437 = vmatprep.subr.bf16.mxu0 %v3295
  %5438 = vmatpush1.bf16.msra.mxu0 %v3294
  %5439 = vmatprep.subr.bf16.mxu0 %v3301
  %5440 = vmatpush1.bf16.msra.mxu0 %v3300
  %5441 = vmatprep.subr.bf16.mxu0 %v3307
  %5442 = vmatpush1.bf16.msra.mxu0 %v3306
  %5443 = vmatprep.subr.bf16.mxu0 %v3313
  %5444 = vmatpush1.bf16.msra.mxu0 %v3312
  %5445 = vmatprep.subr.bf16.mxu0 %v3319
  %5446 = vmatpush1.bf16.msra.mxu0 %v3318
  %5447 = vmatprep.subr.bf16.mxu0 %v3325
  %5448 = vmatpush1.bf16.msra.mxu0 %v3324
  %5449 = vmatprep.subr.bf16.mxu0 %v3331
  %5450 = vmatpush1.bf16.msra.mxu0 %v3330
  %5451 = vmatprep.subr.bf16.mxu0 %v3337
  %5452 = vmatpush1.bf16.msra.mxu0 %v3336
  %5453 = vmatprep.subr.bf16.mxu0 %v3343
  %5454 = vmatpush1.bf16.msra.mxu0 %v3342
  %5455 = vmatprep.subr.bf16.mxu0 %v3349
  %5456 = vmatpush1.bf16.msra.mxu0 %v3348
  %5457 = vmatprep.mubr.bf16.mxu0 %v61
  %5458 = vmatmul.mubr.bf16.gmra.mrb[0].mxu0 %v60
  %v5459 = vpop.f32.mrb[0].mxu0
  %v5460 = vadd.f32 %v5417, %v5459
  %v5461 = vpop.f32.mrb[0].mxu0
  %v5462 = vadd.f32 %v5419, %v5461
  %v5463 = vpop.f32.mrb[0].mxu0
  %v5464 = vadd.f32 %v5421, %v5463
  %v5465 = vpop.f32.mrb[0].mxu0
  %v5466 = vadd.f32 %v5423, %v5465
  %5467 = vdwg.mxu0
  %5468 = vmatprep.subr.bf16.mxu0 %v3355
  %5469 = vmatpush1.bf16.msra.mxu0 %v3354
  %5470 = vmatprep.subr.bf16.mxu0 %v3361
  %5471 = vmatpush1.bf16.msra.mxu0 %v3360
  %5472 = vmatprep.subr.bf16.mxu0 %v3367
  %5473 = vmatpush1.bf16.msra.mxu0 %v3366
  %5474 = vmatprep.subr.bf16.mxu0 %v3373
  %5475 = vmatpush1.bf16.msra.mxu0 %v3372
  %5476 = vmatprep.subr.bf16.mxu0 %v3379
  %5477 = vmatpush1.bf16.msra.mxu0 %v3378
  %5478 = vmatprep.subr.bf16.mxu0 %v3385
  %5479 = vmatpush1.bf16.msra.mxu0 %v3384
  %5480 = vmatprep.subr.bf16.mxu0 %v3391
  %5481 = vmatpush1.bf16.msra.mxu0 %v3390
  %5482 = vmatprep.subr.bf16.mxu0 %v3397
  %5483 = vmatpush1.bf16.msra.mxu0 %v3396
  %5484 = vmatprep.subr.bf16.mxu0 %v3403
  %5485 = vmatpush1.bf16.msra.mxu0 %v3402
  %5486 = vmatprep.subr.bf16.mxu0 %v3409
  %5487 = vmatpush1.bf16.msra.mxu0 %v3408
  %5488 = vmatprep.subr.bf16.mxu0 %v3415
  %5489 = vmatpush1.bf16.msra.mxu0 %v3414
  %5490 = vmatprep.subr.bf16.mxu0 %v3421
  %5491 = vmatpush1.bf16.msra.mxu0 %v3420
  %5492 = vmatprep.subr.bf16.mxu0 %v3427
  %5493 = vmatpush1.bf16.msra.mxu0 %v3426
  %5494 = vmatprep.subr.bf16.mxu0 %v3433
  %5495 = vmatpush1.bf16.msra.mxu0 %v3432
  %5496 = vmatprep.subr.bf16.mxu0 %v3439
  %5497 = vmatpush1.bf16.msra.mxu0 %v3438
  %5498 = vmatprep.subr.bf16.mxu0 %v3445
  %5499 = vmatpush1.bf16.msra.mxu0 %v3444
  %5500 = vmatprep.mubr.bf16.mxu0 %v63
  %5501 = vmatmul.mubr.bf16.gmra.mrb[0].mxu0 %v62
  %v5502 = vpop.f32.mrb[0].mxu0
  %v5503 = vadd.f32 %v5460, %v5502
  %v5504 = vpop.f32.mrb[0].mxu0
  %v5505 = vadd.f32 %v5462, %v5504
  %v5506 = vpop.f32.mrb[0].mxu0
  %v5507 = vadd.f32 %v5464, %v5506
  %v5508 = vpop.f32.mrb[0].mxu0
  %v5509 = vadd.f32 %v5466, %v5508
  %5510 = vdwg.mxu0
  %5511 = vmatprep.subr.bf16.mxu0 %v3451
  %5512 = vmatpush1.bf16.msra.mxu0 %v3450
  %5513 = vmatprep.subr.bf16.mxu0 %v3457
  %5514 = vmatpush1.bf16.msra.mxu0 %v3456
  %5515 = vmatprep.subr.bf16.mxu0 %v3463
  %5516 = vmatpush1.bf16.msra.mxu0 %v3462
  %5517 = vmatprep.subr.bf16.mxu0 %v3469
  %5518 = vmatpush1.bf16.msra.mxu0 %v3468
  %5519 = vmatprep.subr.bf16.mxu0 %v3475
  %5520 = vmatpush1.bf16.msra.mxu0 %v3474
  %5521 = vmatprep.subr.bf16.mxu0 %v3481
  %5522 = vmatpush1.bf16.msra.mxu0 %v3480
  %5523 = vmatprep.subr.bf16.mxu0 %v3487
  %5524 = vmatpush1.bf16.msra.mxu0 %v3486
  %5525 = vmatprep.subr.bf16.mxu0 %v3493
  %5526 = vmatpush1.bf16.msra.mxu0 %v3492
  %5527 = vmatprep.subr.bf16.mxu0 %v3499
  %5528 = vmatpush1.bf16.msra.mxu0 %v3498
  %5529 = vmatprep.subr.bf16.mxu0 %v3505
  %5530 = vmatpush1.bf16.msra.mxu0 %v3504
  %5531 = vmatprep.subr.bf16.mxu0 %v3511
  %5532 = vmatpush1.bf16.msra.mxu0 %v3510
  %5533 = vmatprep.subr.bf16.mxu0 %v3517
  %5534 = vmatpush1.bf16.msra.mxu0 %v3516
  %5535 = vmatprep.subr.bf16.mxu0 %v3523
  %5536 = vmatpush1.bf16.msra.mxu0 %v3522
  %5537 = vmatprep.subr.bf16.mxu0 %v3529
  %5538 = vmatpush1.bf16.msra.mxu0 %v3528
  %5539 = vmatprep.subr.bf16.mxu0 %v3535
  %5540 = vmatpush1.bf16.msra.mxu0 %v3534
  %5541 = vmatprep.subr.bf16.mxu0 %v3541
  %5542 = vmatpush1.bf16.msra.mxu0 %v3540
  %5543 = vmatprep.mubr.bf16.mxu0 %v65
  %5544 = vmatmul.mubr.bf16.gmra.mrb[0].mxu0 %v64
  %v5545 = vpop.f32.mrb[0].mxu0
  %v5546 = vadd.f32 %v5503, %v5545
  %v5547 = vpop.f32.mrb[0].mxu0
  %v5548 = vadd.f32 %v5505, %v5547
  %v5549 = vpop.f32.mrb[0].mxu0
  %v5550 = vadd.f32 %v5507, %v5549
  %v5551 = vpop.f32.mrb[0].mxu0
  %v5552 = vadd.f32 %v5509, %v5551
  %5553 = vdwg.mxu0
  %5554 = vmatprep.subr.bf16.mxu0 %v3547
  %5555 = vmatpush1.bf16.msra.mxu0 %v3546
  %5556 = vmatprep.subr.bf16.mxu0 %v3553
  %5557 = vmatpush1.bf16.msra.mxu0 %v3552
  %5558 = vmatprep.subr.bf16.mxu0 %v3559
  %5559 = vmatpush1.bf16.msra.mxu0 %v3558
  %5560 = vmatprep.subr.bf16.mxu0 %v3565
  %5561 = vmatpush1.bf16.msra.mxu0 %v3564
  %5562 = vmatprep.subr.bf16.mxu0 %v3571
  %5563 = vmatpush1.bf16.msra.mxu0 %v3570
  %5564 = vmatprep.subr.bf16.mxu0 %v3577
  %5565 = vmatpush1.bf16.msra.mxu0 %v3576
  %5566 = vmatprep.subr.bf16.mxu0 %v3583
  %5567 = vmatpush1.bf16.msra.mxu0 %v3582
  %5568 = vmatprep.subr.bf16.mxu0 %v3589
  %5569 = vmatpush1.bf16.msra.mxu0 %v3588
  %5570 = vmatprep.subr.bf16.mxu0 %v3595
  %5571 = vmatpush1.bf16.msra.mxu0 %v3594
  %5572 = vmatprep.subr.bf16.mxu0 %v3601
  %5573 = vmatpush1.bf16.msra.mxu0 %v3600
  %5574 = vmatprep.subr.bf16.mxu0 %v3607
  %5575 = vmatpush1.bf16.msra.mxu0 %v3606
  %5576 = vmatprep.subr.bf16.mxu0 %v3613
  %5577 = vmatpush1.bf16.msra.mxu0 %v3612
  %5578 = vmatprep.subr.bf16.mxu0 %v3619
  %5579 = vmatpush1.bf16.msra.mxu0 %v3618
  %5580 = vmatprep.subr.bf16.mxu0 %v3625
  %5581 = vmatpush1.bf16.msra.mxu0 %v3624
  %5582 = vmatprep.subr.bf16.mxu0 %v3631
  %5583 = vmatpush1.bf16.msra.mxu0 %v3630
  %5584 = vmatprep.subr.bf16.mxu0 %v3637
  %5585 = vmatpush1.bf16.msra.mxu0 %v3636
  %5586 = vmatprep.mubr.bf16.mxu0 %v67
  %5587 = vmatmul.mubr.bf16.gmra.mrb[0].mxu0 %v66
  %v5588 = vpop.f32.mrb[0].mxu0
  %v5589 = vadd.f32 %v5546, %v5588
  %v5590 = vpop.f32.mrb[0].mxu0
  %v5591 = vadd.f32 %v5548, %v5590
  %v5592 = vpop.f32.mrb[0].mxu0
  %v5593 = vadd.f32 %v5550, %v5592
  %v5594 = vpop.f32.mrb[0].mxu0
  %v5595 = vadd.f32 %v5552, %v5594
  %5596 = vdwg.mxu0
  %5597 = vmatprep.subr.bf16.mxu0 %v3643
  %5598 = vmatpush1.bf16.msra.mxu0 %v3642
  %5599 = vmatprep.subr.bf16.mxu0 %v3649
  %5600 = vmatpush1.bf16.msra.mxu0 %v3648
  %5601 = vmatprep.subr.bf16.mxu0 %v3655
  %5602 = vmatpush1.bf16.msra.mxu0 %v3654
  %5603 = vmatprep.subr.bf16.mxu0 %v3661
  %5604 = vmatpush1.bf16.msra.mxu0 %v3660
  %5605 = vmatprep.subr.bf16.mxu0 %v3667
  %5606 = vmatpush1.bf16.msra.mxu0 %v3666
  %5607 = vmatprep.subr.bf16.mxu0 %v3673
  %5608 = vmatpush1.bf16.msra.mxu0 %v3672
  %5609 = vmatprep.subr.bf16.mxu0 %v3679
  %5610 = vmatpush1.bf16.msra.mxu0 %v3678
  %5611 = vmatprep.subr.bf16.mxu0 %v3685
  %5612 = vmatpush1.bf16.msra.mxu0 %v3684
  %5613 = vmatprep.subr.bf16.mxu0 %v3691
  %5614 = vmatpush1.bf16.msra.mxu0 %v3690
  %5615 = vmatprep.subr.bf16.mxu0 %v3697
  %5616 = vmatpush1.bf16.msra.mxu0 %v3696
  %5617 = vmatprep.subr.bf16.mxu0 %v3703
  %5618 = vmatpush1.bf16.msra.mxu0 %v3702
  %5619 = vmatprep.subr.bf16.mxu0 %v3709
  %5620 = vmatpush1.bf16.msra.mxu0 %v3708
  %5621 = vmatprep.subr.bf16.mxu0 %v3715
  %5622 = vmatpush1.bf16.msra.mxu0 %v3714
  %5623 = vmatprep.subr.bf16.mxu0 %v3721
  %5624 = vmatpush1.bf16.msra.mxu0 %v3720
  %5625 = vmatprep.subr.bf16.mxu0 %v3727
  %5626 = vmatpush1.bf16.msra.mxu0 %v3726
  %5627 = vmatprep.subr.bf16.mxu0 %v3733
  %5628 = vmatpush1.bf16.msra.mxu0 %v3732
  %5629 = vmatprep.mubr.bf16.mxu0 %v69
  %5630 = vmatmul.mubr.bf16.gmra.mrb[0].mxu0 %v68
  %v5631 = vpop.f32.mrb[0].mxu0
  %v5632 = vadd.f32 %v5589, %v5631
  %v5633 = vpop.f32.mrb[0].mxu0
  %v5634 = vadd.f32 %v5591, %v5633
  %v5635 = vpop.f32.mrb[0].mxu0
  %v5636 = vadd.f32 %v5593, %v5635
  %v5637 = vpop.f32.mrb[0].mxu0
  %v5638 = vadd.f32 %v5595, %v5637
  %5639 = vdwg.mxu0
  %5640 = vmatprep.subr.bf16.mxu0 %v3739
  %5641 = vmatpush1.bf16.msra.mxu0 %v3738
  %5642 = vmatprep.subr.bf16.mxu0 %v3745
  %5643 = vmatpush1.bf16.msra.mxu0 %v3744
  %5644 = vmatprep.subr.bf16.mxu0 %v3751
  %5645 = vmatpush1.bf16.msra.mxu0 %v3750
  %5646 = vmatprep.subr.bf16.mxu0 %v3757
  %5647 = vmatpush1.bf16.msra.mxu0 %v3756
  %5648 = vmatprep.subr.bf16.mxu0 %v3763
  %5649 = vmatpush1.bf16.msra.mxu0 %v3762
  %5650 = vmatprep.subr.bf16.mxu0 %v3769
  %5651 = vmatpush1.bf16.msra.mxu0 %v3768
  %5652 = vmatprep.subr.bf16.mxu0 %v3775
  %5653 = vmatpush1.bf16.msra.mxu0 %v3774
  %5654 = vmatprep.subr.bf16.mxu0 %v3781
  %5655 = vmatpush1.bf16.msra.mxu0 %v3780
  %5656 = vmatprep.subr.bf16.mxu0 %v3787
  %5657 = vmatpush1.bf16.msra.mxu0 %v3786
  %5658 = vmatprep.subr.bf16.mxu0 %v3793
  %5659 = vmatpush1.bf16.msra.mxu0 %v3792
  %5660 = vmatprep.subr.bf16.mxu0 %v3799
  %5661 = vmatpush1.bf16.msra.mxu0 %v3798
  %5662 = vmatprep.subr.bf16.mxu0 %v3805
  %5663 = vmatpush1.bf16.msra.mxu0 %v3804
  %5664 = vmatprep.subr.bf16.mxu0 %v3811
  %5665 = vmatpush1.bf16.msra.mxu0 %v3810
  %5666 = vmatprep.subr.bf16.mxu0 %v3817
  %5667 = vmatpush1.bf16.msra.mxu0 %v3816
  %5668 = vmatprep.subr.bf16.mxu0 %v3823
  %5669 = vmatpush1.bf16.msra.mxu0 %v3822
  %5670 = vmatprep.subr.bf16.mxu0 %v3829
  %5671 = vmatpush1.bf16.msra.mxu0 %v3828
  %5672 = vmatprep.mubr.bf16.mxu0 %v71
  %5673 = vmatmul.mubr.bf16.gmra.mrb[0].mxu0 %v70
  %v5674 = vpop.f32.mrb[0].mxu0
  %v5675 = vadd.f32 %v5632, %v5674
  %v5676 = vpop.f32.mrb[0].mxu0
  %v5677 = vadd.f32 %v5634, %v5676
  %v5678 = vpop.f32.mrb[0].mxu0
  %v5679 = vadd.f32 %v5636, %v5678
  %v5680 = vpop.f32.mrb[0].mxu0
  %v5681 = vadd.f32 %v5638, %v5680
  %5682 = vdwg.mxu0
  %5683 = vmatprep.subr.bf16.mxu0 %v3835
  %5684 = vmatpush1.bf16.msra.mxu0 %v3834
  %5685 = vmatprep.subr.bf16.mxu0 %v3841
  %5686 = vmatpush1.bf16.msra.mxu0 %v3840
  %5687 = vmatprep.subr.bf16.mxu0 %v3847
  %5688 = vmatpush1.bf16.msra.mxu0 %v3846
  %5689 = vmatprep.subr.bf16.mxu0 %v3853
  %5690 = vmatpush1.bf16.msra.mxu0 %v3852
  %5691 = vmatprep.subr.bf16.mxu0 %v3859
  %5692 = vmatpush1.bf16.msra.mxu0 %v3858
  %5693 = vmatprep.subr.bf16.mxu0 %v3865
  %5694 = vmatpush1.bf16.msra.mxu0 %v3864
  %5695 = vmatprep.subr.bf16.mxu0 %v3871
  %5696 = vmatpush1.bf16.msra.mxu0 %v3870
  %5697 = vmatprep.subr.bf16.mxu0 %v3877
  %5698 = vmatpush1.bf16.msra.mxu0 %v3876
  %5699 = vmatprep.subr.bf16.mxu0 %v3883
  %5700 = vmatpush1.bf16.msra.mxu0 %v3882
  %5701 = vmatprep.subr.bf16.mxu0 %v3889
  %5702 = vmatpush1.bf16.msra.mxu0 %v3888
  %5703 = vmatprep.subr.bf16.mxu0 %v3895
  %5704 = vmatpush1.bf16.msra.mxu0 %v3894
  %5705 = vmatprep.subr.bf16.mxu0 %v3901
  %5706 = vmatpush1.bf16.msra.mxu0 %v3900
  %5707 = vmatprep.subr.bf16.mxu0 %v3907
  %5708 = vmatpush1.bf16.msra.mxu0 %v3906
  %5709 = vmatprep.subr.bf16.mxu0 %v3913
  %5710 = vmatpush1.bf16.msra.mxu0 %v3912
  %5711 = vmatprep.subr.bf16.mxu0 %v3919
  %5712 = vmatpush1.bf16.msra.mxu0 %v3918
  %5713 = vmatprep.subr.bf16.mxu0 %v3925
  %5714 = vmatpush1.bf16.msra.mxu0 %v3924
  %5715 = vmatprep.mubr.bf16.mxu0 %v73
  %5716 = vmatmul.mubr.bf16.gmra.mrb[0].mxu0 %v72
  %v5717 = vpop.f32.mrb[0].mxu0
  %v5718 = vadd.f32 %v5675, %v5717
  %v5719 = vpop.f32.mrb[0].mxu0
  %v5720 = vadd.f32 %v5677, %v5719
  %v5721 = vpop.f32.mrb[0].mxu0
  %v5722 = vadd.f32 %v5679, %v5721
  %v5723 = vpop.f32.mrb[0].mxu0
  %v5724 = vadd.f32 %v5681, %v5723
  %5725 = vdwg.mxu0
  %v5726 = vld [vmem:[%s4] sm:$0xff]
  %v5727 = vld [vmem:[%s4 + $0x8] sm:$0x3f]
  %v5728 = vld [vmem:[%s3] sm:$0x3f]
  %5730 = vset.pattern.permute.xlu0 0
  %5731 = vperm.xlu0 %5730, %v5726
  %v5732 = vpop.permute.xlu0 %5731
  %5735 = vset.pattern.permute.xlu0 0
  %5736 = vperm.xlu0 %5735, %v5727
  %v5737 = vpop.permute.xlu0 %5736
  %v5740 = vlaneseq
  %v5741 = vshrl.u32 %v5740, 7
  %v5742 = vsub.s32 0, %v5741
  %v5743 = vrot.slane %v5728, %v5742
  %v5744 = vlaneseq
  %v5745 = vshrl.u32 %v5744, 7
  %v5746 = vsub.s32 1, %v5745
  %v5747 = vrot.slane %v5728, %v5746
  %v5748 = vlaneseq
  %v5749 = vshrl.u32 %v5748, 7
  %v5750 = vsub.s32 2, %v5749
  %v5751 = vrot.slane %v5728, %v5750
  %v5752 = vlaneseq
  %v5753 = vshrl.u32 %v5752, 7
  %v5754 = vsub.s32 3, %v5753
  %v5755 = vrot.slane %v5728, %v5754
  %v5756 = vlaneseq
  %v5757 = vshrl.u32 %v5756, 7
  %v5758 = vsub.s32 4, %v5757
  %v5759 = vrot.slane %v5728, %v5758
  %v5760 = vlaneseq
  %v5761 = vshrl.u32 %v5760, 7
  %v5762 = vsub.s32 5, %v5761
  %v5763 = vrot.slane %v5728, %v5762
  %v5770 = vmul.f32 %v5732, %v5743
  %v5771 = vmul.f32 %v5732, %v5747
  %v5772 = vmul.f32 %v5732, %v5751
  %v5773 = vmul.f32 %v5732, %v5755
  %v5774 = vmul.f32 %v5732, %v5759
  %v5775 = vmul.f32 %v5732, %v5763
  %v5776 = vmul.f32 %v5737, %v5743
  %v5777 = vmul.f32 %v5737, %v5747
  %v5778 = vmul.f32 %v5737, %v5751
  %v5779 = vmul.f32 %v5737, %v5755
  %v5780 = vmul.f32 %v5737, %v5759
  %v5781 = vmul.f32 %v5737, %v5763
  %v5782 = vadd.f32 %v5030, %v5770
  %v5783 = vadd.f32 %v5032, %v5771
  %v5784 = vadd.f32 %v5374, %v5772
  %v5785 = vadd.f32 %v5376, %v5773
  %v5786 = vadd.f32 %v5718, %v5774
  %v5787 = vadd.f32 %v5720, %v5775
  %v5788 = vadd.f32 %v5034, %v5776
  %v5789 = vadd.f32 %v5036, %v5777
  %v5790 = vadd.f32 %v5378, %v5778
  %v5791 = vadd.f32 %v5380, %v5779
  %v5792 = vadd.f32 %v5722, %v5780
  %v5793 = vadd.f32 %v5724, %v5781
  %v5794 = vadd.f32 %v5782, %v5783
  %v5795 = vadd.f32 %v5794, %v5784
  %v5796 = vadd.f32 %v5795, %v5785
  %v5797 = vadd.f32 %v5796, %v5786
  %v5798 = vadd.f32 %v5797, %v5787
  %5799 = vadd.xlane.f32.xlu0 %v5798
  %v5800 = vpop.xlane.xlu0 %5799
  %vm5801 = vcmask 1045504
  %v5802 = vsel %vm5801, %v5788, 0.0
  %v5803 = vsel %vm5801, %v5789, 0.0
  %v5804 = vadd.f32 %v5802, %v5803
  %v5805 = vsel %vm5801, %v5790, 0.0
  %v5806 = vadd.f32 %v5804, %v5805
  %v5807 = vsel %vm5801, %v5791, 0.0
  %v5808 = vadd.f32 %v5806, %v5807
  %v5809 = vsel %vm5801, %v5792, 0.0
  %v5810 = vadd.f32 %v5808, %v5809
  %v5811 = vsel %vm5801, %v5793, 0.0
  %v5812 = vadd.f32 %v5810, %v5811
  %5813 = vadd.xlane.f32.xlu0 %v5812
  %v5814 = vpop.xlane.xlu0 %5813
  %v5815 = vrcp.pop 768.0
  %v5816 = vmul.f32 %v5800, %v5815
  %v5817 = vmul.f32 %v5814, %v5815
  %v5818 = vsub.f32 %v5782, %v5816
  %v5819 = vsub.f32 %v5783, %v5816
  %v5820 = vsub.f32 %v5784, %v5816
  %v5821 = vsub.f32 %v5785, %v5816
  %v5822 = vsub.f32 %v5786, %v5816
  %v5823 = vsub.f32 %v5787, %v5816
  %v5824 = vsub.f32 %v5788, %v5817
  %v5825 = vsub.f32 %v5789, %v5817
  %v5826 = vsub.f32 %v5790, %v5817
  %v5827 = vsub.f32 %v5791, %v5817
  %v5828 = vsub.f32 %v5792, %v5817
  %v5829 = vsub.f32 %v5793, %v5817
  %v5830 = vmul.f32 %v5818, %v5818
  %v5831 = vmul.f32 %v5819, %v5819
  %v5832 = vmul.f32 %v5820, %v5820
  %v5833 = vmul.f32 %v5821, %v5821
  %v5834 = vmul.f32 %v5822, %v5822
  %v5835 = vmul.f32 %v5823, %v5823
  %v5836 = vmul.f32 %v5824, %v5824
  %v5837 = vmul.f32 %v5825, %v5825
  %v5838 = vmul.f32 %v5826, %v5826
  %v5839 = vmul.f32 %v5827, %v5827
  %v5840 = vmul.f32 %v5828, %v5828
  %v5841 = vmul.f32 %v5829, %v5829
  %v5842 = vadd.f32 %v5830, %v5831
  %v5843 = vadd.f32 %v5842, %v5832
  %v5844 = vadd.f32 %v5843, %v5833
  %v5845 = vadd.f32 %v5844, %v5834
  %v5846 = vadd.f32 %v5845, %v5835
  %5847 = vadd.xlane.f32.xlu0 %v5846
  %v5848 = vpop.xlane.xlu0 %5847
  %v5849 = vsel %vm5801, %v5836, 0.0
  %v5850 = vsel %vm5801, %v5837, 0.0
  %v5851 = vadd.f32 %v5849, %v5850
  %v5852 = vsel %vm5801, %v5838, 0.0
  %v5853 = vadd.f32 %v5851, %v5852
  %v5854 = vsel %vm5801, %v5839, 0.0
  %v5855 = vadd.f32 %v5853, %v5854
  %v5856 = vsel %vm5801, %v5840, 0.0
  %v5857 = vadd.f32 %v5855, %v5856
  %v5858 = vsel %vm5801, %v5841, 0.0
  %v5859 = vadd.f32 %v5857, %v5858
  %5860 = vadd.xlane.f32.xlu0 %v5859
  %v5861 = vpop.xlane.xlu0 %5860
  %v5862 = vmul.f32 %v5848, %v5815
  %v5863 = vmul.f32 %v5861, %v5815
  %v5864 = vadd.f32 %v5862, 1e-12
  %v5865 = vadd.f32 %v5863, 1e-12
  %v5866 = vrsqrt.pop %v5864
  %v5867 = vrsqrt.pop %v5865
  %v5868 = vmul.f32 %v5818, %v5866
  %v5869 = vmul.f32 %v5819, %v5866
  %v5870 = vmul.f32 %v5820, %v5866
  %v5871 = vmul.f32 %v5821, %v5866
  %v5872 = vmul.f32 %v5822, %v5866
  %v5873 = vmul.f32 %v5823, %v5866
  %v5874 = vmul.f32 %v5824, %v5867
  %v5875 = vmul.f32 %v5825, %v5867
  %v5876 = vmul.f32 %v5826, %v5867
  %v5877 = vmul.f32 %v5827, %v5867
  %v5878 = vmul.f32 %v5828, %v5867
  %v5879 = vmul.f32 %v5829, %v5867
  %v5880 = vld [vmem:[%s5] sm:$0x3f]
  %v5882 = vlaneseq
  %v5883 = vshrl.u32 %v5882, 7
  %v5884 = vsub.s32 0, %v5883
  %v5885 = vrot.slane %v5880, %v5884
  %v5886 = vlaneseq
  %v5887 = vshrl.u32 %v5886, 7
  %v5888 = vsub.s32 1, %v5887
  %v5889 = vrot.slane %v5880, %v5888
  %v5890 = vlaneseq
  %v5891 = vshrl.u32 %v5890, 7
  %v5892 = vsub.s32 2, %v5891
  %v5893 = vrot.slane %v5880, %v5892
  %v5894 = vlaneseq
  %v5895 = vshrl.u32 %v5894, 7
  %v5896 = vsub.s32 3, %v5895
  %v5897 = vrot.slane %v5880, %v5896
  %v5898 = vlaneseq
  %v5899 = vshrl.u32 %v5898, 7
  %v5900 = vsub.s32 4, %v5899
  %v5901 = vrot.slane %v5880, %v5900
  %v5902 = vlaneseq
  %v5903 = vshrl.u32 %v5902, 7
  %v5904 = vsub.s32 5, %v5903
  %v5905 = vrot.slane %v5880, %v5904
  %v5912 = vmul.f32 %v5868, %v5885
  %v5913 = vmul.f32 %v5869, %v5889
  %v5914 = vmul.f32 %v5870, %v5893
  %v5915 = vmul.f32 %v5871, %v5897
  %v5916 = vmul.f32 %v5872, %v5901
  %v5917 = vmul.f32 %v5873, %v5905
  %v5918 = vmul.f32 %v5874, %v5885
  %v5919 = vmul.f32 %v5875, %v5889
  %v5920 = vmul.f32 %v5876, %v5893
  %v5921 = vmul.f32 %v5877, %v5897
  %v5922 = vmul.f32 %v5878, %v5901
  %v5923 = vmul.f32 %v5879, %v5905
  %v5924 = vld [vmem:[%s6] sm:$0x3f]
  %v5926 = vlaneseq
  %v5927 = vshrl.u32 %v5926, 7
  %v5928 = vsub.s32 0, %v5927
  %v5929 = vrot.slane %v5924, %v5928
  %v5930 = vlaneseq
  %v5931 = vshrl.u32 %v5930, 7
  %v5932 = vsub.s32 1, %v5931
  %v5933 = vrot.slane %v5924, %v5932
  %v5934 = vlaneseq
  %v5935 = vshrl.u32 %v5934, 7
  %v5936 = vsub.s32 2, %v5935
  %v5937 = vrot.slane %v5924, %v5936
  %v5938 = vlaneseq
  %v5939 = vshrl.u32 %v5938, 7
  %v5940 = vsub.s32 3, %v5939
  %v5941 = vrot.slane %v5924, %v5940
  %v5942 = vlaneseq
  %v5943 = vshrl.u32 %v5942, 7
  %v5944 = vsub.s32 4, %v5943
  %v5945 = vrot.slane %v5924, %v5944
  %v5946 = vlaneseq
  %v5947 = vshrl.u32 %v5946, 7
  %v5948 = vsub.s32 5, %v5947
  %v5949 = vrot.slane %v5924, %v5948
  %v5956 = vadd.f32 %v5912, %v5929
  %v5957 = vadd.f32 %v5913, %v5933
  %v5958 = vadd.f32 %v5914, %v5937
  %v5959 = vadd.f32 %v5915, %v5941
  %v5960 = vadd.f32 %v5916, %v5945
  %v5961 = vadd.f32 %v5917, %v5949
  %v5962 = vadd.f32 %v5918, %v5929
  %v5963 = vadd.f32 %v5919, %v5933
  %v5964 = vadd.f32 %v5920, %v5937
  %v5965 = vadd.f32 %v5921, %v5941
  %v5966 = vadd.f32 %v5922, %v5945
  %v5967 = vadd.f32 %v5923, %v5949
  %5968 = vst [vmem:[%s7] sm:$0xff] %v5956
  %5969 = vst [vmem:[%s7 + $0x8] sm:$0xff] %v5957
  %5970 = vst [vmem:[%s7 + $0x10] sm:$0xff] %v5958
  %5971 = vst [vmem:[%s7 + $0x18] sm:$0xff] %v5959
  %5972 = vst [vmem:[%s7 + $0x20] sm:$0xff] %v5960
  %5973 = vst [vmem:[%s7 + $0x28] sm:$0xff] %v5961
  %5974 = vst [vmem:[%s7 + $0x30] sm:$0x3f] %v5962
  %5975 = vst [vmem:[%s7 + $0x38] sm:$0x3f] %v5963
  %5976 = vst [vmem:[%s7 + $0x40] sm:$0x3f] %v5964
  %5977 = vst [vmem:[%s7 + $0x48] sm:$0x3f] %v5965
  %5978 = vst [vmem:[%s7 + $0x50] sm:$0x3f] %v5966
  %5979 = vst [vmem:[%s7 + $0x58] sm:$0x3f] %v5967
  // Predicated region
  $region30: #{image_embeddings_for_bert.1} parent=0 // pred_check
    _
  $region31: #{image_embeddings_for_bert.1} parent=0 // pred_check_branch
    %5981 = sbr.rel (0) target = $region33
  $region32: #{image_embeddings_for_bert.1} parent=0 // pred_region
    _
  $region33: #{image_embeddings_for_bert.1} parent=0 // pred_fallthru
    _
  // Predicated region
  $region34: #{image_embeddings_for_bert.1} parent=0 // pred_check
    _
  $region35: #{image_embeddings_for_bert.1} parent=0 // pred_check_branch
    %5983 = sbr.rel (0) target = $region37
  $region36: #{image_embeddings_for_bert.1} parent=0 // pred_region
    _
  $region37: #{image_embeddings_for_bert.1} parent=0 // pred_fallthru
    _

</llo_original>
